<compile_context>
chip_gen: v7x
topology: tpu7x:2x2x1
jax: 0.10.0
libtpu: 0.0.40
codegen_flags: <defaults>
</compile_context>

<pallas_src>
import math

import jax
import jax.numpy as jnp
from jax.experimental import pallas as pl
from jax.experimental.pallas import tpu as pltpu

EMBED_DIM = 40          # must be divisible by num_heads
NUM_HEADS = 10          # hard-coded in the module (__init__ overrides the arg)
SEQ_LEN = 8
BATCH = 2
LN_EPS = 1e-5


# ------------------------------ fused kernel -------------------------------- #

def make_encoder_layer_kernel(num_heads, head_dim, batch, scaling):
    """One kernel computing the full encoder layer on a (N, E) token slab.

    Row order of the slab is the natural reshape of (seq, batch, embed):
    row n corresponds to (s = n // batch, b = n % batch).  Cross-batch attention
    is suppressed with an additive -1e30 mask so a single (N, N) score matrix
    reproduces per-(batch, head) softmax attention exactly.
    """

    def kernel(x_ref, w1_ref, w2_ref, p_ref, o_ref):
        n_tok, embed = x_ref.shape
        e = embed

        def layer_norm(v, g, b):
            mean = jnp.mean(v, axis=-1, keepdims=True)
            var = jnp.mean((v - mean) ** 2, axis=-1, keepdims=True)
            return (v - mean) * jax.lax.rsqrt(var + LN_EPS) * g + b

        # -------- unpack the packed operand slabs (static slices, no data movement)
        in_w = w1_ref[:, :3 * e]                      # (E, 3E)   qkv projection
        out_w = w1_ref[:, 3 * e:4 * e]                # (E, E)    out projection
        fc1_w = w1_ref[:, 4 * e:8 * e]                # (E, 4E)
        fc2_w = w2_ref[...]                           # (4E, E)

        in_b = p_ref[0:1, :3 * e]                     # (1, 3E)
        out_b = p_ref[1:2, :e]                        # (1, E)
        fc1_b = p_ref[2:3, :4 * e]                    # (1, 4E)
        fc2_b = p_ref[3:4, :e]                        # (1, E)
        ln0_g = p_ref[4:5, :e]
        ln0_b = p_ref[5:6, :e]
        ln1_g = p_ref[6:7, :e]
        ln1_b = p_ref[7:8, :e]

        x = x_ref[...]                                # (N, E) f32 residual

        # ---------------- self-attention block (pre-LN) ----------------
        xn = layer_norm(x, ln0_g, ln0_b)
        qkv = jnp.dot(xn, in_w,
                      preferred_element_type=jnp.float32) + in_b        # (N, 3E)
        q = qkv[:, :e] * scaling
        k = qkv[:, e:2 * e]
        v = qkv[:, 2 * e:]

        # additive mask: disallow attention across different batch elements
        row = jax.lax.broadcasted_iota(jnp.int32, (n_tok, n_tok), 0)
        col = jax.lax.broadcasted_iota(jnp.int32, (n_tok, n_tok), 1)
        mask_bias = jnp.where((row % batch) == (col % batch), 0.0, -1e30)

        # Per-head attention, results kept in registers and folded directly into
        # the out-projection:  attn_out = sum_h o_h @ W_out[h*Hd:(h+1)*Hd, :]
        attn_out = None
        for h in range(num_heads):
            lo, hi = h * head_dim, (h + 1) * head_dim
            qh = q[:, lo:hi]                          # (N, Hd)
            kh = k[:, lo:hi]
            vh = v[:, lo:hi]
            s = jax.lax.dot_general(
                qh, kh, dimension_numbers=(((1,), (1,)), ((), ())),
                preferred_element_type=jnp.float32) + mask_bias          # (N, N)
            s = s - jnp.max(s, axis=-1, keepdims=True)
            p = jnp.exp(s)
            denom = jnp.sum(p, axis=-1, keepdims=True)                   # (N, 1)
            oh = jnp.dot(p, vh, preferred_element_type=jnp.float32)      # (N, Hd)
            oh = oh / denom                           # deferred, exact normalization
            contrib = jnp.dot(oh, out_w[lo:hi, :],
                              preferred_element_type=jnp.float32)        # (N, E)
            attn_out = contrib if attn_out is None else attn_out + contrib

        # out projection bias + residual add
        x = attn_out + out_b + x

        # ---------------- feed-forward block (pre-LN) ----------------
        xn = layer_norm(x, ln1_g, ln1_b)
        h1 = jnp.dot(xn, fc1_w,
                     preferred_element_type=jnp.float32) + fc1_b
        h1 = jnp.maximum(h1, 0.0)
        x = jnp.dot(h1, fc2_w,
                    preferred_element_type=jnp.float32) + fc2_b + x

        o_ref[...] = x.astype(o_ref.dtype)

    return kernel


# --------------------------- parameter construction ------------------------- #

def init_params(key, embed_dim):
    """Weights pre-transposed to (in, out) and packed into 3 slabs at init."""
    keys = jax.random.split(key, 4)
    e = embed_dim

    def xavier_t(k, out_features, in_features):
        bound = math.sqrt(6.0 / (in_features + out_features))
        w = jax.random.uniform(k, (out_features, in_features), jnp.float32,
                               -bound, bound)
        return w.T  # one-time transpose at init; kernel never transposes

    in_w_t = xavier_t(keys[0], 3 * e, e)      # (E, 3E)
    out_w_t = xavier_t(keys[1], e, e)         # (E, E)
    fc1_w_t = xavier_t(keys[2], 4 * e, e)     # (E, 4E)
    fc2_w_t = xavier_t(keys[3], e, 4 * e)     # (4E, E)

    # weight slab 1: [in_proj^T | out_proj^T | fc1^T]  -> (E, 8E), single DMA
    w1 = jnp.concatenate([in_w_t, out_w_t, fc1_w_t], axis=1)

    # packed bias / LayerNorm param slab: 8 rows x 4E lanes, single DMA
    # row 0: in_proj bias (3E) | 1: out_proj bias (E) | 2: fc1 bias (4E)
    # row 3: fc2 bias (E)      | 4: ln0 gamma | 5: ln0 beta | 6: ln1 gamma | 7: ln1 beta
    pk = jnp.zeros((8, 4 * e), jnp.float32)
    pk = pk.at[0, :3 * e].set(jnp.zeros((3 * e,), jnp.float32))   # in_proj bias = 0
    pk = pk.at[1, :e].set(jnp.zeros((e,), jnp.float32))           # out_proj bias = 0
    pk = pk.at[2, :4 * e].set(jnp.zeros((4 * e,), jnp.float32))   # fc1 bias = 0
    pk = pk.at[3, :e].set(jnp.zeros((e,), jnp.float32))           # fc2 bias = 0
    pk = pk.at[4, :e].set(jnp.ones((e,), jnp.float32))            # ln0 gamma = 1
    pk = pk.at[5, :e].set(jnp.zeros((e,), jnp.float32))           # ln0 beta = 0
    pk = pk.at[6, :e].set(jnp.ones((e,), jnp.float32))            # ln1 gamma = 1
    pk = pk.at[7, :e].set(jnp.zeros((e,), jnp.float32))           # ln1 beta = 0

    return {"w1": w1, "w2": fc2_w_t, "pk": pk}


# ---------------------------------- forward --------------------------------- #

@jax.jit
def transformer_encoder_layer(x, params):
    """x: (seq_len, batch, embed_dim) -> (seq_len, batch, embed_dim)."""
    S, B, E = x.shape
    H = NUM_HEADS
    Hd = E // H
    scaling = Hd ** -0.5
    N = S * B

    x2d = x.reshape(N, E)   # row order = s*B + b (handled by in-kernel batch mask)

    kernel = make_encoder_layer_kernel(H, Hd, B, scaling)
    vmem_spec = pl.BlockSpec(memory_space=pltpu.MemorySpace.VMEM)

    out2d = pl.pallas_call(
        kernel,
        out_shape=jax.ShapeDtypeStruct((N, E), x.dtype),
        in_specs=[vmem_spec] * 4,
        out_specs=vmem_spec,
        input_output_aliases={0: 0},   # output reuses the token-slab buffer
    )(x2d, params["w1"], params["w2"], params["pk"])
    return out2d.reshape(S, B, E)


# ------------------------------------ main ----------------------------------- #

if __name__ == "__main__":
    key = jax.random.PRNGKey(0)
    k_param, k_input = jax.random.split(key)

    params = init_params(k_param, EMBED_DIM)
    x = jax.random.normal(k_input, (SEQ_LEN, BATCH, EMBED_DIM), jnp.float32)

    out = transformer_encoder_layer(x, params)
    out = jax.block_until_ready(out)

    assert out.shape == (SEQ_LEN, BATCH, EMBED_DIM)
    assert jnp.all(jnp.isfinite(out))
    print("KERNEL_OK")
</pallas_src>

<mosaic_0001>
module attributes {stable_mosaic.version = 11 : i64} {
  func.func @kernel(%arg0: memref<16x40xf32, #tpu.memory_space<vmem>>, %arg1: memref<40x320xf32, #tpu.memory_space<vmem>>, %arg2: memref<160x40xf32, #tpu.memory_space<vmem>>, %arg3: memref<8x160xf32, #tpu.memory_space<vmem>>, %arg4: memref<16x40xf32, #tpu.memory_space<vmem>>) attributes {dimension_semantics = [], scalar_prefetch = 0 : i64, scratch_operands = 0 : i64, tpu.core_type = #tpu.core_type<tc>} {
    %c0 = arith.constant 0 : index
    %c0_0 = arith.constant 0 : index
    %0 = vector.load %arg1[%c0, %c0_0] : memref<40x320xf32, #tpu.memory_space<vmem>>, vector<40x120xf32>
    %c0_1 = arith.constant 0 : index
    %c120 = arith.constant 120 : index
    %1 = vector.load %arg1[%c0_1, %c120] : memref<40x320xf32, #tpu.memory_space<vmem>>, vector<40x40xf32>
    %c0_2 = arith.constant 0 : index
    %c160 = arith.constant 160 : index
    %2 = vector.load %arg1[%c0_2, %c160] : memref<40x320xf32, #tpu.memory_space<vmem>>, vector<40x160xf32>
    %c0_3 = arith.constant 0 : index
    %c0_4 = arith.constant 0 : index
    %3 = vector.load %arg2[%c0_3, %c0_4] : memref<160x40xf32, #tpu.memory_space<vmem>>, vector<160x40xf32>
    %c0_5 = arith.constant 0 : index
    %c0_6 = arith.constant 0 : index
    %4 = vector.load %arg3[%c0_5, %c0_6] : memref<8x160xf32, #tpu.memory_space<vmem>>, vector<1x120xf32>
    %c1 = arith.constant 1 : index
    %c0_7 = arith.constant 0 : index
    %5 = vector.load %arg3[%c1, %c0_7] : memref<8x160xf32, #tpu.memory_space<vmem>>, vector<1x40xf32>
    %c2 = arith.constant 2 : index
    %c0_8 = arith.constant 0 : index
    %6 = vector.load %arg3[%c2, %c0_8] : memref<8x160xf32, #tpu.memory_space<vmem>>, vector<1x160xf32>
    %c3 = arith.constant 3 : index
    %c0_9 = arith.constant 0 : index
    %7 = vector.load %arg3[%c3, %c0_9] : memref<8x160xf32, #tpu.memory_space<vmem>>, vector<1x40xf32>
    %c4 = arith.constant 4 : index
    %c0_10 = arith.constant 0 : index
    %8 = vector.load %arg3[%c4, %c0_10] : memref<8x160xf32, #tpu.memory_space<vmem>>, vector<1x40xf32>
    %c5 = arith.constant 5 : index
    %c0_11 = arith.constant 0 : index
    %9 = vector.load %arg3[%c5, %c0_11] : memref<8x160xf32, #tpu.memory_space<vmem>>, vector<1x40xf32>
    %c6 = arith.constant 6 : index
    %c0_12 = arith.constant 0 : index
    %10 = vector.load %arg3[%c6, %c0_12] : memref<8x160xf32, #tpu.memory_space<vmem>>, vector<1x40xf32>
    %c7 = arith.constant 7 : index
    %c0_13 = arith.constant 0 : index
    %11 = vector.load %arg3[%c7, %c0_13] : memref<8x160xf32, #tpu.memory_space<vmem>>, vector<1x40xf32>
    %c0_14 = arith.constant 0 : index
    %c0_15 = arith.constant 0 : index
    %12 = vector.load %arg0[%c0_14, %c0_15] : memref<16x40xf32, #tpu.memory_space<vmem>>, vector<16x40xf32>
    %cst = arith.constant dense<0.000000e+00> : vector<16xf32>
    %13 = vector.multi_reduction <add>, %12, %cst [1] : vector<16x40xf32> to vector<16xf32>
    %14 = vector.shape_cast %13 : vector<16xf32> to vector<16x1xf32>
    %cst_16 = arith.constant 4.000000e+01 : f32
    %15 = vector.broadcast %cst_16 : f32 to vector<16x1xf32>
    %16 = arith.divf %14, %15 : vector<16x1xf32>
    %17 = vector.broadcast %16 : vector<16x1xf32> to vector<16x40xf32>
    %18 = arith.subf %12, %17 : vector<16x40xf32>
    %19 = arith.mulf %18, %18 : vector<16x40xf32>
    %cst_17 = arith.constant dense<0.000000e+00> : vector<16xf32>
    %20 = vector.multi_reduction <add>, %19, %cst_17 [1] : vector<16x40xf32> to vector<16xf32>
    %21 = vector.shape_cast %20 : vector<16xf32> to vector<16x1xf32>
    %cst_18 = arith.constant 4.000000e+01 : f32
    %22 = vector.broadcast %cst_18 : f32 to vector<16x1xf32>
    %23 = arith.divf %21, %22 : vector<16x1xf32>
    %24 = vector.broadcast %16 : vector<16x1xf32> to vector<16x40xf32>
    %25 = arith.subf %12, %24 : vector<16x40xf32>
    %cst_19 = arith.constant 9.99999974E-6 : f32
    %26 = vector.broadcast %cst_19 : f32 to vector<16x1xf32>
    %27 = arith.addf %23, %26 : vector<16x1xf32>
    %28 = math.rsqrt %27 : vector<16x1xf32>
    %29 = vector.broadcast %28 : vector<16x1xf32> to vector<16x40xf32>
    %30 = arith.mulf %25, %29 : vector<16x40xf32>
    %31 = vector.broadcast %8 : vector<1x40xf32> to vector<16x40xf32>
    %32 = arith.mulf %30, %31 : vector<16x40xf32>
    %33 = vector.broadcast %9 : vector<1x40xf32> to vector<16x40xf32>
    %34 = arith.addf %32, %33 : vector<16x40xf32>
    %cst_20 = arith.constant dense<0.000000e+00> : vector<16x120xf32>
    %35 = tpu.matmul %34, %0, %cst_20 {dimension_numbers = #tpu.dot_dimension_numbers<[1], [0], [0], [1], [0, 0, 1, 1], [], []>} : vector<16x40xf32>, vector<40x120xf32>, vector<16x120xf32> -> vector<16x120xf32>
    %36 = vector.broadcast %4 : vector<1x120xf32> to vector<16x120xf32>
    %37 = arith.addf %35, %36 : vector<16x120xf32>
    %38 = vector.extract_strided_slice %37 {offsets = [0, 0], sizes = [16, 40], strides = [1, 1]} : vector<16x120xf32> to vector<16x40xf32>
    %cst_21 = arith.constant 5.000000e-01 : f32
    %39 = vector.broadcast %cst_21 : f32 to vector<16x40xf32>
    %40 = arith.mulf %38, %39 : vector<16x40xf32>
    %41 = vector.extract_strided_slice %37 {offsets = [0, 40], sizes = [16, 40], strides = [1, 1]} : vector<16x120xf32> to vector<16x40xf32>
    %42 = vector.extract_strided_slice %37 {offsets = [0, 80], sizes = [16, 40], strides = [1, 1]} : vector<16x120xf32> to vector<16x40xf32>
    %43 = tpu.iota {dimensions = array<i32: 0>} : vector<16x16xi32>
    %44 = tpu.iota {dimensions = array<i32: 1>} : vector<16x16xi32>
    %c2_i32 = arith.constant 2 : i32
    %c0_i32 = arith.constant 0 : i32
    %45 = arith.cmpi eq, %c2_i32, %c0_i32 : i32
    %c1_i32 = arith.constant 1 : i32
    %46 = arith.select %45, %c1_i32, %c2_i32 : i32
    %47 = vector.broadcast %46 : i32 to vector<16x16xi32>
    %48 = arith.remsi %43, %47 : vector<16x16xi32>
    %c0_i32_22 = arith.constant 0 : i32
    %49 = vector.broadcast %c0_i32_22 : i32 to vector<16x16xi32>
    %50 = arith.cmpi ne, %48, %49 : vector<16x16xi32>
    %c0_i32_23 = arith.constant 0 : i32
    %51 = vector.broadcast %c0_i32_23 : i32 to vector<16x16xi32>
    %52 = arith.cmpi slt, %48, %51 : vector<16x16xi32>
    %c0_i32_24 = arith.constant 0 : i32
    %53 = arith.cmpi slt, %46, %c0_i32_24 : i32
    %54 = vector.broadcast %53 : i1 to vector<16x16xi1>
    %55 = vector.broadcast %54 : vector<16x16xi1> to vector<16x16xi1>
    %56 = arith.xori %52, %55 : vector<16x16xi1>
    %57 = arith.andi %56, %50 : vector<16x16xi1>
    %58 = vector.broadcast %46 : i32 to vector<16x16xi32>
    %59 = arith.addi %48, %58 : vector<16x16xi32>
    %60 = arith.select %57, %59, %48 : vector<16x16xi1>, vector<16x16xi32>
    %c2_i32_25 = arith.constant 2 : i32
    %c0_i32_26 = arith.constant 0 : i32
    %61 = arith.cmpi eq, %c2_i32_25, %c0_i32_26 : i32
    %c1_i32_27 = arith.constant 1 : i32
    %62 = arith.select %61, %c1_i32_27, %c2_i32_25 : i32
    %63 = vector.broadcast %62 : i32 to vector<16x16xi32>
    %64 = arith.remsi %44, %63 : vector<16x16xi32>
    %c0_i32_28 = arith.constant 0 : i32
    %65 = vector.broadcast %c0_i32_28 : i32 to vector<16x16xi32>
    %66 = arith.cmpi ne, %64, %65 : vector<16x16xi32>
    %c0_i32_29 = arith.constant 0 : i32
    %67 = vector.broadcast %c0_i32_29 : i32 to vector<16x16xi32>
    %68 = arith.cmpi slt, %64, %67 : vector<16x16xi32>
    %c0_i32_30 = arith.constant 0 : i32
    %69 = arith.cmpi slt, %62, %c0_i32_30 : i32
    %70 = vector.broadcast %69 : i1 to vector<16x16xi1>
    %71 = vector.broadcast %70 : vector<16x16xi1> to vector<16x16xi1>
    %72 = arith.xori %68, %71 : vector<16x16xi1>
    %73 = arith.andi %72, %66 : vector<16x16xi1>
    %74 = vector.broadcast %62 : i32 to vector<16x16xi32>
    %75 = arith.addi %64, %74 : vector<16x16xi32>
    %76 = arith.select %73, %75, %64 : vector<16x16xi1>, vector<16x16xi32>
    %77 = arith.cmpi eq, %60, %76 : vector<16x16xi32>
    %cst_31 = arith.constant 0.000000e+00 : f32
    %cst_32 = arith.constant -1.000000e+30 : f32
    %78 = vector.broadcast %cst_31 : f32 to vector<16x16xf32>
    %79 = vector.broadcast %cst_32 : f32 to vector<16x16xf32>
    %80 = arith.select %77, %78, %79 : vector<16x16xi1>, vector<16x16xf32>
    %81 = vector.extract_strided_slice %40 {offsets = [0, 0], sizes = [16, 4], strides = [1, 1]} : vector<16x40xf32> to vector<16x4xf32>
    %82 = vector.extract_strided_slice %41 {offsets = [0, 0], sizes = [16, 4], strides = [1, 1]} : vector<16x40xf32> to vector<16x4xf32>
    %83 = vector.extract_strided_slice %42 {offsets = [0, 0], sizes = [16, 4], strides = [1, 1]} : vector<16x40xf32> to vector<16x4xf32>
    %cst_33 = arith.constant dense<0.000000e+00> : vector<16x16xf32>
    %84 = tpu.matmul %81, %82, %cst_33 {dimension_numbers = #tpu.dot_dimension_numbers<[1], [1], [0], [0], [0, 0, 1, 0], [], []>} : vector<16x4xf32>, vector<16x4xf32>, vector<16x16xf32> -> vector<16x16xf32>
    %85 = arith.addf %84, %80 : vector<16x16xf32>
    %cst_34 = arith.constant dense<0xFF800000> : vector<16xf32>
    %86 = vector.multi_reduction <maximumf>, %85, %cst_34 [1] : vector<16x16xf32> to vector<16xf32>
    %87 = vector.shape_cast %86 : vector<16xf32> to vector<16x1xf32>
    %88 = vector.broadcast %87 : vector<16x1xf32> to vector<16x16xf32>
    %89 = arith.subf %85, %88 : vector<16x16xf32>
    %90 = math.exp %89 : vector<16x16xf32>
    %cst_35 = arith.constant dense<0.000000e+00> : vector<16xf32>
    %91 = vector.multi_reduction <add>, %90, %cst_35 [1] : vector<16x16xf32> to vector<16xf32>
    %92 = vector.shape_cast %91 : vector<16xf32> to vector<16x1xf32>
    %cst_36 = arith.constant dense<0.000000e+00> : vector<16x4xf32>
    %93 = tpu.matmul %90, %83, %cst_36 {dimension_numbers = #tpu.dot_dimension_numbers<[1], [0], [0], [1], [0, 0, 1, 1], [], []>} : vector<16x16xf32>, vector<16x4xf32>, vector<16x4xf32> -> vector<16x4xf32>
    %94 = vector.broadcast %92 : vector<16x1xf32> to vector<16x4xf32>
    %95 = arith.divf %93, %94 : vector<16x4xf32>
    %96 = vector.extract_strided_slice %1 {offsets = [0, 0], sizes = [4, 40], strides = [1, 1]} : vector<40x40xf32> to vector<4x40xf32>
    %cst_37 = arith.constant dense<0.000000e+00> : vector<16x40xf32>
    %97 = tpu.matmul %95, %96, %cst_37 {dimension_numbers = #tpu.dot_dimension_numbers<[1], [0], [0], [1], [0, 0, 1, 1], [], []>} : vector<16x4xf32>, vector<4x40xf32>, vector<16x40xf32> -> vector<16x40xf32>
    %98 = vector.extract_strided_slice %40 {offsets = [0, 4], sizes = [16, 4], strides = [1, 1]} : vector<16x40xf32> to vector<16x4xf32>
    %99 = vector.extract_strided_slice %41 {offsets = [0, 4], sizes = [16, 4], strides = [1, 1]} : vector<16x40xf32> to vector<16x4xf32>
    %100 = vector.extract_strided_slice %42 {offsets = [0, 4], sizes = [16, 4], strides = [1, 1]} : vector<16x40xf32> to vector<16x4xf32>
    %cst_38 = arith.constant dense<0.000000e+00> : vector<16x16xf32>
    %101 = tpu.matmul %98, %99, %cst_38 {dimension_numbers = #tpu.dot_dimension_numbers<[1], [1], [0], [0], [0, 0, 1, 0], [], []>} : vector<16x4xf32>, vector<16x4xf32>, vector<16x16xf32> -> vector<16x16xf32>
    %102 = arith.addf %101, %80 : vector<16x16xf32>
    %cst_39 = arith.constant dense<0xFF800000> : vector<16xf32>
    %103 = vector.multi_reduction <maximumf>, %102, %cst_39 [1] : vector<16x16xf32> to vector<16xf32>
    %104 = vector.shape_cast %103 : vector<16xf32> to vector<16x1xf32>
    %105 = vector.broadcast %104 : vector<16x1xf32> to vector<16x16xf32>
    %106 = arith.subf %102, %105 : vector<16x16xf32>
    %107 = math.exp %106 : vector<16x16xf32>
    %cst_40 = arith.constant dense<0.000000e+00> : vector<16xf32>
    %108 = vector.multi_reduction <add>, %107, %cst_40 [1] : vector<16x16xf32> to vector<16xf32>
    %109 = vector.shape_cast %108 : vector<16xf32> to vector<16x1xf32>
    %cst_41 = arith.constant dense<0.000000e+00> : vector<16x4xf32>
    %110 = tpu.matmul %107, %100, %cst_41 {dimension_numbers = #tpu.dot_dimension_numbers<[1], [0], [0], [1], [0, 0, 1, 1], [], []>} : vector<16x16xf32>, vector<16x4xf32>, vector<16x4xf32> -> vector<16x4xf32>
    %111 = vector.broadcast %109 : vector<16x1xf32> to vector<16x4xf32>
    %112 = arith.divf %110, %111 : vector<16x4xf32>
    %113 = vector.extract_strided_slice %1 {offsets = [4, 0], sizes = [4, 40], strides = [1, 1]} : vector<40x40xf32> to vector<4x40xf32>
    %cst_42 = arith.constant dense<0.000000e+00> : vector<16x40xf32>
    %114 = tpu.matmul %112, %113, %cst_42 {dimension_numbers = #tpu.dot_dimension_numbers<[1], [0], [0], [1], [0, 0, 1, 1], [], []>} : vector<16x4xf32>, vector<4x40xf32>, vector<16x40xf32> -> vector<16x40xf32>
    %115 = arith.addf %97, %114 : vector<16x40xf32>
    %116 = vector.extract_strided_slice %40 {offsets = [0, 8], sizes = [16, 4], strides = [1, 1]} : vector<16x40xf32> to vector<16x4xf32>
    %117 = vector.extract_strided_slice %41 {offsets = [0, 8], sizes = [16, 4], strides = [1, 1]} : vector<16x40xf32> to vector<16x4xf32>
    %118 = vector.extract_strided_slice %42 {offsets = [0, 8], sizes = [16, 4], strides = [1, 1]} : vector<16x40xf32> to vector<16x4xf32>
    %cst_43 = arith.constant dense<0.000000e+00> : vector<16x16xf32>
    %119 = tpu.matmul %116, %117, %cst_43 {dimension_numbers = #tpu.dot_dimension_numbers<[1], [1], [0], [0], [0, 0, 1, 0], [], []>} : vector<16x4xf32>, vector<16x4xf32>, vector<16x16xf32> -> vector<16x16xf32>
    %120 = arith.addf %119, %80 : vector<16x16xf32>
    %cst_44 = arith.constant dense<0xFF800000> : vector<16xf32>
    %121 = vector.multi_reduction <maximumf>, %120, %cst_44 [1] : vector<16x16xf32> to vector<16xf32>
    %122 = vector.shape_cast %121 : vector<16xf32> to vector<16x1xf32>
    %123 = vector.broadcast %122 : vector<16x1xf32> to vector<16x16xf32>
    %124 = arith.subf %120, %123 : vector<16x16xf32>
    %125 = math.exp %124 : vector<16x16xf32>
    %cst_45 = arith.constant dense<0.000000e+00> : vector<16xf32>
    %126 = vector.multi_reduction <add>, %125, %cst_45 [1] : vector<16x16xf32> to vector<16xf32>
    %127 = vector.shape_cast %126 : vector<16xf32> to vector<16x1xf32>
    %cst_46 = arith.constant dense<0.000000e+00> : vector<16x4xf32>
    %128 = tpu.matmul %125, %118, %cst_46 {dimension_numbers = #tpu.dot_dimension_numbers<[1], [0], [0], [1], [0, 0, 1, 1], [], []>} : vector<16x16xf32>, vector<16x4xf32>, vector<16x4xf32> -> vector<16x4xf32>
    %129 = vector.broadcast %127 : vector<16x1xf32> to vector<16x4xf32>
    %130 = arith.divf %128, %129 : vector<16x4xf32>
    %131 = vector.extract_strided_slice %1 {offsets = [8, 0], sizes = [4, 40], strides = [1, 1]} : vector<40x40xf32> to vector<4x40xf32>
    %cst_47 = arith.constant dense<0.000000e+00> : vector<16x40xf32>
    %132 = tpu.matmul %130, %131, %cst_47 {dimension_numbers = #tpu.dot_dimension_numbers<[1], [0], [0], [1], [0, 0, 1, 1], [], []>} : vector<16x4xf32>, vector<4x40xf32>, vector<16x40xf32> -> vector<16x40xf32>
    %133 = arith.addf %115, %132 : vector<16x40xf32>
    %134 = vector.extract_strided_slice %40 {offsets = [0, 12], sizes = [16, 4], strides = [1, 1]} : vector<16x40xf32> to vector<16x4xf32>
    %135 = vector.extract_strided_slice %41 {offsets = [0, 12], sizes = [16, 4], strides = [1, 1]} : vector<16x40xf32> to vector<16x4xf32>
    %136 = vector.extract_strided_slice %42 {offsets = [0, 12], sizes = [16, 4], strides = [1, 1]} : vector<16x40xf32> to vector<16x4xf32>
    %cst_48 = arith.constant dense<0.000000e+00> : vector<16x16xf32>
    %137 = tpu.matmul %134, %135, %cst_48 {dimension_numbers = #tpu.dot_dimension_numbers<[1], [1], [0], [0], [0, 0, 1, 0], [], []>} : vector<16x4xf32>, vector<16x4xf32>, vector<16x16xf32> -> vector<16x16xf32>
    %138 = arith.addf %137, %80 : vector<16x16xf32>
    %cst_49 = arith.constant dense<0xFF800000> : vector<16xf32>
    %139 = vector.multi_reduction <maximumf>, %138, %cst_49 [1] : vector<16x16xf32> to vector<16xf32>
    %140 = vector.shape_cast %139 : vector<16xf32> to vector<16x1xf32>
    %141 = vector.broadcast %140 : vector<16x1xf32> to vector<16x16xf32>
    %142 = arith.subf %138, %141 : vector<16x16xf32>
    %143 = math.exp %142 : vector<16x16xf32>
    %cst_50 = arith.constant dense<0.000000e+00> : vector<16xf32>
    %144 = vector.multi_reduction <add>, %143, %cst_50 [1] : vector<16x16xf32> to vector<16xf32>
    %145 = vector.shape_cast %144 : vector<16xf32> to vector<16x1xf32>
    %cst_51 = arith.constant dense<0.000000e+00> : vector<16x4xf32>
    %146 = tpu.matmul %143, %136, %cst_51 {dimension_numbers = #tpu.dot_dimension_numbers<[1], [0], [0], [1], [0, 0, 1, 1], [], []>} : vector<16x16xf32>, vector<16x4xf32>, vector<16x4xf32> -> vector<16x4xf32>
    %147 = vector.broadcast %145 : vector<16x1xf32> to vector<16x4xf32>
    %148 = arith.divf %146, %147 : vector<16x4xf32>
    %149 = vector.extract_strided_slice %1 {offsets = [12, 0], sizes = [4, 40], strides = [1, 1]} : vector<40x40xf32> to vector<4x40xf32>
    %cst_52 = arith.constant dense<0.000000e+00> : vector<16x40xf32>
    %150 = tpu.matmul %148, %149, %cst_52 {dimension_numbers = #tpu.dot_dimension_numbers<[1], [0], [0], [1], [0, 0, 1, 1], [], []>} : vector<16x4xf32>, vector<4x40xf32>, vector<16x40xf32> -> vector<16x40xf32>
    %151 = arith.addf %133, %150 : vector<16x40xf32>
    %152 = vector.extract_strided_slice %40 {offsets = [0, 16], sizes = [16, 4], strides = [1, 1]} : vector<16x40xf32> to vector<16x4xf32>
    %153 = vector.extract_strided_slice %41 {offsets = [0, 16], sizes = [16, 4], strides = [1, 1]} : vector<16x40xf32> to vector<16x4xf32>
    %154 = vector.extract_strided_slice %42 {offsets = [0, 16], sizes = [16, 4], strides = [1, 1]} : vector<16x40xf32> to vector<16x4xf32>
    %cst_53 = arith.constant dense<0.000000e+00> : vector<16x16xf32>
    %155 = tpu.matmul %152, %153, %cst_53 {dimension_numbers = #tpu.dot_dimension_numbers<[1], [1], [0], [0], [0, 0, 1, 0], [], []>} : vector<16x4xf32>, vector<16x4xf32>, vector<16x16xf32> -> vector<16x16xf32>
    %156 = arith.addf %155, %80 : vector<16x16xf32>
    %cst_54 = arith.constant dense<0xFF800000> : vector<16xf32>
    %157 = vector.multi_reduction <maximumf>, %156, %cst_54 [1] : vector<16x16xf32> to vector<16xf32>
    %158 = vector.shape_cast %157 : vector<16xf32> to vector<16x1xf32>
    %159 = vector.broadcast %158 : vector<16x1xf32> to vector<16x16xf32>
    %160 = arith.subf %156, %159 : vector<16x16xf32>
    %161 = math.exp %160 : vector<16x16xf32>
    %cst_55 = arith.constant dense<0.000000e+00> : vector<16xf32>
    %162 = vector.multi_reduction <add>, %161, %cst_55 [1] : vector<16x16xf32> to vector<16xf32>
    %163 = vector.shape_cast %162 : vector<16xf32> to vector<16x1xf32>
    %cst_56 = arith.constant dense<0.000000e+00> : vector<16x4xf32>
    %164 = tpu.matmul %161, %154, %cst_56 {dimension_numbers = #tpu.dot_dimension_numbers<[1], [0], [0], [1], [0, 0, 1, 1], [], []>} : vector<16x16xf32>, vector<16x4xf32>, vector<16x4xf32> -> vector<16x4xf32>
    %165 = vector.broadcast %163 : vector<16x1xf32> to vector<16x4xf32>
    %166 = arith.divf %164, %165 : vector<16x4xf32>
    %167 = vector.extract_strided_slice %1 {offsets = [16, 0], sizes = [4, 40], strides = [1, 1]} : vector<40x40xf32> to vector<4x40xf32>
    %cst_57 = arith.constant dense<0.000000e+00> : vector<16x40xf32>
    %168 = tpu.matmul %166, %167, %cst_57 {dimension_numbers = #tpu.dot_dimension_numbers<[1], [0], [0], [1], [0, 0, 1, 1], [], []>} : vector<16x4xf32>, vector<4x40xf32>, vector<16x40xf32> -> vector<16x40xf32>
    %169 = arith.addf %151, %168 : vector<16x40xf32>
    %170 = vector.extract_strided_slice %40 {offsets = [0, 20], sizes = [16, 4], strides = [1, 1]} : vector<16x40xf32> to vector<16x4xf32>
    %171 = vector.extract_strided_slice %41 {offsets = [0, 20], sizes = [16, 4], strides = [1, 1]} : vector<16x40xf32> to vector<16x4xf32>
    %172 = vector.extract_strided_slice %42 {offsets = [0, 20], sizes = [16, 4], strides = [1, 1]} : vector<16x40xf32> to vector<16x4xf32>
    %cst_58 = arith.constant dense<0.000000e+00> : vector<16x16xf32>
    %173 = tpu.matmul %170, %171, %cst_58 {dimension_numbers = #tpu.dot_dimension_numbers<[1], [1], [0], [0], [0, 0, 1, 0], [], []>} : vector<16x4xf32>, vector<16x4xf32>, vector<16x16xf32> -> vector<16x16xf32>
    %174 = arith.addf %173, %80 : vector<16x16xf32>
    %cst_59 = arith.constant dense<0xFF800000> : vector<16xf32>
    %175 = vector.multi_reduction <maximumf>, %174, %cst_59 [1] : vector<16x16xf32> to vector<16xf32>
    %176 = vector.shape_cast %175 : vector<16xf32> to vector<16x1xf32>
    %177 = vector.broadcast %176 : vector<16x1xf32> to vector<16x16xf32>
    %178 = arith.subf %174, %177 : vector<16x16xf32>
    %179 = math.exp %178 : vector<16x16xf32>
    %cst_60 = arith.constant dense<0.000000e+00> : vector<16xf32>
    %180 = vector.multi_reduction <add>, %179, %cst_60 [1] : vector<16x16xf32> to vector<16xf32>
    %181 = vector.shape_cast %180 : vector<16xf32> to vector<16x1xf32>
    %cst_61 = arith.constant dense<0.000000e+00> : vector<16x4xf32>
    %182 = tpu.matmul %179, %172, %cst_61 {dimension_numbers = #tpu.dot_dimension_numbers<[1], [0], [0], [1], [0, 0, 1, 1], [], []>} : vector<16x16xf32>, vector<16x4xf32>, vector<16x4xf32> -> vector<16x4xf32>
    %183 = vector.broadcast %181 : vector<16x1xf32> to vector<16x4xf32>
    %184 = arith.divf %182, %183 : vector<16x4xf32>
    %185 = vector.extract_strided_slice %1 {offsets = [20, 0], sizes = [4, 40], strides = [1, 1]} : vector<40x40xf32> to vector<4x40xf32>
    %cst_62 = arith.constant dense<0.000000e+00> : vector<16x40xf32>
    %186 = tpu.matmul %184, %185, %cst_62 {dimension_numbers = #tpu.dot_dimension_numbers<[1], [0], [0], [1], [0, 0, 1, 1], [], []>} : vector<16x4xf32>, vector<4x40xf32>, vector<16x40xf32> -> vector<16x40xf32>
    %187 = arith.addf %169, %186 : vector<16x40xf32>
    %188 = vector.extract_strided_slice %40 {offsets = [0, 24], sizes = [16, 4], strides = [1, 1]} : vector<16x40xf32> to vector<16x4xf32>
    %189 = vector.extract_strided_slice %41 {offsets = [0, 24], sizes = [16, 4], strides = [1, 1]} : vector<16x40xf32> to vector<16x4xf32>
    %190 = vector.extract_strided_slice %42 {offsets = [0, 24], sizes = [16, 4], strides = [1, 1]} : vector<16x40xf32> to vector<16x4xf32>
    %cst_63 = arith.constant dense<0.000000e+00> : vector<16x16xf32>
    %191 = tpu.matmul %188, %189, %cst_63 {dimension_numbers = #tpu.dot_dimension_numbers<[1], [1], [0], [0], [0, 0, 1, 0], [], []>} : vector<16x4xf32>, vector<16x4xf32>, vector<16x16xf32> -> vector<16x16xf32>
    %192 = arith.addf %191, %80 : vector<16x16xf32>
    %cst_64 = arith.constant dense<0xFF800000> : vector<16xf32>
    %193 = vector.multi_reduction <maximumf>, %192, %cst_64 [1] : vector<16x16xf32> to vector<16xf32>
    %194 = vector.shape_cast %193 : vector<16xf32> to vector<16x1xf32>
    %195 = vector.broadcast %194 : vector<16x1xf32> to vector<16x16xf32>
    %196 = arith.subf %192, %195 : vector<16x16xf32>
    %197 = math.exp %196 : vector<16x16xf32>
    %cst_65 = arith.constant dense<0.000000e+00> : vector<16xf32>
    %198 = vector.multi_reduction <add>, %197, %cst_65 [1] : vector<16x16xf32> to vector<16xf32>
    %199 = vector.shape_cast %198 : vector<16xf32> to vector<16x1xf32>
    %cst_66 = arith.constant dense<0.000000e+00> : vector<16x4xf32>
    %200 = tpu.matmul %197, %190, %cst_66 {dimension_numbers = #tpu.dot_dimension_numbers<[1], [0], [0], [1], [0, 0, 1, 1], [], []>} : vector<16x16xf32>, vector<16x4xf32>, vector<16x4xf32> -> vector<16x4xf32>
    %201 = vector.broadcast %199 : vector<16x1xf32> to vector<16x4xf32>
    %202 = arith.divf %200, %201 : vector<16x4xf32>
    %203 = vector.extract_strided_slice %1 {offsets = [24, 0], sizes = [4, 40], strides = [1, 1]} : vector<40x40xf32> to vector<4x40xf32>
    %cst_67 = arith.constant dense<0.000000e+00> : vector<16x40xf32>
    %204 = tpu.matmul %202, %203, %cst_67 {dimension_numbers = #tpu.dot_dimension_numbers<[1], [0], [0], [1], [0, 0, 1, 1], [], []>} : vector<16x4xf32>, vector<4x40xf32>, vector<16x40xf32> -> vector<16x40xf32>
    %205 = arith.addf %187, %204 : vector<16x40xf32>
    %206 = vector.extract_strided_slice %40 {offsets = [0, 28], sizes = [16, 4], strides = [1, 1]} : vector<16x40xf32> to vector<16x4xf32>
    %207 = vector.extract_strided_slice %41 {offsets = [0, 28], sizes = [16, 4], strides = [1, 1]} : vector<16x40xf32> to vector<16x4xf32>
    %208 = vector.extract_strided_slice %42 {offsets = [0, 28], sizes = [16, 4], strides = [1, 1]} : vector<16x40xf32> to vector<16x4xf32>
    %cst_68 = arith.constant dense<0.000000e+00> : vector<16x16xf32>
    %209 = tpu.matmul %206, %207, %cst_68 {dimension_numbers = #tpu.dot_dimension_numbers<[1], [1], [0], [0], [0, 0, 1, 0], [], []>} : vector<16x4xf32>, vector<16x4xf32>, vector<16x16xf32> -> vector<16x16xf32>
    %210 = arith.addf %209, %80 : vector<16x16xf32>
    %cst_69 = arith.constant dense<0xFF800000> : vector<16xf32>
    %211 = vector.multi_reduction <maximumf>, %210, %cst_69 [1] : vector<16x16xf32> to vector<16xf32>
    %212 = vector.shape_cast %211 : vector<16xf32> to vector<16x1xf32>
    %213 = vector.broadcast %212 : vector<16x1xf32> to vector<16x16xf32>
    %214 = arith.subf %210, %213 : vector<16x16xf32>
    %215 = math.exp %214 : vector<16x16xf32>
    %cst_70 = arith.constant dense<0.000000e+00> : vector<16xf32>
    %216 = vector.multi_reduction <add>, %215, %cst_70 [1] : vector<16x16xf32> to vector<16xf32>
    %217 = vector.shape_cast %216 : vector<16xf32> to vector<16x1xf32>
    %cst_71 = arith.constant dense<0.000000e+00> : vector<16x4xf32>
    %218 = tpu.matmul %215, %208, %cst_71 {dimension_numbers = #tpu.dot_dimension_numbers<[1], [0], [0], [1], [0, 0, 1, 1], [], []>} : vector<16x16xf32>, vector<16x4xf32>, vector<16x4xf32> -> vector<16x4xf32>
    %219 = vector.broadcast %217 : vector<16x1xf32> to vector<16x4xf32>
    %220 = arith.divf %218, %219 : vector<16x4xf32>
    %221 = vector.extract_strided_slice %1 {offsets = [28, 0], sizes = [4, 40], strides = [1, 1]} : vector<40x40xf32> to vector<4x40xf32>
    %cst_72 = arith.constant dense<0.000000e+00> : vector<16x40xf32>
    %222 = tpu.matmul %220, %221, %cst_72 {dimension_numbers = #tpu.dot_dimension_numbers<[1], [0], [0], [1], [0, 0, 1, 1], [], []>} : vector<16x4xf32>, vector<4x40xf32>, vector<16x40xf32> -> vector<16x40xf32>
    %223 = arith.addf %205, %222 : vector<16x40xf32>
    %224 = vector.extract_strided_slice %40 {offsets = [0, 32], sizes = [16, 4], strides = [1, 1]} : vector<16x40xf32> to vector<16x4xf32>
    %225 = vector.extract_strided_slice %41 {offsets = [0, 32], sizes = [16, 4], strides = [1, 1]} : vector<16x40xf32> to vector<16x4xf32>
    %226 = vector.extract_strided_slice %42 {offsets = [0, 32], sizes = [16, 4], strides = [1, 1]} : vector<16x40xf32> to vector<16x4xf32>
    %cst_73 = arith.constant dense<0.000000e+00> : vector<16x16xf32>
    %227 = tpu.matmul %224, %225, %cst_73 {dimension_numbers = #tpu.dot_dimension_numbers<[1], [1], [0], [0], [0, 0, 1, 0], [], []>} : vector<16x4xf32>, vector<16x4xf32>, vector<16x16xf32> -> vector<16x16xf32>
    %228 = arith.addf %227, %80 : vector<16x16xf32>
    %cst_74 = arith.constant dense<0xFF800000> : vector<16xf32>
    %229 = vector.multi_reduction <maximumf>, %228, %cst_74 [1] : vector<16x16xf32> to vector<16xf32>
    %230 = vector.shape_cast %229 : vector<16xf32> to vector<16x1xf32>
    %231 = vector.broadcast %230 : vector<16x1xf32> to vector<16x16xf32>
    %232 = arith.subf %228, %231 : vector<16x16xf32>
    %233 = math.exp %232 : vector<16x16xf32>
    %cst_75 = arith.constant dense<0.000000e+00> : vector<16xf32>
    %234 = vector.multi_reduction <add>, %233, %cst_75 [1] : vector<16x16xf32> to vector<16xf32>
    %235 = vector.shape_cast %234 : vector<16xf32> to vector<16x1xf32>
    %cst_76 = arith.constant dense<0.000000e+00> : vector<16x4xf32>
    %236 = tpu.matmul %233, %226, %cst_76 {dimension_numbers = #tpu.dot_dimension_numbers<[1], [0], [0], [1], [0, 0, 1, 1], [], []>} : vector<16x16xf32>, vector<16x4xf32>, vector<16x4xf32> -> vector<16x4xf32>
    %237 = vector.broadcast %235 : vector<16x1xf32> to vector<16x4xf32>
    %238 = arith.divf %236, %237 : vector<16x4xf32>
    %239 = vector.extract_strided_slice %1 {offsets = [32, 0], sizes = [4, 40], strides = [1, 1]} : vector<40x40xf32> to vector<4x40xf32>
    %cst_77 = arith.constant dense<0.000000e+00> : vector<16x40xf32>
    %240 = tpu.matmul %238, %239, %cst_77 {dimension_numbers = #tpu.dot_dimension_numbers<[1], [0], [0], [1], [0, 0, 1, 1], [], []>} : vector<16x4xf32>, vector<4x40xf32>, vector<16x40xf32> -> vector<16x40xf32>
    %241 = arith.addf %223, %240 : vector<16x40xf32>
    %242 = vector.extract_strided_slice %40 {offsets = [0, 36], sizes = [16, 4], strides = [1, 1]} : vector<16x40xf32> to vector<16x4xf32>
    %243 = vector.extract_strided_slice %41 {offsets = [0, 36], sizes = [16, 4], strides = [1, 1]} : vector<16x40xf32> to vector<16x4xf32>
    %244 = vector.extract_strided_slice %42 {offsets = [0, 36], sizes = [16, 4], strides = [1, 1]} : vector<16x40xf32> to vector<16x4xf32>
    %cst_78 = arith.constant dense<0.000000e+00> : vector<16x16xf32>
    %245 = tpu.matmul %242, %243, %cst_78 {dimension_numbers = #tpu.dot_dimension_numbers<[1], [1], [0], [0], [0, 0, 1, 0], [], []>} : vector<16x4xf32>, vector<16x4xf32>, vector<16x16xf32> -> vector<16x16xf32>
    %246 = arith.addf %245, %80 : vector<16x16xf32>
    %cst_79 = arith.constant dense<0xFF800000> : vector<16xf32>
    %247 = vector.multi_reduction <maximumf>, %246, %cst_79 [1] : vector<16x16xf32> to vector<16xf32>
    %248 = vector.shape_cast %247 : vector<16xf32> to vector<16x1xf32>
    %249 = vector.broadcast %248 : vector<16x1xf32> to vector<16x16xf32>
    %250 = arith.subf %246, %249 : vector<16x16xf32>
    %251 = math.exp %250 : vector<16x16xf32>
    %cst_80 = arith.constant dense<0.000000e+00> : vector<16xf32>
    %252 = vector.multi_reduction <add>, %251, %cst_80 [1] : vector<16x16xf32> to vector<16xf32>
    %253 = vector.shape_cast %252 : vector<16xf32> to vector<16x1xf32>
    %cst_81 = arith.constant dense<0.000000e+00> : vector<16x4xf32>
    %254 = tpu.matmul %251, %244, %cst_81 {dimension_numbers = #tpu.dot_dimension_numbers<[1], [0], [0], [1], [0, 0, 1, 1], [], []>} : vector<16x16xf32>, vector<16x4xf32>, vector<16x4xf32> -> vector<16x4xf32>
    %255 = vector.broadcast %253 : vector<16x1xf32> to vector<16x4xf32>
    %256 = arith.divf %254, %255 : vector<16x4xf32>
    %257 = vector.extract_strided_slice %1 {offsets = [36, 0], sizes = [4, 40], strides = [1, 1]} : vector<40x40xf32> to vector<4x40xf32>
    %cst_82 = arith.constant dense<0.000000e+00> : vector<16x40xf32>
    %258 = tpu.matmul %256, %257, %cst_82 {dimension_numbers = #tpu.dot_dimension_numbers<[1], [0], [0], [1], [0, 0, 1, 1], [], []>} : vector<16x4xf32>, vector<4x40xf32>, vector<16x40xf32> -> vector<16x40xf32>
    %259 = arith.addf %241, %258 : vector<16x40xf32>
    %260 = vector.broadcast %5 : vector<1x40xf32> to vector<16x40xf32>
    %261 = arith.addf %259, %260 : vector<16x40xf32>
    %262 = arith.addf %261, %12 : vector<16x40xf32>
    %cst_83 = arith.constant dense<0.000000e+00> : vector<16xf32>
    %263 = vector.multi_reduction <add>, %262, %cst_83 [1] : vector<16x40xf32> to vector<16xf32>
    %264 = vector.shape_cast %263 : vector<16xf32> to vector<16x1xf32>
    %cst_84 = arith.constant 4.000000e+01 : f32
    %265 = vector.broadcast %cst_84 : f32 to vector<16x1xf32>
    %266 = arith.divf %264, %265 : vector<16x1xf32>
    %267 = vector.broadcast %266 : vector<16x1xf32> to vector<16x40xf32>
    %268 = arith.subf %262, %267 : vector<16x40xf32>
    %269 = arith.mulf %268, %268 : vector<16x40xf32>
    %cst_85 = arith.constant dense<0.000000e+00> : vector<16xf32>
    %270 = vector.multi_reduction <add>, %269, %cst_85 [1] : vector<16x40xf32> to vector<16xf32>
    %271 = vector.shape_cast %270 : vector<16xf32> to vector<16x1xf32>
    %cst_86 = arith.constant 4.000000e+01 : f32
    %272 = vector.broadcast %cst_86 : f32 to vector<16x1xf32>
    %273 = arith.divf %271, %272 : vector<16x1xf32>
    %274 = vector.broadcast %266 : vector<16x1xf32> to vector<16x40xf32>
    %275 = arith.subf %262, %274 : vector<16x40xf32>
    %cst_87 = arith.constant 9.99999974E-6 : f32
    %276 = vector.broadcast %cst_87 : f32 to vector<16x1xf32>
    %277 = arith.addf %273, %276 : vector<16x1xf32>
    %278 = math.rsqrt %277 : vector<16x1xf32>
    %279 = vector.broadcast %278 : vector<16x1xf32> to vector<16x40xf32>
    %280 = arith.mulf %275, %279 : vector<16x40xf32>
    %281 = vector.broadcast %10 : vector<1x40xf32> to vector<16x40xf32>
    %282 = arith.mulf %280, %281 : vector<16x40xf32>
    %283 = vector.broadcast %11 : vector<1x40xf32> to vector<16x40xf32>
    %284 = arith.addf %282, %283 : vector<16x40xf32>
    %cst_88 = arith.constant dense<0.000000e+00> : vector<16x160xf32>
    %285 = tpu.matmul %284, %2, %cst_88 {dimension_numbers = #tpu.dot_dimension_numbers<[1], [0], [0], [1], [0, 0, 1, 1], [], []>} : vector<16x40xf32>, vector<40x160xf32>, vector<16x160xf32> -> vector<16x160xf32>
    %286 = vector.broadcast %6 : vector<1x160xf32> to vector<16x160xf32>
    %287 = arith.addf %285, %286 : vector<16x160xf32>
    %cst_89 = arith.constant 0.000000e+00 : f32
    %288 = vector.broadcast %cst_89 : f32 to vector<16x160xf32>
    %289 = arith.maximumf %287, %288 : vector<16x160xf32>
    %cst_90 = arith.constant dense<0.000000e+00> : vector<16x40xf32>
    %290 = tpu.matmul %289, %3, %cst_90 {dimension_numbers = #tpu.dot_dimension_numbers<[1], [0], [0], [1], [0, 0, 1, 1], [], []>} : vector<16x160xf32>, vector<160x40xf32>, vector<16x40xf32> -> vector<16x40xf32>
    %291 = vector.broadcast %7 : vector<1x40xf32> to vector<16x40xf32>
    %292 = arith.addf %290, %291 : vector<16x40xf32>
    %293 = arith.addf %292, %262 : vector<16x40xf32>
    %c0_91 = arith.constant 0 : index
    %c0_92 = arith.constant 0 : index
    %294 = vector.load %arg4[%c0_91, %c0_92] : memref<16x40xf32, #tpu.memory_space<vmem>>, vector<16x40xf32>
    tpu.vector_store %arg4[%c0_91, %c0_92], %293 {strides = array<i32>} : memref<16x40xf32, #tpu.memory_space<vmem>>, vector<16x40xf32>,
    return
  }
}

</mosaic_0001>

<llo_original>
// kernel: transformer_encoder_layer.1
$region0: #{transformer_encoder_layer.1}
  #allocation0 [shape = 'u32[]', space=smem, size = 0x4, offset = 0x4, fixed_abs, tag = 'smem constant byte address 0x4 - core index']
  #allocation1 [shape = 'u32[144,128]{1,0:T(1,128)}', space=vmem, size = 0x12000, scoped, tag = 'internal scratch']
  %s0 = inlined_call_operand.vmem [shape: f32[16,40], index: 0, kind: input, shape index: {}, may-alias: {0,4}]
  %s1 = inlined_call_operand.vmem [shape: f32[40,320], index: 1, kind: input, shape index: {}]
  %s2 = inlined_call_operand.vmem [shape: f32[160,40], index: 2, kind: input, shape index: {}]
  %s3 = inlined_call_operand.vmem [shape: f32[8,160], index: 3, kind: input, shape index: {}]
  %s4 = inlined_call_operand.vmem [shape: f32[16,40], index: 4, kind: output, shape index: {}, may-alias: {0,4}]
  %s5 = sld [smem:[#allocation0]]
  $region26: #{transformer_encoder_layer.1} parent=0
    _
  %s7 = ssub.s32 1, %s5
  %s8 = scalar_select 0, %s7, %s5
  // Predicated region
  $region2: #{transformer_encoder_layer.1} parent=0 // pred_check
    _
  $region3: #{transformer_encoder_layer.1} parent=0 // pred_check_branch
    %10 = sbr.rel (0) target = $region5
  $region4: #{transformer_encoder_layer.1} parent=0 // pred_region
    _
  $region5: #{transformer_encoder_layer.1} parent=0 // pred_fallthru
    _
  // Predicated region
  $region6: #{transformer_encoder_layer.1} parent=0 // pred_check
    _
  $region7: #{transformer_encoder_layer.1} parent=0 // pred_check_branch
    %12 = sbr.rel (0) target = $region9
  $region8: #{transformer_encoder_layer.1} parent=0 // pred_region
    _
  $region9: #{transformer_encoder_layer.1} parent=0 // pred_fallthru
    _
  // Predicated region
  $region10: #{transformer_encoder_layer.1} parent=0 // pred_check
    _
  $region11: #{transformer_encoder_layer.1} parent=0 // pred_check_branch
    %14 = sbr.rel (0) target = $region13
  $region12: #{transformer_encoder_layer.1} parent=0 // pred_region
    _
  $region13: #{transformer_encoder_layer.1} parent=0 // pred_fallthru
    _
  // Predicated region
  $region14: #{transformer_encoder_layer.1} parent=0 // pred_check
    _
  $region15: #{transformer_encoder_layer.1} parent=0 // pred_check_branch
    %16 = sbr.rel (0) target = $region17
  $region16: #{transformer_encoder_layer.1} parent=0 // pred_region
    _
  $region17: #{transformer_encoder_layer.1} parent=0 // pred_fallthru
    _
  %v17 = vld [vmem:[%s1] sm:$0xff]
  %v18 = vld [vmem:[%s1 + $0x18] sm:$0xff]
  %v19 = vld [vmem:[%s1 + $0x30] sm:$0xff]
  %v20 = vld [vmem:[%s1 + $0x48] sm:$0xff]
  %v21 = vld [vmem:[%s1 + $0x60] sm:$0xff]
  %v22 = vld [vmem:[%s1 + $0x8] sm:$0xff]
  %v23 = vld [vmem:[%s1 + $0x20] sm:$0xff]
  %v24 = vld [vmem:[%s1 + $0x38] sm:$0xff]
  %v25 = vld [vmem:[%s1 + $0x50] sm:$0xff]
  %v26 = vld [vmem:[%s1 + $0x68] sm:$0xff]
  %v27 = vld [vmem:[%s1 + $0x10] sm:$0xff]
  %v28 = vld [vmem:[%s1 + $0x28] sm:$0xff]
  %v29 = vld [vmem:[%s1 + $0x40] sm:$0xff]
  %v30 = vld [vmem:[%s1 + $0x58] sm:$0xff]
  %v31 = vld [vmem:[%s1 + $0x70] sm:$0xff]
  %v32 = vld [vmem:[%s2] sm:$0xff]
  %v33 = vld [vmem:[%s2 + $0x8] sm:$0xff]
  %v34 = vld [vmem:[%s2 + $0x10] sm:$0xff]
  %v35 = vld [vmem:[%s2 + $0x18] sm:$0xff]
  %v36 = vld [vmem:[%s2 + $0x20] sm:$0xff]
  %v37 = vld [vmem:[%s2 + $0x28] sm:$0xff]
  %v38 = vld [vmem:[%s2 + $0x30] sm:$0xff]
  %v39 = vld [vmem:[%s2 + $0x38] sm:$0xff]
  %v40 = vld [vmem:[%s2 + $0x40] sm:$0xff]
  %v41 = vld [vmem:[%s2 + $0x48] sm:$0xff]
  %v42 = vld [vmem:[%s2 + $0x50] sm:$0xff]
  %v43 = vld [vmem:[%s2 + $0x58] sm:$0xff]
  %v44 = vld [vmem:[%s2 + $0x60] sm:$0xff]
  %v45 = vld [vmem:[%s2 + $0x68] sm:$0xff]
  %v46 = vld [vmem:[%s2 + $0x70] sm:$0xff]
  %v47 = vld [vmem:[%s2 + $0x78] sm:$0xff]
  %v48 = vld [vmem:[%s2 + $0x80] sm:$0xff]
  %v49 = vld [vmem:[%s2 + $0x88] sm:$0xff]
  %v50 = vld [vmem:[%s2 + $0x90] sm:$0xff]
  %v51 = vld [vmem:[%s2 + $0x98] sm:$0xff]
  %v52 = vld [vmem:[%s3] ss:$0 sm:$0xff]
  %v53 = vld [vmem:[%s3 + $0x1] ss:$0 sm:$0xff]
  %s54 = scalar_lea.vmem %s3, 2
  %v55 = vld [vmem:[%s54] ss:$8 sm:$0x3]
  %v56 = vld [vmem:[%s3 + $0x3] ss:$0 sm:$0xff]
  %v57 = vld [vmem:[%s3 + $0x4] ss:$0 sm:$0xff]
  %v58 = vld [vmem:[%s3 + $0x5] ss:$0 sm:$0xff]
  %v59 = vld [vmem:[%s3 + $0x6] ss:$0 sm:$0xff]
  %v60 = vld [vmem:[%s3 + $0x7] ss:$0 sm:$0xff]
  %v61 = vld [vmem:[%s0] sm:$0xff]
  %v62 = vld [vmem:[%s0 + $0x8] sm:$0xff]
  %vm63 = vcmask 326656
  %v64 = vsel %vm63, %v61, 0.0
  %65 = vadd.xlane.f32.xlu0 %v64
  %v66 = vpop.xlane.xlu0 %65
  %v67 = vsel %vm63, %v62, 0.0
  %68 = vadd.xlane.f32.xlu0 %v67
  %v69 = vpop.xlane.xlu0 %68
  %v70 = vrcp.pop 40.0
  %v71 = vmul.f32 %v66, %v70
  %v72 = vmul.f32 %v69, %v70
  %v73 = vsub.f32 %v61, %v71
  %v74 = vsub.f32 %v62, %v72
  %v75 = vmul.f32 %v73, %v73
  %v76 = vmul.f32 %v74, %v74
  %v77 = vsel %vm63, %v75, 0.0
  %78 = vadd.xlane.f32.xlu0 %v77
  %v79 = vpop.xlane.xlu0 %78
  %v80 = vsel %vm63, %v76, 0.0
  %81 = vadd.xlane.f32.xlu0 %v80
  %v82 = vpop.xlane.xlu0 %81
  %v83 = vmul.f32 %v79, %v70
  %v84 = vmul.f32 %v82, %v70
  %v85 = vadd.f32 %v83, 1e-05
  %v86 = vadd.f32 %v84, 1e-05
  %v87 = vrsqrt.pop %v85
  %v88 = vrsqrt.pop %v86
  %v89 = vmul.f32 %v73, %v87
  %v90 = vmul.f32 %v74, %v88
  %v91 = vmul.f32 %v89, %v57
  %v92 = vmul.f32 %v90, %v57
  %v93 = vadd.f32 %v91, %v58
  %v94 = vadd.f32 %v92, %v58
  %v96 = vsel %vm63, %v93, 0
  %v99 = vsel %vm63, %v94, 0
  %101 = vmatprep.subr.mxu0 0.0
  %102 = vmatpush1.msra.mxu0 %v17
  %103 = vmatprep.subr.mxu0 0.0
  %104 = vmatpush1.msra.mxu0 %v18
  %105 = vmatprep.subr.mxu0 0.0
  %106 = vmatpush1.msra.mxu0 %v19
  %107 = vmatprep.subr.mxu0 0.0
  %108 = vmatpush1.msra.mxu0 %v20
  %109 = vmatprep.subr.mxu0 0.0
  %110 = vmatpush1.msra.mxu0 %v21
  %111 = vmatprep.subr.mxu0 0.0
  %112 = vmatpush1.msra.mxu0 0.0
  %113 = vmatprep.subr.mxu0 0.0
  %114 = vmatpush1.msra.mxu0 0.0
  %115 = vmatprep.subr.mxu0 0.0
  %116 = vmatpush1.msra.mxu0 0.0
  %117 = vmatprep.subr.mxu0 0.0
  %118 = vmatpush1.msra.mxu0 0.0
  %119 = vmatprep.subr.mxu0 0.0
  %120 = vmatpush1.msra.mxu0 0.0
  %121 = vmatprep.subr.mxu0 0.0
  %122 = vmatpush1.msra.mxu0 0.0
  %123 = vmatprep.subr.mxu0 0.0
  %124 = vmatpush1.msra.mxu0 0.0
  %125 = vmatprep.subr.mxu0 0.0
  %126 = vmatpush1.msra.mxu0 0.0
  %127 = vmatprep.subr.mxu0 0.0
  %128 = vmatpush1.msra.mxu0 0.0
  %129 = vmatprep.subr.mxu0 0.0
  %130 = vmatpush1.msra.mxu0 0.0
  %131 = vmatprep.subr.mxu0 0.0
  %132 = vmatpush1.msra.mxu0 0.0
  %133 = vmatprep.subr.mxu0 0.0
  %134 = vmatpush1.msra.mxu0 0.0
  %135 = vmatprep.subr.mxu0 0.0
  %136 = vmatpush1.msra.mxu0 0.0
  %137 = vmatprep.subr.mxu0 0.0
  %138 = vmatpush1.msra.mxu0 0.0
  %139 = vmatprep.subr.mxu0 0.0
  %140 = vmatpush1.msra.mxu0 0.0
  %141 = vmatprep.subr.mxu0 0.0
  %142 = vmatpush1.msra.mxu0 0.0
  %143 = vmatprep.subr.mxu0 0.0
  %144 = vmatpush1.msra.mxu0 0.0
  %145 = vmatprep.subr.mxu0 0.0
  %146 = vmatpush1.msra.mxu0 0.0
  %147 = vmatprep.subr.mxu0 0.0
  %148 = vmatpush1.msra.mxu0 0.0
  %149 = vmatprep.subr.mxu0 0.0
  %150 = vmatpush1.msra.mxu0 0.0
  %151 = vmatprep.subr.mxu0 0.0
  %152 = vmatpush1.msra.mxu0 0.0
  %153 = vmatprep.subr.mxu0 0.0
  %154 = vmatpush1.msra.mxu0 0.0
  %155 = vmatprep.subr.mxu0 0.0
  %156 = vmatpush1.msra.mxu0 0.0
  %157 = vmatprep.subr.mxu0 0.0
  %158 = vmatpush1.msra.mxu0 0.0
  %159 = vmatprep.subr.mxu0 0.0
  %160 = vmatpush1.msra.mxu0 0.0
  %161 = vmatprep.subr.mxu0 0.0
  %162 = vmatpush1.msra.mxu0 0.0
  %163 = vmatprep.subr.mxu0 0.0
  %164 = vmatpush1.msra.mxu0 0.0
  %165 = vmatprep.mubr.f32.mxu0 0.0
  %166 = vmatmul.mubr.f32.gmra.mrb[0].mxu0 %v96
  %v167 = vpop.f32.mrb[0].mxu0
  %v168 = vadd.f32 %v52, %v167
  %v169 = vpop.f32.mrb[0].mxu0
  %170 = vmatprep.mubr.f32.mxu0 0.0
  %171 = vmatmul.mubr.f32.gmra.mrb[0].mxu0 %v99
  %v172 = vpop.f32.mrb[0].mxu0
  %v173 = vadd.f32 %v52, %v172
  %v174 = vpop.f32.mrb[0].mxu0
  %175 = vdwg.mxu0
  %v176 = vmul.f32 %v168, 0.5
  %v177 = vmul.f32 %v173, 0.5
  %v178 = vlaneseq
  %v179 = vshrl.u32 %v178, 7
  %v180 = vadd.s32 %v179, 8
  %v181 = vlaneseq
  %v182 = vand.u32 %v181, 127
  %vm183 = vcmp.lt.s32.totalorder %v179, 0
  %v184 = vsub.s32 0, %v179
  %v185 = vsel %vm183, %v184, %v179
  %v186 = vshrl.u32 %v185, 1
  %v187 = vand.u32 %v185, 1
  %v188 = vsub.s32 0, %v187
  %v189 = vsel %vm183, %v188, %v187
  %vm190 = vcmp.lt.s32.totalorder %v180, 0
  %v191 = vsub.s32 0, %v180
  %v192 = vsel %vm190, %v191, %v180
  %v193 = vshrl.u32 %v192, 1
  %v194 = vand.u32 %v192, 1
  %v195 = vsub.s32 0, %v194
  %v196 = vsel %vm190, %v195, %v194
  %vm197 = vcmp.ne.s32.totalorder %v189, 0
  %vm198 = vcmp.ne.s32.totalorder %v196, 0
  %vm199 = vcmp.lt.s32.totalorder %v189, 0
  %vm200 = vcmp.lt.s32.totalorder %v196, 0
  %vm201 = vmand %vm199, %vm197
  %vm202 = vmand %vm200, %vm198
  %v203 = vadd.s32 %v189, 2
  %v204 = vadd.s32 %v196, 2
  %v205 = vsel %vm201, %v203, %v189
  %v206 = vsel %vm202, %v204, %v196
  %vm207 = vcmp.lt.s32.totalorder %v182, 0
  %v208 = vsub.s32 0, %v182
  %v209 = vsel %vm207, %v208, %v182
  %v210 = vshrl.u32 %v209, 1
  %v211 = vand.u32 %v209, 1
  %v212 = vsub.s32 0, %v211
  %v213 = vsel %vm207, %v212, %v211
  %vm214 = vcmp.ne.s32.totalorder %v213, 0
  %vm215 = vcmp.lt.s32.totalorder %v213, 0
  %vm216 = vmand %vm215, %vm214
  %v217 = vadd.s32 %v213, 2
  %v218 = vsel %vm216, %v217, %v213
  %vm219 = vcmp.eq.s32.totalorder %v205, %v218
  %vm220 = vcmp.eq.s32.totalorder %v206, %v218
  %v221 = vsel %vm219, 0.0, -1e+30
  %v222 = vsel %vm220, 0.0, -1e+30
  %225 = vrot.lane.b32.xlu0 %v168, 88
  %v226 = vpop.permute.xlu0 %225
  %227 = vrot.lane.b32.xlu0 %v173, 88
  %v228 = vpop.permute.xlu0 %227
  %vm229 = vcmask 31744
  %v231 = vsel %vm229, %v176, 0
  %v234 = vsel %vm229, %v177, 0
  %v236 = vsel %vm229, %v226, 0
  %v238 = vsel %vm229, %v228, 0
  %240 = vmatprep.subr.mxu0 0.0
  %241 = vmatpush1.xpose.msra.mxu0 %v236
  %242 = vmatprep.subr.mxu0 0.0
  %243 = vmatpush1.xpose.msra.mxu0 %v238
  %244 = vmatprep.subr.mxu0 0.0
  %245 = vmatpush1.xpose.msra.mxu0 0.0
  %246 = vmatprep.subr.mxu0 0.0
  %247 = vmatpush1.xpose.msra.mxu0 0.0
  %248 = vmatprep.subr.mxu0 0.0
  %249 = vmatpush1.xpose.msra.mxu0 0.0
  %250 = vmatprep.subr.mxu0 0.0
  %251 = vmatpush1.xpose.msra.mxu0 0.0
  %252 = vmatprep.subr.mxu0 0.0
  %253 = vmatpush1.xpose.msra.mxu0 0.0
  %254 = vmatprep.subr.mxu0 0.0
  %255 = vmatpush1.xpose.msra.mxu0 0.0
  %256 = vmatprep.subr.mxu0 0.0
  %257 = vmatpush1.xpose.msra.mxu0 0.0
  %258 = vmatprep.subr.mxu0 0.0
  %259 = vmatpush1.xpose.msra.mxu0 0.0
  %260 = vmatprep.subr.mxu0 0.0
  %261 = vmatpush1.xpose.msra.mxu0 0.0
  %262 = vmatprep.subr.mxu0 0.0
  %263 = vmatpush1.xpose.msra.mxu0 0.0
  %264 = vmatprep.subr.mxu0 0.0
  %265 = vmatpush1.xpose.msra.mxu0 0.0
  %266 = vmatprep.subr.mxu0 0.0
  %267 = vmatpush1.xpose.msra.mxu0 0.0
  %268 = vmatprep.subr.mxu0 0.0
  %269 = vmatpush1.xpose.msra.mxu0 0.0
  %270 = vmatprep.subr.mxu0 0.0
  %271 = vmatpush1.xpose.msra.mxu0 0.0
  %272 = vmatprep.subr.mxu0 0.0
  %273 = vmatpush1.xpose.msra.mxu0 0.0
  %274 = vmatprep.subr.mxu0 0.0
  %275 = vmatpush1.xpose.msra.mxu0 0.0
  %276 = vmatprep.subr.mxu0 0.0
  %277 = vmatpush1.xpose.msra.mxu0 0.0
  %278 = vmatprep.subr.mxu0 0.0
  %279 = vmatpush1.xpose.msra.mxu0 0.0
  %280 = vmatprep.subr.mxu0 0.0
  %281 = vmatpush1.xpose.msra.mxu0 0.0
  %282 = vmatprep.subr.mxu0 0.0
  %283 = vmatpush1.xpose.msra.mxu0 0.0
  %284 = vmatprep.subr.mxu0 0.0
  %285 = vmatpush1.xpose.msra.mxu0 0.0
  %286 = vmatprep.subr.mxu0 0.0
  %287 = vmatpush1.xpose.msra.mxu0 0.0
  %288 = vmatprep.subr.mxu0 0.0
  %289 = vmatpush1.xpose.msra.mxu0 0.0
  %290 = vmatprep.subr.mxu0 0.0
  %291 = vmatpush1.xpose.msra.mxu0 0.0
  %292 = vmatprep.subr.mxu0 0.0
  %293 = vmatpush1.xpose.msra.mxu0 0.0
  %294 = vmatprep.subr.mxu0 0.0
  %295 = vmatpush1.xpose.msra.mxu0 0.0
  %296 = vmatprep.subr.mxu0 0.0
  %297 = vmatpush1.xpose.msra.mxu0 0.0
  %298 = vmatprep.subr.mxu0 0.0
  %299 = vmatpush1.xpose.msra.mxu0 0.0
  %300 = vmatprep.subr.mxu0 0.0
  %301 = vmatpush1.xpose.msra.mxu0 0.0
  %302 = vmatprep.subr.mxu0 0.0
  %303 = vmatpush1.xpose.msra.mxu0 0.0
  %304 = vmatprep.mubr.f32.mxu0 0.0
  %305 = vmatmul.mubr.f32.gmra.mrb[0].mxu0 %v231
  %v306 = vpop.f32.mrb[0].mxu0
  %v307 = vadd.f32 %v221, %v306
  %v308 = vpop.f32.mrb[0].mxu0
  %309 = vmatprep.mubr.f32.mxu0 0.0
  %310 = vmatmul.mubr.f32.gmra.mrb[0].mxu0 %v234
  %v311 = vpop.f32.mrb[0].mxu0
  %v312 = vadd.f32 %v222, %v311
  %v313 = vpop.f32.mrb[0].mxu0
  %314 = vdwg.mxu0
  %vm315 = vcmask 130048
  %v316 = vsel %vm315, %v307, -inf
  %317 = vmax.xlane.f32.xlu0 %v316
  %v318 = vpop.xlane.xlu0 %317
  %v319 = vsel %vm315, %v312, -inf
  %320 = vmax.xlane.f32.xlu0 %v319
  %v321 = vpop.xlane.xlu0 %320
  %v322 = vsub.f32 %v307, %v318
  %v323 = vsub.f32 %v312, %v321
  %v324 = vmul.f32 %v322, 1.442695
  %v325 = vpow.pop %v324
  %v326 = vmul.f32 %v323, 1.442695
  %v327 = vpow.pop %v326
  %v328 = vsel %vm315, %v325, 0.0
  %329 = vadd.xlane.f32.xlu0 %v328
  %v330 = vpop.xlane.xlu0 %329
  %v331 = vsel %vm315, %v327, 0.0
  %332 = vadd.xlane.f32.xlu0 %v331
  %v333 = vpop.xlane.xlu0 %332
  %334 = vrot.lane.b32.xlu0 %v168, 48
  %v335 = vpop.permute.xlu0 %334
  %336 = vrot.lane.b32.xlu0 %v173, 48
  %v337 = vpop.permute.xlu0 %336
  %v341 = vsel %vm315, %v325, 0
  %v344 = vsel %vm315, %v327, 0
  %346 = vmatprep.subr.mxu0 0.0
  %347 = vmatpush1.msra.mxu0 %v335
  %348 = vmatprep.subr.mxu0 0.0
  %349 = vmatpush1.msra.mxu0 %v337
  %350 = vmatprep.subr.mxu0 0.0
  %351 = vmatpush1.msra.mxu0 0.0
  %352 = vmatprep.subr.mxu0 0.0
  %353 = vmatpush1.msra.mxu0 0.0
  %354 = vmatprep.subr.mxu0 0.0
  %355 = vmatpush1.msra.mxu0 0.0
  %356 = vmatprep.subr.mxu0 0.0
  %357 = vmatpush1.msra.mxu0 0.0
  %358 = vmatprep.subr.mxu0 0.0
  %359 = vmatpush1.msra.mxu0 0.0
  %360 = vmatprep.subr.mxu0 0.0
  %361 = vmatpush1.msra.mxu0 0.0
  %362 = vmatprep.subr.mxu0 0.0
  %363 = vmatpush1.msra.mxu0 0.0
  %364 = vmatprep.subr.mxu0 0.0
  %365 = vmatpush1.msra.mxu0 0.0
  %366 = vmatprep.subr.mxu0 0.0
  %367 = vmatpush1.msra.mxu0 0.0
  %368 = vmatprep.subr.mxu0 0.0
  %369 = vmatpush1.msra.mxu0 0.0
  %370 = vmatprep.subr.mxu0 0.0
  %371 = vmatpush1.msra.mxu0 0.0
  %372 = vmatprep.subr.mxu0 0.0
  %373 = vmatpush1.msra.mxu0 0.0
  %374 = vmatprep.subr.mxu0 0.0
  %375 = vmatpush1.msra.mxu0 0.0
  %376 = vmatprep.subr.mxu0 0.0
  %377 = vmatpush1.msra.mxu0 0.0
  %378 = vmatprep.subr.mxu0 0.0
  %379 = vmatpush1.msra.mxu0 0.0
  %380 = vmatprep.subr.mxu0 0.0
  %381 = vmatpush1.msra.mxu0 0.0
  %382 = vmatprep.subr.mxu0 0.0
  %383 = vmatpush1.msra.mxu0 0.0
  %384 = vmatprep.subr.mxu0 0.0
  %385 = vmatpush1.msra.mxu0 0.0
  %386 = vmatprep.subr.mxu0 0.0
  %387 = vmatpush1.msra.mxu0 0.0
  %388 = vmatprep.subr.mxu0 0.0
  %389 = vmatpush1.msra.mxu0 0.0
  %390 = vmatprep.subr.mxu0 0.0
  %391 = vmatpush1.msra.mxu0 0.0
  %392 = vmatprep.subr.mxu0 0.0
  %393 = vmatpush1.msra.mxu0 0.0
  %394 = vmatprep.subr.mxu0 0.0
  %395 = vmatpush1.msra.mxu0 0.0
  %396 = vmatprep.subr.mxu0 0.0
  %397 = vmatpush1.msra.mxu0 0.0
  %398 = vmatprep.subr.mxu0 0.0
  %399 = vmatpush1.msra.mxu0 0.0
  %400 = vmatprep.subr.mxu0 0.0
  %401 = vmatpush1.msra.mxu0 0.0
  %402 = vmatprep.subr.mxu0 0.0
  %403 = vmatpush1.msra.mxu0 0.0
  %404 = vmatprep.subr.mxu0 0.0
  %405 = vmatpush1.msra.mxu0 0.0
  %406 = vmatprep.subr.mxu0 0.0
  %407 = vmatpush1.msra.mxu0 0.0
  %408 = vmatprep.subr.mxu0 0.0
  %409 = vmatpush1.msra.mxu0 0.0
  %410 = vmatprep.mubr.f32.mxu0 0.0
  %411 = vmatmul.mubr.f32.gmra.mrb[0].mxu0 %v341
  %v412 = vpop.f32.mrb[0].mxu0
  %v413 = vadd.f32 0.0, %v412
  %v414 = vpop.f32.mrb[0].mxu0
  %415 = vmatprep.mubr.f32.mxu0 0.0
  %416 = vmatmul.mubr.f32.gmra.mrb[0].mxu0 %v344
  %v417 = vpop.f32.mrb[0].mxu0
  %v418 = vadd.f32 0.0, %v417
  %v419 = vpop.f32.mrb[0].mxu0
  %420 = vdwg.mxu0
  %v421 = vrcp.pop %v330
  %v422 = vmul.f32 %v413, %v421
  %v423 = vrcp.pop %v333
  %v424 = vmul.f32 %v418, %v423
  %425 = vrot.lane.b32.xlu0 %v176, 124
  %v426 = vpop.permute.xlu0 %425
  %427 = vrot.lane.b32.xlu0 %v177, 124
  %v428 = vpop.permute.xlu0 %427
  %429 = vrot.lane.b32.xlu0 %v168, 84
  %v430 = vpop.permute.xlu0 %429
  %431 = vrot.lane.b32.xlu0 %v173, 84
  %v432 = vpop.permute.xlu0 %431
  %v433 = vsel %vm229, %v426, 0
  %v435 = vsel %vm229, %v428, 0
  %v437 = vsel %vm229, %v430, 0
  %v439 = vsel %vm229, %v432, 0
  %441 = vmatprep.subr.mxu0 0.0
  %442 = vmatpush1.xpose.msra.mxu0 %v437
  %443 = vmatprep.subr.mxu0 0.0
  %444 = vmatpush1.xpose.msra.mxu0 %v439
  %445 = vmatprep.subr.mxu0 0.0
  %446 = vmatpush1.xpose.msra.mxu0 0.0
  %447 = vmatprep.subr.mxu0 0.0
  %448 = vmatpush1.xpose.msra.mxu0 0.0
  %449 = vmatprep.subr.mxu0 0.0
  %450 = vmatpush1.xpose.msra.mxu0 0.0
  %451 = vmatprep.subr.mxu0 0.0
  %452 = vmatpush1.xpose.msra.mxu0 0.0
  %453 = vmatprep.subr.mxu0 0.0
  %454 = vmatpush1.xpose.msra.mxu0 0.0
  %455 = vmatprep.subr.mxu0 0.0
  %456 = vmatpush1.xpose.msra.mxu0 0.0
  %457 = vmatprep.subr.mxu0 0.0
  %458 = vmatpush1.xpose.msra.mxu0 0.0
  %459 = vmatprep.subr.mxu0 0.0
  %460 = vmatpush1.xpose.msra.mxu0 0.0
  %461 = vmatprep.subr.mxu0 0.0
  %462 = vmatpush1.xpose.msra.mxu0 0.0
  %463 = vmatprep.subr.mxu0 0.0
  %464 = vmatpush1.xpose.msra.mxu0 0.0
  %465 = vmatprep.subr.mxu0 0.0
  %466 = vmatpush1.xpose.msra.mxu0 0.0
  %467 = vmatprep.subr.mxu0 0.0
  %468 = vmatpush1.xpose.msra.mxu0 0.0
  %469 = vmatprep.subr.mxu0 0.0
  %470 = vmatpush1.xpose.msra.mxu0 0.0
  %471 = vmatprep.subr.mxu0 0.0
  %472 = vmatpush1.xpose.msra.mxu0 0.0
  %473 = vmatprep.subr.mxu0 0.0
  %474 = vmatpush1.xpose.msra.mxu0 0.0
  %475 = vmatprep.subr.mxu0 0.0
  %476 = vmatpush1.xpose.msra.mxu0 0.0
  %477 = vmatprep.subr.mxu0 0.0
  %478 = vmatpush1.xpose.msra.mxu0 0.0
  %479 = vmatprep.subr.mxu0 0.0
  %480 = vmatpush1.xpose.msra.mxu0 0.0
  %481 = vmatprep.subr.mxu0 0.0
  %482 = vmatpush1.xpose.msra.mxu0 0.0
  %483 = vmatprep.subr.mxu0 0.0
  %484 = vmatpush1.xpose.msra.mxu0 0.0
  %485 = vmatprep.subr.mxu0 0.0
  %486 = vmatpush1.xpose.msra.mxu0 0.0
  %487 = vmatprep.subr.mxu0 0.0
  %488 = vmatpush1.xpose.msra.mxu0 0.0
  %489 = vmatprep.subr.mxu0 0.0
  %490 = vmatpush1.xpose.msra.mxu0 0.0
  %491 = vmatprep.subr.mxu0 0.0
  %492 = vmatpush1.xpose.msra.mxu0 0.0
  %493 = vmatprep.subr.mxu0 0.0
  %494 = vmatpush1.xpose.msra.mxu0 0.0
  %495 = vmatprep.subr.mxu0 0.0
  %496 = vmatpush1.xpose.msra.mxu0 0.0
  %497 = vmatprep.subr.mxu0 0.0
  %498 = vmatpush1.xpose.msra.mxu0 0.0
  %499 = vmatprep.subr.mxu0 0.0
  %500 = vmatpush1.xpose.msra.mxu0 0.0
  %501 = vmatprep.subr.mxu0 0.0
  %502 = vmatpush1.xpose.msra.mxu0 0.0
  %503 = vmatprep.subr.mxu0 0.0
  %504 = vmatpush1.xpose.msra.mxu0 0.0
  %505 = vmatprep.mubr.f32.mxu0 0.0
  %506 = vmatmul.mubr.f32.gmra.mrb[0].mxu0 %v433
  %v507 = vpop.f32.mrb[0].mxu0
  %v508 = vadd.f32 %v221, %v507
  %v509 = vpop.f32.mrb[0].mxu0
  %510 = vmatprep.mubr.f32.mxu0 0.0
  %511 = vmatmul.mubr.f32.gmra.mrb[0].mxu0 %v435
  %v512 = vpop.f32.mrb[0].mxu0
  %v513 = vadd.f32 %v222, %v512
  %v514 = vpop.f32.mrb[0].mxu0
  %515 = vdwg.mxu0
  %v516 = vsel %vm315, %v508, -inf
  %517 = vmax.xlane.f32.xlu0 %v516
  %v518 = vpop.xlane.xlu0 %517
  %v519 = vsel %vm315, %v513, -inf
  %520 = vmax.xlane.f32.xlu0 %v519
  %v521 = vpop.xlane.xlu0 %520
  %v522 = vsub.f32 %v508, %v518
  %v523 = vsub.f32 %v513, %v521
  %v524 = vmul.f32 %v522, 1.442695
  %v525 = vpow.pop %v524
  %v526 = vmul.f32 %v523, 1.442695
  %v527 = vpow.pop %v526
  %v528 = vsel %vm315, %v525, 0.0
  %529 = vadd.xlane.f32.xlu0 %v528
  %v530 = vpop.xlane.xlu0 %529
  %v531 = vsel %vm315, %v527, 0.0
  %532 = vadd.xlane.f32.xlu0 %v531
  %v533 = vpop.xlane.xlu0 %532
  %534 = vrot.lane.b32.xlu0 %v168, 44
  %v535 = vpop.permute.xlu0 %534
  %536 = vrot.lane.b32.xlu0 %v173, 44
  %v537 = vpop.permute.xlu0 %536
  %v541 = vsel %vm315, %v525, 0
  %v544 = vsel %vm315, %v527, 0
  %546 = vmatprep.subr.mxu0 0.0
  %547 = vmatpush1.msra.mxu0 %v535
  %548 = vmatprep.subr.mxu0 0.0
  %549 = vmatpush1.msra.mxu0 %v537
  %550 = vmatprep.subr.mxu0 0.0
  %551 = vmatpush1.msra.mxu0 0.0
  %552 = vmatprep.subr.mxu0 0.0
  %553 = vmatpush1.msra.mxu0 0.0
  %554 = vmatprep.subr.mxu0 0.0
  %555 = vmatpush1.msra.mxu0 0.0
  %556 = vmatprep.subr.mxu0 0.0
  %557 = vmatpush1.msra.mxu0 0.0
  %558 = vmatprep.subr.mxu0 0.0
  %559 = vmatpush1.msra.mxu0 0.0
  %560 = vmatprep.subr.mxu0 0.0
  %561 = vmatpush1.msra.mxu0 0.0
  %562 = vmatprep.subr.mxu0 0.0
  %563 = vmatpush1.msra.mxu0 0.0
  %564 = vmatprep.subr.mxu0 0.0
  %565 = vmatpush1.msra.mxu0 0.0
  %566 = vmatprep.subr.mxu0 0.0
  %567 = vmatpush1.msra.mxu0 0.0
  %568 = vmatprep.subr.mxu0 0.0
  %569 = vmatpush1.msra.mxu0 0.0
  %570 = vmatprep.subr.mxu0 0.0
  %571 = vmatpush1.msra.mxu0 0.0
  %572 = vmatprep.subr.mxu0 0.0
  %573 = vmatpush1.msra.mxu0 0.0
  %574 = vmatprep.subr.mxu0 0.0
  %575 = vmatpush1.msra.mxu0 0.0
  %576 = vmatprep.subr.mxu0 0.0
  %577 = vmatpush1.msra.mxu0 0.0
  %578 = vmatprep.subr.mxu0 0.0
  %579 = vmatpush1.msra.mxu0 0.0
  %580 = vmatprep.subr.mxu0 0.0
  %581 = vmatpush1.msra.mxu0 0.0
  %582 = vmatprep.subr.mxu0 0.0
  %583 = vmatpush1.msra.mxu0 0.0
  %584 = vmatprep.subr.mxu0 0.0
  %585 = vmatpush1.msra.mxu0 0.0
  %586 = vmatprep.subr.mxu0 0.0
  %587 = vmatpush1.msra.mxu0 0.0
  %588 = vmatprep.subr.mxu0 0.0
  %589 = vmatpush1.msra.mxu0 0.0
  %590 = vmatprep.subr.mxu0 0.0
  %591 = vmatpush1.msra.mxu0 0.0
  %592 = vmatprep.subr.mxu0 0.0
  %593 = vmatpush1.msra.mxu0 0.0
  %594 = vmatprep.subr.mxu0 0.0
  %595 = vmatpush1.msra.mxu0 0.0
  %596 = vmatprep.subr.mxu0 0.0
  %597 = vmatpush1.msra.mxu0 0.0
  %598 = vmatprep.subr.mxu0 0.0
  %599 = vmatpush1.msra.mxu0 0.0
  %600 = vmatprep.subr.mxu0 0.0
  %601 = vmatpush1.msra.mxu0 0.0
  %602 = vmatprep.subr.mxu0 0.0
  %603 = vmatpush1.msra.mxu0 0.0
  %604 = vmatprep.subr.mxu0 0.0
  %605 = vmatpush1.msra.mxu0 0.0
  %606 = vmatprep.subr.mxu0 0.0
  %607 = vmatpush1.msra.mxu0 0.0
  %608 = vmatprep.subr.mxu0 0.0
  %609 = vmatpush1.msra.mxu0 0.0
  %610 = vmatprep.mubr.f32.mxu0 0.0
  %611 = vmatmul.mubr.f32.gmra.mrb[0].mxu0 %v541
  %v612 = vpop.f32.mrb[0].mxu0
  %v613 = vadd.f32 0.0, %v612
  %v614 = vpop.f32.mrb[0].mxu0
  %615 = vmatprep.mubr.f32.mxu0 0.0
  %616 = vmatmul.mubr.f32.gmra.mrb[0].mxu0 %v544
  %v617 = vpop.f32.mrb[0].mxu0
  %v618 = vadd.f32 0.0, %v617
  %v619 = vpop.f32.mrb[0].mxu0
  %620 = vdwg.mxu0
  %v621 = vrcp.pop %v530
  %v622 = vmul.f32 %v613, %v621
  %v623 = vrcp.pop %v533
  %v624 = vmul.f32 %v618, %v623
  %v627 = vrot.slane %v17, 4
  %v628 = vrot.slane %v22, 4
  %629 = vrot.lane.b32.xlu0 %v627, 8
  %v630 = vpop.permute.xlu0 %629
  %631 = vrot.lane.b32.xlu0 %v628, 8
  %v632 = vpop.permute.xlu0 %631
  %vm633 = vcmask 64512
  %v634 = vsel %vm633, %v630, %v632
  %v636 = vsel %vm229, %v622, 0
  %v639 = vsel %vm229, %v624, 0
  %vm641 = vcmask 1043456
  %v642 = vsel %vm641, %v634, 0
  %644 = vmatprep.subr.mxu0 0.0
  %645 = vmatpush1.msra.mxu0 %v642
  %646 = vmatprep.subr.mxu0 0.0
  %647 = vmatpush1.msra.mxu0 0.0
  %648 = vmatprep.subr.mxu0 0.0
  %649 = vmatpush1.msra.mxu0 0.0
  %650 = vmatprep.subr.mxu0 0.0
  %651 = vmatpush1.msra.mxu0 0.0
  %652 = vmatprep.subr.mxu0 0.0
  %653 = vmatpush1.msra.mxu0 0.0
  %654 = vmatprep.subr.mxu0 0.0
  %655 = vmatpush1.msra.mxu0 0.0
  %656 = vmatprep.subr.mxu0 0.0
  %657 = vmatpush1.msra.mxu0 0.0
  %658 = vmatprep.subr.mxu0 0.0
  %659 = vmatpush1.msra.mxu0 0.0
  %660 = vmatprep.subr.mxu0 0.0
  %661 = vmatpush1.msra.mxu0 0.0
  %662 = vmatprep.subr.mxu0 0.0
  %663 = vmatpush1.msra.mxu0 0.0
  %664 = vmatprep.subr.mxu0 0.0
  %665 = vmatpush1.msra.mxu0 0.0
  %666 = vmatprep.subr.mxu0 0.0
  %667 = vmatpush1.msra.mxu0 0.0
  %668 = vmatprep.subr.mxu0 0.0
  %669 = vmatpush1.msra.mxu0 0.0
  %670 = vmatprep.subr.mxu0 0.0
  %671 = vmatpush1.msra.mxu0 0.0
  %672 = vmatprep.subr.mxu0 0.0
  %673 = vmatpush1.msra.mxu0 0.0
  %674 = vmatprep.subr.mxu0 0.0
  %675 = vmatpush1.msra.mxu0 0.0
  %676 = vmatprep.subr.mxu0 0.0
  %677 = vmatpush1.msra.mxu0 0.0
  %678 = vmatprep.subr.mxu0 0.0
  %679 = vmatpush1.msra.mxu0 0.0
  %680 = vmatprep.subr.mxu0 0.0
  %681 = vmatpush1.msra.mxu0 0.0
  %682 = vmatprep.subr.mxu0 0.0
  %683 = vmatpush1.msra.mxu0 0.0
  %684 = vmatprep.subr.mxu0 0.0
  %685 = vmatpush1.msra.mxu0 0.0
  %686 = vmatprep.subr.mxu0 0.0
  %687 = vmatpush1.msra.mxu0 0.0
  %688 = vmatprep.subr.mxu0 0.0
  %689 = vmatpush1.msra.mxu0 0.0
  %690 = vmatprep.subr.mxu0 0.0
  %691 = vmatpush1.msra.mxu0 0.0
  %692 = vmatprep.subr.mxu0 0.0
  %693 = vmatpush1.msra.mxu0 0.0
  %694 = vmatprep.subr.mxu0 0.0
  %695 = vmatpush1.msra.mxu0 0.0
  %696 = vmatprep.subr.mxu0 0.0
  %697 = vmatpush1.msra.mxu0 0.0
  %698 = vmatprep.subr.mxu0 0.0
  %699 = vmatpush1.msra.mxu0 0.0
  %700 = vmatprep.subr.mxu0 0.0
  %701 = vmatpush1.msra.mxu0 0.0
  %702 = vmatprep.subr.mxu0 0.0
  %703 = vmatpush1.msra.mxu0 0.0
  %704 = vmatprep.subr.mxu0 0.0
  %705 = vmatpush1.msra.mxu0 0.0
  %706 = vmatprep.subr.mxu0 0.0
  %707 = vmatpush1.msra.mxu0 0.0
  %708 = vmatprep.mubr.f32.mxu0 0.0
  %709 = vmatmul.mubr.f32.gmra.mrb[0].mxu0 %v636
  %v710 = vpop.f32.mrb[0].mxu0
  %v711 = vadd.f32 0.0, %v710
  %v712 = vpop.f32.mrb[0].mxu0
  %713 = vmatprep.mubr.f32.mxu0 0.0
  %714 = vmatmul.mubr.f32.gmra.mrb[0].mxu0 %v639
  %v715 = vpop.f32.mrb[0].mxu0
  %v716 = vadd.f32 0.0, %v715
  %v717 = vpop.f32.mrb[0].mxu0
  %718 = vdwg.mxu0
  %719 = vrot.lane.b32.xlu0 %v17, 8
  %v720 = vpop.permute.xlu0 %719
  %721 = vrot.lane.b32.xlu0 %v22, 8
  %v722 = vpop.permute.xlu0 %721
  %v723 = vsel %vm633, %v720, %v722
  %v725 = vsel %vm229, %v422, 0
  %v728 = vsel %vm229, %v424, 0
  %v730 = vsel %vm641, %v723, 0
  %732 = vmatprep.subr.mxu0 0.0
  %733 = vmatpush1.msra.mxu0 %v730
  %734 = vmatprep.subr.mxu0 0.0
  %735 = vmatpush1.msra.mxu0 0.0
  %736 = vmatprep.subr.mxu0 0.0
  %737 = vmatpush1.msra.mxu0 0.0
  %738 = vmatprep.subr.mxu0 0.0
  %739 = vmatpush1.msra.mxu0 0.0
  %740 = vmatprep.subr.mxu0 0.0
  %741 = vmatpush1.msra.mxu0 0.0
  %742 = vmatprep.subr.mxu0 0.0
  %743 = vmatpush1.msra.mxu0 0.0
  %744 = vmatprep.subr.mxu0 0.0
  %745 = vmatpush1.msra.mxu0 0.0
  %746 = vmatprep.subr.mxu0 0.0
  %747 = vmatpush1.msra.mxu0 0.0
  %748 = vmatprep.subr.mxu0 0.0
  %749 = vmatpush1.msra.mxu0 0.0
  %750 = vmatprep.subr.mxu0 0.0
  %751 = vmatpush1.msra.mxu0 0.0
  %752 = vmatprep.subr.mxu0 0.0
  %753 = vmatpush1.msra.mxu0 0.0
  %754 = vmatprep.subr.mxu0 0.0
  %755 = vmatpush1.msra.mxu0 0.0
  %756 = vmatprep.subr.mxu0 0.0
  %757 = vmatpush1.msra.mxu0 0.0
  %758 = vmatprep.subr.mxu0 0.0
  %759 = vmatpush1.msra.mxu0 0.0
  %760 = vmatprep.subr.mxu0 0.0
  %761 = vmatpush1.msra.mxu0 0.0
  %762 = vmatprep.subr.mxu0 0.0
  %763 = vmatpush1.msra.mxu0 0.0
  %764 = vmatprep.subr.mxu0 0.0
  %765 = vmatpush1.msra.mxu0 0.0
  %766 = vmatprep.subr.mxu0 0.0
  %767 = vmatpush1.msra.mxu0 0.0
  %768 = vmatprep.subr.mxu0 0.0
  %769 = vmatpush1.msra.mxu0 0.0
  %770 = vmatprep.subr.mxu0 0.0
  %771 = vmatpush1.msra.mxu0 0.0
  %772 = vmatprep.subr.mxu0 0.0
  %773 = vmatpush1.msra.mxu0 0.0
  %774 = vmatprep.subr.mxu0 0.0
  %775 = vmatpush1.msra.mxu0 0.0
  %776 = vmatprep.subr.mxu0 0.0
  %777 = vmatpush1.msra.mxu0 0.0
  %778 = vmatprep.subr.mxu0 0.0
  %779 = vmatpush1.msra.mxu0 0.0
  %780 = vmatprep.subr.mxu0 0.0
  %781 = vmatpush1.msra.mxu0 0.0
  %782 = vmatprep.subr.mxu0 0.0
  %783 = vmatpush1.msra.mxu0 0.0
  %784 = vmatprep.subr.mxu0 0.0
  %785 = vmatpush1.msra.mxu0 0.0
  %786 = vmatprep.subr.mxu0 0.0
  %787 = vmatpush1.msra.mxu0 0.0
  %788 = vmatprep.subr.mxu0 0.0
  %789 = vmatpush1.msra.mxu0 0.0
  %790 = vmatprep.subr.mxu0 0.0
  %791 = vmatpush1.msra.mxu0 0.0
  %792 = vmatprep.subr.mxu0 0.0
  %793 = vmatpush1.msra.mxu0 0.0
  %794 = vmatprep.subr.mxu0 0.0
  %795 = vmatpush1.msra.mxu0 0.0
  %796 = vmatprep.mubr.f32.mxu0 0.0
  %797 = vmatmul.mubr.f32.gmra.mrb[0].mxu0 %v725
  %v798 = vpop.f32.mrb[0].mxu0
  %v799 = vadd.f32 %v711, %v798
  %v800 = vpop.f32.mrb[0].mxu0
  %801 = vmatprep.mubr.f32.mxu0 0.0
  %802 = vmatmul.mubr.f32.gmra.mrb[0].mxu0 %v728
  %v803 = vpop.f32.mrb[0].mxu0
  %v804 = vadd.f32 %v716, %v803
  %v805 = vpop.f32.mrb[0].mxu0
  %806 = vdwg.mxu0
  %807 = vrot.lane.b32.xlu0 %v176, 120
  %v808 = vpop.permute.xlu0 %807
  %809 = vrot.lane.b32.xlu0 %v177, 120
  %v810 = vpop.permute.xlu0 %809
  %811 = vrot.lane.b32.xlu0 %v168, 80
  %v812 = vpop.permute.xlu0 %811
  %813 = vrot.lane.b32.xlu0 %v173, 80
  %v814 = vpop.permute.xlu0 %813
  %v815 = vsel %vm229, %v808, 0
  %v817 = vsel %vm229, %v810, 0
  %v819 = vsel %vm229, %v812, 0
  %v821 = vsel %vm229, %v814, 0
  %823 = vmatprep.subr.mxu0 0.0
  %824 = vmatpush1.xpose.msra.mxu0 %v819
  %825 = vmatprep.subr.mxu0 0.0
  %826 = vmatpush1.xpose.msra.mxu0 %v821
  %827 = vmatprep.subr.mxu0 0.0
  %828 = vmatpush1.xpose.msra.mxu0 0.0
  %829 = vmatprep.subr.mxu0 0.0
  %830 = vmatpush1.xpose.msra.mxu0 0.0
  %831 = vmatprep.subr.mxu0 0.0
  %832 = vmatpush1.xpose.msra.mxu0 0.0
  %833 = vmatprep.subr.mxu0 0.0
  %834 = vmatpush1.xpose.msra.mxu0 0.0
  %835 = vmatprep.subr.mxu0 0.0
  %836 = vmatpush1.xpose.msra.mxu0 0.0
  %837 = vmatprep.subr.mxu0 0.0
  %838 = vmatpush1.xpose.msra.mxu0 0.0
  %839 = vmatprep.subr.mxu0 0.0
  %840 = vmatpush1.xpose.msra.mxu0 0.0
  %841 = vmatprep.subr.mxu0 0.0
  %842 = vmatpush1.xpose.msra.mxu0 0.0
  %843 = vmatprep.subr.mxu0 0.0
  %844 = vmatpush1.xpose.msra.mxu0 0.0
  %845 = vmatprep.subr.mxu0 0.0
  %846 = vmatpush1.xpose.msra.mxu0 0.0
  %847 = vmatprep.subr.mxu0 0.0
  %848 = vmatpush1.xpose.msra.mxu0 0.0
  %849 = vmatprep.subr.mxu0 0.0
  %850 = vmatpush1.xpose.msra.mxu0 0.0
  %851 = vmatprep.subr.mxu0 0.0
  %852 = vmatpush1.xpose.msra.mxu0 0.0
  %853 = vmatprep.subr.mxu0 0.0
  %854 = vmatpush1.xpose.msra.mxu0 0.0
  %855 = vmatprep.subr.mxu0 0.0
  %856 = vmatpush1.xpose.msra.mxu0 0.0
  %857 = vmatprep.subr.mxu0 0.0
  %858 = vmatpush1.xpose.msra.mxu0 0.0
  %859 = vmatprep.subr.mxu0 0.0
  %860 = vmatpush1.xpose.msra.mxu0 0.0
  %861 = vmatprep.subr.mxu0 0.0
  %862 = vmatpush1.xpose.msra.mxu0 0.0
  %863 = vmatprep.subr.mxu0 0.0
  %864 = vmatpush1.xpose.msra.mxu0 0.0
  %865 = vmatprep.subr.mxu0 0.0
  %866 = vmatpush1.xpose.msra.mxu0 0.0
  %867 = vmatprep.subr.mxu0 0.0
  %868 = vmatpush1.xpose.msra.mxu0 0.0
  %869 = vmatprep.subr.mxu0 0.0
  %870 = vmatpush1.xpose.msra.mxu0 0.0
  %871 = vmatprep.subr.mxu0 0.0
  %872 = vmatpush1.xpose.msra.mxu0 0.0
  %873 = vmatprep.subr.mxu0 0.0
  %874 = vmatpush1.xpose.msra.mxu0 0.0
  %875 = vmatprep.subr.mxu0 0.0
  %876 = vmatpush1.xpose.msra.mxu0 0.0
  %877 = vmatprep.subr.mxu0 0.0
  %878 = vmatpush1.xpose.msra.mxu0 0.0
  %879 = vmatprep.subr.mxu0 0.0
  %880 = vmatpush1.xpose.msra.mxu0 0.0
  %881 = vmatprep.subr.mxu0 0.0
  %882 = vmatpush1.xpose.msra.mxu0 0.0
  %883 = vmatprep.subr.mxu0 0.0
  %884 = vmatpush1.xpose.msra.mxu0 0.0
  %885 = vmatprep.subr.mxu0 0.0
  %886 = vmatpush1.xpose.msra.mxu0 0.0
  %887 = vmatprep.mubr.f32.mxu0 0.0
  %888 = vmatmul.mubr.f32.gmra.mrb[0].mxu0 %v815
  %v889 = vpop.f32.mrb[0].mxu0
  %v890 = vadd.f32 %v221, %v889
  %v891 = vpop.f32.mrb[0].mxu0
  %892 = vmatprep.mubr.f32.mxu0 0.0
  %893 = vmatmul.mubr.f32.gmra.mrb[0].mxu0 %v817
  %v894 = vpop.f32.mrb[0].mxu0
  %v895 = vadd.f32 %v222, %v894
  %v896 = vpop.f32.mrb[0].mxu0
  %897 = vdwg.mxu0
  %v898 = vsel %vm315, %v890, -inf
  %899 = vmax.xlane.f32.xlu0 %v898
  %v900 = vpop.xlane.xlu0 %899
  %v901 = vsel %vm315, %v895, -inf
  %902 = vmax.xlane.f32.xlu0 %v901
  %v903 = vpop.xlane.xlu0 %902
  %v904 = vsub.f32 %v890, %v900
  %v905 = vsub.f32 %v895, %v903
  %v906 = vmul.f32 %v904, 1.442695
  %v907 = vpow.pop %v906
  %v908 = vmul.f32 %v905, 1.442695
  %v909 = vpow.pop %v908
  %v910 = vsel %vm315, %v907, 0.0
  %911 = vadd.xlane.f32.xlu0 %v910
  %v912 = vpop.xlane.xlu0 %911
  %v913 = vsel %vm315, %v909, 0.0
  %914 = vadd.xlane.f32.xlu0 %v913
  %v915 = vpop.xlane.xlu0 %914
  %916 = vrot.lane.b32.xlu0 %v168, 40
  %v917 = vpop.permute.xlu0 %916
  %918 = vrot.lane.b32.xlu0 %v173, 40
  %v919 = vpop.permute.xlu0 %918
  %v923 = vsel %vm315, %v907, 0
  %v926 = vsel %vm315, %v909, 0
  %928 = vmatprep.subr.mxu0 0.0
  %929 = vmatpush1.msra.mxu0 %v917
  %930 = vmatprep.subr.mxu0 0.0
  %931 = vmatpush1.msra.mxu0 %v919
  %932 = vmatprep.subr.mxu0 0.0
  %933 = vmatpush1.msra.mxu0 0.0
  %934 = vmatprep.subr.mxu0 0.0
  %935 = vmatpush1.msra.mxu0 0.0
  %936 = vmatprep.subr.mxu0 0.0
  %937 = vmatpush1.msra.mxu0 0.0
  %938 = vmatprep.subr.mxu0 0.0
  %939 = vmatpush1.msra.mxu0 0.0
  %940 = vmatprep.subr.mxu0 0.0
  %941 = vmatpush1.msra.mxu0 0.0
  %942 = vmatprep.subr.mxu0 0.0
  %943 = vmatpush1.msra.mxu0 0.0
  %944 = vmatprep.subr.mxu0 0.0
  %945 = vmatpush1.msra.mxu0 0.0
  %946 = vmatprep.subr.mxu0 0.0
  %947 = vmatpush1.msra.mxu0 0.0
  %948 = vmatprep.subr.mxu0 0.0
  %949 = vmatpush1.msra.mxu0 0.0
  %950 = vmatprep.subr.mxu0 0.0
  %951 = vmatpush1.msra.mxu0 0.0
  %952 = vmatprep.subr.mxu0 0.0
  %953 = vmatpush1.msra.mxu0 0.0
  %954 = vmatprep.subr.mxu0 0.0
  %955 = vmatpush1.msra.mxu0 0.0
  %956 = vmatprep.subr.mxu0 0.0
  %957 = vmatpush1.msra.mxu0 0.0
  %958 = vmatprep.subr.mxu0 0.0
  %959 = vmatpush1.msra.mxu0 0.0
  %960 = vmatprep.subr.mxu0 0.0
  %961 = vmatpush1.msra.mxu0 0.0
  %962 = vmatprep.subr.mxu0 0.0
  %963 = vmatpush1.msra.mxu0 0.0
  %964 = vmatprep.subr.mxu0 0.0
  %965 = vmatpush1.msra.mxu0 0.0
  %966 = vmatprep.subr.mxu0 0.0
  %967 = vmatpush1.msra.mxu0 0.0
  %968 = vmatprep.subr.mxu0 0.0
  %969 = vmatpush1.msra.mxu0 0.0
  %970 = vmatprep.subr.mxu0 0.0
  %971 = vmatpush1.msra.mxu0 0.0
  %972 = vmatprep.subr.mxu0 0.0
  %973 = vmatpush1.msra.mxu0 0.0
  %974 = vmatprep.subr.mxu0 0.0
  %975 = vmatpush1.msra.mxu0 0.0
  %976 = vmatprep.subr.mxu0 0.0
  %977 = vmatpush1.msra.mxu0 0.0
  %978 = vmatprep.subr.mxu0 0.0
  %979 = vmatpush1.msra.mxu0 0.0
  %980 = vmatprep.subr.mxu0 0.0
  %981 = vmatpush1.msra.mxu0 0.0
  %982 = vmatprep.subr.mxu0 0.0
  %983 = vmatpush1.msra.mxu0 0.0
  %984 = vmatprep.subr.mxu0 0.0
  %985 = vmatpush1.msra.mxu0 0.0
  %986 = vmatprep.subr.mxu0 0.0
  %987 = vmatpush1.msra.mxu0 0.0
  %988 = vmatprep.subr.mxu0 0.0
  %989 = vmatpush1.msra.mxu0 0.0
  %990 = vmatprep.subr.mxu0 0.0
  %991 = vmatpush1.msra.mxu0 0.0
  %992 = vmatprep.mubr.f32.mxu0 0.0
  %993 = vmatmul.mubr.f32.gmra.mrb[0].mxu0 %v923
  %v994 = vpop.f32.mrb[0].mxu0
  %v995 = vadd.f32 0.0, %v994
  %v996 = vpop.f32.mrb[0].mxu0
  %997 = vmatprep.mubr.f32.mxu0 0.0
  %998 = vmatmul.mubr.f32.gmra.mrb[0].mxu0 %v926
  %v999 = vpop.f32.mrb[0].mxu0
  %v1000 = vadd.f32 0.0, %v999
  %v1001 = vpop.f32.mrb[0].mxu0
  %1002 = vdwg.mxu0
  %v1003 = vrcp.pop %v912
  %v1004 = vmul.f32 %v995, %v1003
  %v1005 = vrcp.pop %v915
  %v1006 = vmul.f32 %v1000, %v1005
  %1009 = vrot.lane.b32.xlu0 %v18, 8
  %v1010 = vpop.permute.xlu0 %1009
  %1011 = vrot.lane.b32.xlu0 %v23, 8
  %v1012 = vpop.permute.xlu0 %1011
  %v1013 = vsel %vm633, %v1010, %v1012
  %v1015 = vsel %vm229, %v1004, 0
  %v1018 = vsel %vm229, %v1006, 0
  %v1020 = vsel %vm641, %v1013, 0
  %1022 = vmatprep.subr.mxu0 0.0
  %1023 = vmatpush1.msra.mxu0 %v1020
  %1024 = vmatprep.subr.mxu0 0.0
  %1025 = vmatpush1.msra.mxu0 0.0
  %1026 = vmatprep.subr.mxu0 0.0
  %1027 = vmatpush1.msra.mxu0 0.0
  %1028 = vmatprep.subr.mxu0 0.0
  %1029 = vmatpush1.msra.mxu0 0.0
  %1030 = vmatprep.subr.mxu0 0.0
  %1031 = vmatpush1.msra.mxu0 0.0
  %1032 = vmatprep.subr.mxu0 0.0
  %1033 = vmatpush1.msra.mxu0 0.0
  %1034 = vmatprep.subr.mxu0 0.0
  %1035 = vmatpush1.msra.mxu0 0.0
  %1036 = vmatprep.subr.mxu0 0.0
  %1037 = vmatpush1.msra.mxu0 0.0
  %1038 = vmatprep.subr.mxu0 0.0
  %1039 = vmatpush1.msra.mxu0 0.0
  %1040 = vmatprep.subr.mxu0 0.0
  %1041 = vmatpush1.msra.mxu0 0.0
  %1042 = vmatprep.subr.mxu0 0.0
  %1043 = vmatpush1.msra.mxu0 0.0
  %1044 = vmatprep.subr.mxu0 0.0
  %1045 = vmatpush1.msra.mxu0 0.0
  %1046 = vmatprep.subr.mxu0 0.0
  %1047 = vmatpush1.msra.mxu0 0.0
  %1048 = vmatprep.subr.mxu0 0.0
  %1049 = vmatpush1.msra.mxu0 0.0
  %1050 = vmatprep.subr.mxu0 0.0
  %1051 = vmatpush1.msra.mxu0 0.0
  %1052 = vmatprep.subr.mxu0 0.0
  %1053 = vmatpush1.msra.mxu0 0.0
  %1054 = vmatprep.subr.mxu0 0.0
  %1055 = vmatpush1.msra.mxu0 0.0
  %1056 = vmatprep.subr.mxu0 0.0
  %1057 = vmatpush1.msra.mxu0 0.0
  %1058 = vmatprep.subr.mxu0 0.0
  %1059 = vmatpush1.msra.mxu0 0.0
  %1060 = vmatprep.subr.mxu0 0.0
  %1061 = vmatpush1.msra.mxu0 0.0
  %1062 = vmatprep.subr.mxu0 0.0
  %1063 = vmatpush1.msra.mxu0 0.0
  %1064 = vmatprep.subr.mxu0 0.0
  %1065 = vmatpush1.msra.mxu0 0.0
  %1066 = vmatprep.subr.mxu0 0.0
  %1067 = vmatpush1.msra.mxu0 0.0
  %1068 = vmatprep.subr.mxu0 0.0
  %1069 = vmatpush1.msra.mxu0 0.0
  %1070 = vmatprep.subr.mxu0 0.0
  %1071 = vmatpush1.msra.mxu0 0.0
  %1072 = vmatprep.subr.mxu0 0.0
  %1073 = vmatpush1.msra.mxu0 0.0
  %1074 = vmatprep.subr.mxu0 0.0
  %1075 = vmatpush1.msra.mxu0 0.0
  %1076 = vmatprep.subr.mxu0 0.0
  %1077 = vmatpush1.msra.mxu0 0.0
  %1078 = vmatprep.subr.mxu0 0.0
  %1079 = vmatpush1.msra.mxu0 0.0
  %1080 = vmatprep.subr.mxu0 0.0
  %1081 = vmatpush1.msra.mxu0 0.0
  %1082 = vmatprep.subr.mxu0 0.0
  %1083 = vmatpush1.msra.mxu0 0.0
  %1084 = vmatprep.subr.mxu0 0.0
  %1085 = vmatpush1.msra.mxu0 0.0
  %1086 = vmatprep.mubr.f32.mxu0 0.0
  %1087 = vmatmul.mubr.f32.gmra.mrb[0].mxu0 %v1015
  %v1088 = vpop.f32.mrb[0].mxu0
  %v1089 = vadd.f32 0.0, %v1088
  %v1090 = vpop.f32.mrb[0].mxu0
  %1091 = vmatprep.mubr.f32.mxu0 0.0
  %1092 = vmatmul.mubr.f32.gmra.mrb[0].mxu0 %v1018
  %v1093 = vpop.f32.mrb[0].mxu0
  %v1094 = vadd.f32 0.0, %v1093
  %v1095 = vpop.f32.mrb[0].mxu0
  %1096 = vdwg.mxu0
  %v1097 = vadd.f32 %v799, %v1089
  %v1098 = vadd.f32 %v804, %v1094
  %1099 = vrot.lane.b32.xlu0 %v176, 116
  %v1100 = vpop.permute.xlu0 %1099
  %1101 = vrot.lane.b32.xlu0 %v177, 116
  %v1102 = vpop.permute.xlu0 %1101
  %1103 = vrot.lane.b32.xlu0 %v168, 76
  %v1104 = vpop.permute.xlu0 %1103
  %1105 = vrot.lane.b32.xlu0 %v173, 76
  %v1106 = vpop.permute.xlu0 %1105
  %v1107 = vsel %vm229, %v1100, 0
  %v1109 = vsel %vm229, %v1102, 0
  %v1111 = vsel %vm229, %v1104, 0
  %v1113 = vsel %vm229, %v1106, 0
  %1115 = vmatprep.subr.mxu0 0.0
  %1116 = vmatpush1.xpose.msra.mxu0 %v1111
  %1117 = vmatprep.subr.mxu0 0.0
  %1118 = vmatpush1.xpose.msra.mxu0 %v1113
  %1119 = vmatprep.subr.mxu0 0.0
  %1120 = vmatpush1.xpose.msra.mxu0 0.0
  %1121 = vmatprep.subr.mxu0 0.0
  %1122 = vmatpush1.xpose.msra.mxu0 0.0
  %1123 = vmatprep.subr.mxu0 0.0
  %1124 = vmatpush1.xpose.msra.mxu0 0.0
  %1125 = vmatprep.subr.mxu0 0.0
  %1126 = vmatpush1.xpose.msra.mxu0 0.0
  %1127 = vmatprep.subr.mxu0 0.0
  %1128 = vmatpush1.xpose.msra.mxu0 0.0
  %1129 = vmatprep.subr.mxu0 0.0
  %1130 = vmatpush1.xpose.msra.mxu0 0.0
  %1131 = vmatprep.subr.mxu0 0.0
  %1132 = vmatpush1.xpose.msra.mxu0 0.0
  %1133 = vmatprep.subr.mxu0 0.0
  %1134 = vmatpush1.xpose.msra.mxu0 0.0
  %1135 = vmatprep.subr.mxu0 0.0
  %1136 = vmatpush1.xpose.msra.mxu0 0.0
  %1137 = vmatprep.subr.mxu0 0.0
  %1138 = vmatpush1.xpose.msra.mxu0 0.0
  %1139 = vmatprep.subr.mxu0 0.0
  %1140 = vmatpush1.xpose.msra.mxu0 0.0
  %1141 = vmatprep.subr.mxu0 0.0
  %1142 = vmatpush1.xpose.msra.mxu0 0.0
  %1143 = vmatprep.subr.mxu0 0.0
  %1144 = vmatpush1.xpose.msra.mxu0 0.0
  %1145 = vmatprep.subr.mxu0 0.0
  %1146 = vmatpush1.xpose.msra.mxu0 0.0
  %1147 = vmatprep.subr.mxu0 0.0
  %1148 = vmatpush1.xpose.msra.mxu0 0.0
  %1149 = vmatprep.subr.mxu0 0.0
  %1150 = vmatpush1.xpose.msra.mxu0 0.0
  %1151 = vmatprep.subr.mxu0 0.0
  %1152 = vmatpush1.xpose.msra.mxu0 0.0
  %1153 = vmatprep.subr.mxu0 0.0
  %1154 = vmatpush1.xpose.msra.mxu0 0.0
  %1155 = vmatprep.subr.mxu0 0.0
  %1156 = vmatpush1.xpose.msra.mxu0 0.0
  %1157 = vmatprep.subr.mxu0 0.0
  %1158 = vmatpush1.xpose.msra.mxu0 0.0
  %1159 = vmatprep.subr.mxu0 0.0
  %1160 = vmatpush1.xpose.msra.mxu0 0.0
  %1161 = vmatprep.subr.mxu0 0.0
  %1162 = vmatpush1.xpose.msra.mxu0 0.0
  %1163 = vmatprep.subr.mxu0 0.0
  %1164 = vmatpush1.xpose.msra.mxu0 0.0
  %1165 = vmatprep.subr.mxu0 0.0
  %1166 = vmatpush1.xpose.msra.mxu0 0.0
  %1167 = vmatprep.subr.mxu0 0.0
  %1168 = vmatpush1.xpose.msra.mxu0 0.0
  %1169 = vmatprep.subr.mxu0 0.0
  %1170 = vmatpush1.xpose.msra.mxu0 0.0
  %1171 = vmatprep.subr.mxu0 0.0
  %1172 = vmatpush1.xpose.msra.mxu0 0.0
  %1173 = vmatprep.subr.mxu0 0.0
  %1174 = vmatpush1.xpose.msra.mxu0 0.0
  %1175 = vmatprep.subr.mxu0 0.0
  %1176 = vmatpush1.xpose.msra.mxu0 0.0
  %1177 = vmatprep.subr.mxu0 0.0
  %1178 = vmatpush1.xpose.msra.mxu0 0.0
  %1179 = vmatprep.mubr.f32.mxu0 0.0
  %1180 = vmatmul.mubr.f32.gmra.mrb[0].mxu0 %v1107
  %v1181 = vpop.f32.mrb[0].mxu0
  %v1182 = vadd.f32 %v221, %v1181
  %v1183 = vpop.f32.mrb[0].mxu0
  %1184 = vmatprep.mubr.f32.mxu0 0.0
  %1185 = vmatmul.mubr.f32.gmra.mrb[0].mxu0 %v1109
  %v1186 = vpop.f32.mrb[0].mxu0
  %v1187 = vadd.f32 %v222, %v1186
  %v1188 = vpop.f32.mrb[0].mxu0
  %1189 = vdwg.mxu0
  %v1190 = vsel %vm315, %v1182, -inf
  %1191 = vmax.xlane.f32.xlu0 %v1190
  %v1192 = vpop.xlane.xlu0 %1191
  %v1193 = vsel %vm315, %v1187, -inf
  %1194 = vmax.xlane.f32.xlu0 %v1193
  %v1195 = vpop.xlane.xlu0 %1194
  %v1196 = vsub.f32 %v1182, %v1192
  %v1197 = vsub.f32 %v1187, %v1195
  %v1198 = vmul.f32 %v1196, 1.442695
  %v1199 = vpow.pop %v1198
  %v1200 = vmul.f32 %v1197, 1.442695
  %v1201 = vpow.pop %v1200
  %v1202 = vsel %vm315, %v1199, 0.0
  %1203 = vadd.xlane.f32.xlu0 %v1202
  %v1204 = vpop.xlane.xlu0 %1203
  %v1205 = vsel %vm315, %v1201, 0.0
  %1206 = vadd.xlane.f32.xlu0 %v1205
  %v1207 = vpop.xlane.xlu0 %1206
  %1208 = vrot.lane.b32.xlu0 %v168, 36
  %v1209 = vpop.permute.xlu0 %1208
  %1210 = vrot.lane.b32.xlu0 %v173, 36
  %v1211 = vpop.permute.xlu0 %1210
  %v1215 = vsel %vm315, %v1199, 0
  %v1218 = vsel %vm315, %v1201, 0
  %1220 = vmatprep.subr.mxu0 0.0
  %1221 = vmatpush1.msra.mxu0 %v1209
  %1222 = vmatprep.subr.mxu0 0.0
  %1223 = vmatpush1.msra.mxu0 %v1211
  %1224 = vmatprep.subr.mxu0 0.0
  %1225 = vmatpush1.msra.mxu0 0.0
  %1226 = vmatprep.subr.mxu0 0.0
  %1227 = vmatpush1.msra.mxu0 0.0
  %1228 = vmatprep.subr.mxu0 0.0
  %1229 = vmatpush1.msra.mxu0 0.0
  %1230 = vmatprep.subr.mxu0 0.0
  %1231 = vmatpush1.msra.mxu0 0.0
  %1232 = vmatprep.subr.mxu0 0.0
  %1233 = vmatpush1.msra.mxu0 0.0
  %1234 = vmatprep.subr.mxu0 0.0
  %1235 = vmatpush1.msra.mxu0 0.0
  %1236 = vmatprep.subr.mxu0 0.0
  %1237 = vmatpush1.msra.mxu0 0.0
  %1238 = vmatprep.subr.mxu0 0.0
  %1239 = vmatpush1.msra.mxu0 0.0
  %1240 = vmatprep.subr.mxu0 0.0
  %1241 = vmatpush1.msra.mxu0 0.0
  %1242 = vmatprep.subr.mxu0 0.0
  %1243 = vmatpush1.msra.mxu0 0.0
  %1244 = vmatprep.subr.mxu0 0.0
  %1245 = vmatpush1.msra.mxu0 0.0
  %1246 = vmatprep.subr.mxu0 0.0
  %1247 = vmatpush1.msra.mxu0 0.0
  %1248 = vmatprep.subr.mxu0 0.0
  %1249 = vmatpush1.msra.mxu0 0.0
  %1250 = vmatprep.subr.mxu0 0.0
  %1251 = vmatpush1.msra.mxu0 0.0
  %1252 = vmatprep.subr.mxu0 0.0
  %1253 = vmatpush1.msra.mxu0 0.0
  %1254 = vmatprep.subr.mxu0 0.0
  %1255 = vmatpush1.msra.mxu0 0.0
  %1256 = vmatprep.subr.mxu0 0.0
  %1257 = vmatpush1.msra.mxu0 0.0
  %1258 = vmatprep.subr.mxu0 0.0
  %1259 = vmatpush1.msra.mxu0 0.0
  %1260 = vmatprep.subr.mxu0 0.0
  %1261 = vmatpush1.msra.mxu0 0.0
  %1262 = vmatprep.subr.mxu0 0.0
  %1263 = vmatpush1.msra.mxu0 0.0
  %1264 = vmatprep.subr.mxu0 0.0
  %1265 = vmatpush1.msra.mxu0 0.0
  %1266 = vmatprep.subr.mxu0 0.0
  %1267 = vmatpush1.msra.mxu0 0.0
  %1268 = vmatprep.subr.mxu0 0.0
  %1269 = vmatpush1.msra.mxu0 0.0
  %1270 = vmatprep.subr.mxu0 0.0
  %1271 = vmatpush1.msra.mxu0 0.0
  %1272 = vmatprep.subr.mxu0 0.0
  %1273 = vmatpush1.msra.mxu0 0.0
  %1274 = vmatprep.subr.mxu0 0.0
  %1275 = vmatpush1.msra.mxu0 0.0
  %1276 = vmatprep.subr.mxu0 0.0
  %1277 = vmatpush1.msra.mxu0 0.0
  %1278 = vmatprep.subr.mxu0 0.0
  %1279 = vmatpush1.msra.mxu0 0.0
  %1280 = vmatprep.subr.mxu0 0.0
  %1281 = vmatpush1.msra.mxu0 0.0
  %1282 = vmatprep.subr.mxu0 0.0
  %1283 = vmatpush1.msra.mxu0 0.0
  %1284 = vmatprep.mubr.f32.mxu0 0.0
  %1285 = vmatmul.mubr.f32.gmra.mrb[0].mxu0 %v1215
  %v1286 = vpop.f32.mrb[0].mxu0
  %v1287 = vadd.f32 0.0, %v1286
  %v1288 = vpop.f32.mrb[0].mxu0
  %1289 = vmatprep.mubr.f32.mxu0 0.0
  %1290 = vmatmul.mubr.f32.gmra.mrb[0].mxu0 %v1218
  %v1291 = vpop.f32.mrb[0].mxu0
  %v1292 = vadd.f32 0.0, %v1291
  %v1293 = vpop.f32.mrb[0].mxu0
  %1294 = vdwg.mxu0
  %v1295 = vrcp.pop %v1204
  %v1296 = vmul.f32 %v1287, %v1295
  %v1297 = vrcp.pop %v1207
  %v1298 = vmul.f32 %v1292, %v1297
  %v1299 = vrot.slane %v18, 4
  %v1300 = vrot.slane %v23, 4
  %1301 = vrot.lane.b32.xlu0 %v1299, 8
  %v1302 = vpop.permute.xlu0 %1301
  %1303 = vrot.lane.b32.xlu0 %v1300, 8
  %v1304 = vpop.permute.xlu0 %1303
  %v1305 = vsel %vm633, %v1302, %v1304
  %v1307 = vsel %vm229, %v1296, 0
  %v1310 = vsel %vm229, %v1298, 0
  %v1312 = vsel %vm641, %v1305, 0
  %1314 = vmatprep.subr.mxu0 0.0
  %1315 = vmatpush1.msra.mxu0 %v1312
  %1316 = vmatprep.subr.mxu0 0.0
  %1317 = vmatpush1.msra.mxu0 0.0
  %1318 = vmatprep.subr.mxu0 0.0
  %1319 = vmatpush1.msra.mxu0 0.0
  %1320 = vmatprep.subr.mxu0 0.0
  %1321 = vmatpush1.msra.mxu0 0.0
  %1322 = vmatprep.subr.mxu0 0.0
  %1323 = vmatpush1.msra.mxu0 0.0
  %1324 = vmatprep.subr.mxu0 0.0
  %1325 = vmatpush1.msra.mxu0 0.0
  %1326 = vmatprep.subr.mxu0 0.0
  %1327 = vmatpush1.msra.mxu0 0.0
  %1328 = vmatprep.subr.mxu0 0.0
  %1329 = vmatpush1.msra.mxu0 0.0
  %1330 = vmatprep.subr.mxu0 0.0
  %1331 = vmatpush1.msra.mxu0 0.0
  %1332 = vmatprep.subr.mxu0 0.0
  %1333 = vmatpush1.msra.mxu0 0.0
  %1334 = vmatprep.subr.mxu0 0.0
  %1335 = vmatpush1.msra.mxu0 0.0
  %1336 = vmatprep.subr.mxu0 0.0
  %1337 = vmatpush1.msra.mxu0 0.0
  %1338 = vmatprep.subr.mxu0 0.0
  %1339 = vmatpush1.msra.mxu0 0.0
  %1340 = vmatprep.subr.mxu0 0.0
  %1341 = vmatpush1.msra.mxu0 0.0
  %1342 = vmatprep.subr.mxu0 0.0
  %1343 = vmatpush1.msra.mxu0 0.0
  %1344 = vmatprep.subr.mxu0 0.0
  %1345 = vmatpush1.msra.mxu0 0.0
  %1346 = vmatprep.subr.mxu0 0.0
  %1347 = vmatpush1.msra.mxu0 0.0
  %1348 = vmatprep.subr.mxu0 0.0
  %1349 = vmatpush1.msra.mxu0 0.0
  %1350 = vmatprep.subr.mxu0 0.0
  %1351 = vmatpush1.msra.mxu0 0.0
  %1352 = vmatprep.subr.mxu0 0.0
  %1353 = vmatpush1.msra.mxu0 0.0
  %1354 = vmatprep.subr.mxu0 0.0
  %1355 = vmatpush1.msra.mxu0 0.0
  %1356 = vmatprep.subr.mxu0 0.0
  %1357 = vmatpush1.msra.mxu0 0.0
  %1358 = vmatprep.subr.mxu0 0.0
  %1359 = vmatpush1.msra.mxu0 0.0
  %1360 = vmatprep.subr.mxu0 0.0
  %1361 = vmatpush1.msra.mxu0 0.0
  %1362 = vmatprep.subr.mxu0 0.0
  %1363 = vmatpush1.msra.mxu0 0.0
  %1364 = vmatprep.subr.mxu0 0.0
  %1365 = vmatpush1.msra.mxu0 0.0
  %1366 = vmatprep.subr.mxu0 0.0
  %1367 = vmatpush1.msra.mxu0 0.0
  %1368 = vmatprep.subr.mxu0 0.0
  %1369 = vmatpush1.msra.mxu0 0.0
  %1370 = vmatprep.subr.mxu0 0.0
  %1371 = vmatpush1.msra.mxu0 0.0
  %1372 = vmatprep.subr.mxu0 0.0
  %1373 = vmatpush1.msra.mxu0 0.0
  %1374 = vmatprep.subr.mxu0 0.0
  %1375 = vmatpush1.msra.mxu0 0.0
  %1376 = vmatprep.subr.mxu0 0.0
  %1377 = vmatpush1.msra.mxu0 0.0
  %1378 = vmatprep.mubr.f32.mxu0 0.0
  %1379 = vmatmul.mubr.f32.gmra.mrb[0].mxu0 %v1307
  %v1380 = vpop.f32.mrb[0].mxu0
  %v1381 = vadd.f32 0.0, %v1380
  %v1382 = vpop.f32.mrb[0].mxu0
  %1383 = vmatprep.mubr.f32.mxu0 0.0
  %1384 = vmatmul.mubr.f32.gmra.mrb[0].mxu0 %v1310
  %v1385 = vpop.f32.mrb[0].mxu0
  %v1386 = vadd.f32 0.0, %v1385
  %v1387 = vpop.f32.mrb[0].mxu0
  %1388 = vdwg.mxu0
  %v1389 = vadd.f32 %v1097, %v1381
  %v1390 = vadd.f32 %v1098, %v1386
  %1391 = vrot.lane.b32.xlu0 %v176, 112
  %v1392 = vpop.permute.xlu0 %1391
  %1393 = vrot.lane.b32.xlu0 %v177, 112
  %v1394 = vpop.permute.xlu0 %1393
  %1395 = vrot.lane.b32.xlu0 %v168, 72
  %v1396 = vpop.permute.xlu0 %1395
  %1397 = vrot.lane.b32.xlu0 %v173, 72
  %v1398 = vpop.permute.xlu0 %1397
  %v1399 = vsel %vm229, %v1392, 0
  %v1401 = vsel %vm229, %v1394, 0
  %v1403 = vsel %vm229, %v1396, 0
  %v1405 = vsel %vm229, %v1398, 0
  %1407 = vmatprep.subr.mxu0 0.0
  %1408 = vmatpush1.xpose.msra.mxu0 %v1403
  %1409 = vmatprep.subr.mxu0 0.0
  %1410 = vmatpush1.xpose.msra.mxu0 %v1405
  %1411 = vmatprep.subr.mxu0 0.0
  %1412 = vmatpush1.xpose.msra.mxu0 0.0
  %1413 = vmatprep.subr.mxu0 0.0
  %1414 = vmatpush1.xpose.msra.mxu0 0.0
  %1415 = vmatprep.subr.mxu0 0.0
  %1416 = vmatpush1.xpose.msra.mxu0 0.0
  %1417 = vmatprep.subr.mxu0 0.0
  %1418 = vmatpush1.xpose.msra.mxu0 0.0
  %1419 = vmatprep.subr.mxu0 0.0
  %1420 = vmatpush1.xpose.msra.mxu0 0.0
  %1421 = vmatprep.subr.mxu0 0.0
  %1422 = vmatpush1.xpose.msra.mxu0 0.0
  %1423 = vmatprep.subr.mxu0 0.0
  %1424 = vmatpush1.xpose.msra.mxu0 0.0
  %1425 = vmatprep.subr.mxu0 0.0
  %1426 = vmatpush1.xpose.msra.mxu0 0.0
  %1427 = vmatprep.subr.mxu0 0.0
  %1428 = vmatpush1.xpose.msra.mxu0 0.0
  %1429 = vmatprep.subr.mxu0 0.0
  %1430 = vmatpush1.xpose.msra.mxu0 0.0
  %1431 = vmatprep.subr.mxu0 0.0
  %1432 = vmatpush1.xpose.msra.mxu0 0.0
  %1433 = vmatprep.subr.mxu0 0.0
  %1434 = vmatpush1.xpose.msra.mxu0 0.0
  %1435 = vmatprep.subr.mxu0 0.0
  %1436 = vmatpush1.xpose.msra.mxu0 0.0
  %1437 = vmatprep.subr.mxu0 0.0
  %1438 = vmatpush1.xpose.msra.mxu0 0.0
  %1439 = vmatprep.subr.mxu0 0.0
  %1440 = vmatpush1.xpose.msra.mxu0 0.0
  %1441 = vmatprep.subr.mxu0 0.0
  %1442 = vmatpush1.xpose.msra.mxu0 0.0
  %1443 = vmatprep.subr.mxu0 0.0
  %1444 = vmatpush1.xpose.msra.mxu0 0.0
  %1445 = vmatprep.subr.mxu0 0.0
  %1446 = vmatpush1.xpose.msra.mxu0 0.0
  %1447 = vmatprep.subr.mxu0 0.0
  %1448 = vmatpush1.xpose.msra.mxu0 0.0
  %1449 = vmatprep.subr.mxu0 0.0
  %1450 = vmatpush1.xpose.msra.mxu0 0.0
  %1451 = vmatprep.subr.mxu0 0.0
  %1452 = vmatpush1.xpose.msra.mxu0 0.0
  %1453 = vmatprep.subr.mxu0 0.0
  %1454 = vmatpush1.xpose.msra.mxu0 0.0
  %1455 = vmatprep.subr.mxu0 0.0
  %1456 = vmatpush1.xpose.msra.mxu0 0.0
  %1457 = vmatprep.subr.mxu0 0.0
  %1458 = vmatpush1.xpose.msra.mxu0 0.0
  %1459 = vmatprep.subr.mxu0 0.0
  %1460 = vmatpush1.xpose.msra.mxu0 0.0
  %1461 = vmatprep.subr.mxu0 0.0
  %1462 = vmatpush1.xpose.msra.mxu0 0.0
  %1463 = vmatprep.subr.mxu0 0.0
  %1464 = vmatpush1.xpose.msra.mxu0 0.0
  %1465 = vmatprep.subr.mxu0 0.0
  %1466 = vmatpush1.xpose.msra.mxu0 0.0
  %1467 = vmatprep.subr.mxu0 0.0
  %1468 = vmatpush1.xpose.msra.mxu0 0.0
  %1469 = vmatprep.subr.mxu0 0.0
  %1470 = vmatpush1.xpose.msra.mxu0 0.0
  %1471 = vmatprep.mubr.f32.mxu0 0.0
  %1472 = vmatmul.mubr.f32.gmra.mrb[0].mxu0 %v1399
  %v1473 = vpop.f32.mrb[0].mxu0
  %v1474 = vadd.f32 %v221, %v1473
  %v1475 = vpop.f32.mrb[0].mxu0
  %1476 = vmatprep.mubr.f32.mxu0 0.0
  %1477 = vmatmul.mubr.f32.gmra.mrb[0].mxu0 %v1401
  %v1478 = vpop.f32.mrb[0].mxu0
  %v1479 = vadd.f32 %v222, %v1478
  %v1480 = vpop.f32.mrb[0].mxu0
  %1481 = vdwg.mxu0
  %v1482 = vsel %vm315, %v1474, -inf
  %1483 = vmax.xlane.f32.xlu0 %v1482
  %v1484 = vpop.xlane.xlu0 %1483
  %v1485 = vsel %vm315, %v1479, -inf
  %1486 = vmax.xlane.f32.xlu0 %v1485
  %v1487 = vpop.xlane.xlu0 %1486
  %v1488 = vsub.f32 %v1474, %v1484
  %v1489 = vsub.f32 %v1479, %v1487
  %v1490 = vmul.f32 %v1488, 1.442695
  %v1491 = vpow.pop %v1490
  %v1492 = vmul.f32 %v1489, 1.442695
  %v1493 = vpow.pop %v1492
  %v1494 = vsel %vm315, %v1491, 0.0
  %1495 = vadd.xlane.f32.xlu0 %v1494
  %v1496 = vpop.xlane.xlu0 %1495
  %v1497 = vsel %vm315, %v1493, 0.0
  %1498 = vadd.xlane.f32.xlu0 %v1497
  %v1499 = vpop.xlane.xlu0 %1498
  %1500 = vrot.lane.b32.xlu0 %v168, 32
  %v1501 = vpop.permute.xlu0 %1500
  %1502 = vrot.lane.b32.xlu0 %v173, 32
  %v1503 = vpop.permute.xlu0 %1502
  %v1507 = vsel %vm315, %v1491, 0
  %v1510 = vsel %vm315, %v1493, 0
  %1512 = vmatprep.subr.mxu0 0.0
  %1513 = vmatpush1.msra.mxu0 %v1501
  %1514 = vmatprep.subr.mxu0 0.0
  %1515 = vmatpush1.msra.mxu0 %v1503
  %1516 = vmatprep.subr.mxu0 0.0
  %1517 = vmatpush1.msra.mxu0 0.0
  %1518 = vmatprep.subr.mxu0 0.0
  %1519 = vmatpush1.msra.mxu0 0.0
  %1520 = vmatprep.subr.mxu0 0.0
  %1521 = vmatpush1.msra.mxu0 0.0
  %1522 = vmatprep.subr.mxu0 0.0
  %1523 = vmatpush1.msra.mxu0 0.0
  %1524 = vmatprep.subr.mxu0 0.0
  %1525 = vmatpush1.msra.mxu0 0.0
  %1526 = vmatprep.subr.mxu0 0.0
  %1527 = vmatpush1.msra.mxu0 0.0
  %1528 = vmatprep.subr.mxu0 0.0
  %1529 = vmatpush1.msra.mxu0 0.0
  %1530 = vmatprep.subr.mxu0 0.0
  %1531 = vmatpush1.msra.mxu0 0.0
  %1532 = vmatprep.subr.mxu0 0.0
  %1533 = vmatpush1.msra.mxu0 0.0
  %1534 = vmatprep.subr.mxu0 0.0
  %1535 = vmatpush1.msra.mxu0 0.0
  %1536 = vmatprep.subr.mxu0 0.0
  %1537 = vmatpush1.msra.mxu0 0.0
  %1538 = vmatprep.subr.mxu0 0.0
  %1539 = vmatpush1.msra.mxu0 0.0
  %1540 = vmatprep.subr.mxu0 0.0
  %1541 = vmatpush1.msra.mxu0 0.0
  %1542 = vmatprep.subr.mxu0 0.0
  %1543 = vmatpush1.msra.mxu0 0.0
  %1544 = vmatprep.subr.mxu0 0.0
  %1545 = vmatpush1.msra.mxu0 0.0
  %1546 = vmatprep.subr.mxu0 0.0
  %1547 = vmatpush1.msra.mxu0 0.0
  %1548 = vmatprep.subr.mxu0 0.0
  %1549 = vmatpush1.msra.mxu0 0.0
  %1550 = vmatprep.subr.mxu0 0.0
  %1551 = vmatpush1.msra.mxu0 0.0
  %1552 = vmatprep.subr.mxu0 0.0
  %1553 = vmatpush1.msra.mxu0 0.0
  %1554 = vmatprep.subr.mxu0 0.0
  %1555 = vmatpush1.msra.mxu0 0.0
  %1556 = vmatprep.subr.mxu0 0.0
  %1557 = vmatpush1.msra.mxu0 0.0
  %1558 = vmatprep.subr.mxu0 0.0
  %1559 = vmatpush1.msra.mxu0 0.0
  %1560 = vmatprep.subr.mxu0 0.0
  %1561 = vmatpush1.msra.mxu0 0.0
  %1562 = vmatprep.subr.mxu0 0.0
  %1563 = vmatpush1.msra.mxu0 0.0
  %1564 = vmatprep.subr.mxu0 0.0
  %1565 = vmatpush1.msra.mxu0 0.0
  %1566 = vmatprep.subr.mxu0 0.0
  %1567 = vmatpush1.msra.mxu0 0.0
  %1568 = vmatprep.subr.mxu0 0.0
  %1569 = vmatpush1.msra.mxu0 0.0
  %1570 = vmatprep.subr.mxu0 0.0
  %1571 = vmatpush1.msra.mxu0 0.0
  %1572 = vmatprep.subr.mxu0 0.0
  %1573 = vmatpush1.msra.mxu0 0.0
  %1574 = vmatprep.subr.mxu0 0.0
  %1575 = vmatpush1.msra.mxu0 0.0
  %1576 = vmatprep.mubr.f32.mxu0 0.0
  %1577 = vmatmul.mubr.f32.gmra.mrb[0].mxu0 %v1507
  %v1578 = vpop.f32.mrb[0].mxu0
  %v1579 = vadd.f32 0.0, %v1578
  %v1580 = vpop.f32.mrb[0].mxu0
  %1581 = vmatprep.mubr.f32.mxu0 0.0
  %1582 = vmatmul.mubr.f32.gmra.mrb[0].mxu0 %v1510
  %v1583 = vpop.f32.mrb[0].mxu0
  %v1584 = vadd.f32 0.0, %v1583
  %v1585 = vpop.f32.mrb[0].mxu0
  %1586 = vdwg.mxu0
  %v1587 = vrcp.pop %v1496
  %v1588 = vmul.f32 %v1579, %v1587
  %v1589 = vrcp.pop %v1499
  %v1590 = vmul.f32 %v1584, %v1589
  %1593 = vrot.lane.b32.xlu0 %v19, 8
  %v1594 = vpop.permute.xlu0 %1593
  %1595 = vrot.lane.b32.xlu0 %v24, 8
  %v1596 = vpop.permute.xlu0 %1595
  %v1597 = vsel %vm633, %v1594, %v1596
  %v1599 = vsel %vm229, %v1588, 0
  %v1602 = vsel %vm229, %v1590, 0
  %v1604 = vsel %vm641, %v1597, 0
  %1606 = vmatprep.subr.mxu0 0.0
  %1607 = vmatpush1.msra.mxu0 %v1604
  %1608 = vmatprep.subr.mxu0 0.0
  %1609 = vmatpush1.msra.mxu0 0.0
  %1610 = vmatprep.subr.mxu0 0.0
  %1611 = vmatpush1.msra.mxu0 0.0
  %1612 = vmatprep.subr.mxu0 0.0
  %1613 = vmatpush1.msra.mxu0 0.0
  %1614 = vmatprep.subr.mxu0 0.0
  %1615 = vmatpush1.msra.mxu0 0.0
  %1616 = vmatprep.subr.mxu0 0.0
  %1617 = vmatpush1.msra.mxu0 0.0
  %1618 = vmatprep.subr.mxu0 0.0
  %1619 = vmatpush1.msra.mxu0 0.0
  %1620 = vmatprep.subr.mxu0 0.0
  %1621 = vmatpush1.msra.mxu0 0.0
  %1622 = vmatprep.subr.mxu0 0.0
  %1623 = vmatpush1.msra.mxu0 0.0
  %1624 = vmatprep.subr.mxu0 0.0
  %1625 = vmatpush1.msra.mxu0 0.0
  %1626 = vmatprep.subr.mxu0 0.0
  %1627 = vmatpush1.msra.mxu0 0.0
  %1628 = vmatprep.subr.mxu0 0.0
  %1629 = vmatpush1.msra.mxu0 0.0
  %1630 = vmatprep.subr.mxu0 0.0
  %1631 = vmatpush1.msra.mxu0 0.0
  %1632 = vmatprep.subr.mxu0 0.0
  %1633 = vmatpush1.msra.mxu0 0.0
  %1634 = vmatprep.subr.mxu0 0.0
  %1635 = vmatpush1.msra.mxu0 0.0
  %1636 = vmatprep.subr.mxu0 0.0
  %1637 = vmatpush1.msra.mxu0 0.0
  %1638 = vmatprep.subr.mxu0 0.0
  %1639 = vmatpush1.msra.mxu0 0.0
  %1640 = vmatprep.subr.mxu0 0.0
  %1641 = vmatpush1.msra.mxu0 0.0
  %1642 = vmatprep.subr.mxu0 0.0
  %1643 = vmatpush1.msra.mxu0 0.0
  %1644 = vmatprep.subr.mxu0 0.0
  %1645 = vmatpush1.msra.mxu0 0.0
  %1646 = vmatprep.subr.mxu0 0.0
  %1647 = vmatpush1.msra.mxu0 0.0
  %1648 = vmatprep.subr.mxu0 0.0
  %1649 = vmatpush1.msra.mxu0 0.0
  %1650 = vmatprep.subr.mxu0 0.0
  %1651 = vmatpush1.msra.mxu0 0.0
  %1652 = vmatprep.subr.mxu0 0.0
  %1653 = vmatpush1.msra.mxu0 0.0
  %1654 = vmatprep.subr.mxu0 0.0
  %1655 = vmatpush1.msra.mxu0 0.0
  %1656 = vmatprep.subr.mxu0 0.0
  %1657 = vmatpush1.msra.mxu0 0.0
  %1658 = vmatprep.subr.mxu0 0.0
  %1659 = vmatpush1.msra.mxu0 0.0
  %1660 = vmatprep.subr.mxu0 0.0
  %1661 = vmatpush1.msra.mxu0 0.0
  %1662 = vmatprep.subr.mxu0 0.0
  %1663 = vmatpush1.msra.mxu0 0.0
  %1664 = vmatprep.subr.mxu0 0.0
  %1665 = vmatpush1.msra.mxu0 0.0
  %1666 = vmatprep.subr.mxu0 0.0
  %1667 = vmatpush1.msra.mxu0 0.0
  %1668 = vmatprep.subr.mxu0 0.0
  %1669 = vmatpush1.msra.mxu0 0.0
  %1670 = vmatprep.mubr.f32.mxu0 0.0
  %1671 = vmatmul.mubr.f32.gmra.mrb[0].mxu0 %v1599
  %v1672 = vpop.f32.mrb[0].mxu0
  %v1673 = vadd.f32 0.0, %v1672
  %v1674 = vpop.f32.mrb[0].mxu0
  %1675 = vmatprep.mubr.f32.mxu0 0.0
  %1676 = vmatmul.mubr.f32.gmra.mrb[0].mxu0 %v1602
  %v1677 = vpop.f32.mrb[0].mxu0
  %v1678 = vadd.f32 0.0, %v1677
  %v1679 = vpop.f32.mrb[0].mxu0
  %1680 = vdwg.mxu0
  %v1681 = vadd.f32 %v1389, %v1673
  %v1682 = vadd.f32 %v1390, %v1678
  %1683 = vrot.lane.b32.xlu0 %v176, 108
  %v1684 = vpop.permute.xlu0 %1683
  %1685 = vrot.lane.b32.xlu0 %v177, 108
  %v1686 = vpop.permute.xlu0 %1685
  %1687 = vrot.lane.b32.xlu0 %v168, 68
  %v1688 = vpop.permute.xlu0 %1687
  %1689 = vrot.lane.b32.xlu0 %v173, 68
  %v1690 = vpop.permute.xlu0 %1689
  %v1691 = vsel %vm229, %v1684, 0
  %v1693 = vsel %vm229, %v1686, 0
  %v1695 = vsel %vm229, %v1688, 0
  %v1697 = vsel %vm229, %v1690, 0
  %1699 = vmatprep.subr.mxu0 0.0
  %1700 = vmatpush1.xpose.msra.mxu0 %v1695
  %1701 = vmatprep.subr.mxu0 0.0
  %1702 = vmatpush1.xpose.msra.mxu0 %v1697
  %1703 = vmatprep.subr.mxu0 0.0
  %1704 = vmatpush1.xpose.msra.mxu0 0.0
  %1705 = vmatprep.subr.mxu0 0.0
  %1706 = vmatpush1.xpose.msra.mxu0 0.0
  %1707 = vmatprep.subr.mxu0 0.0
  %1708 = vmatpush1.xpose.msra.mxu0 0.0
  %1709 = vmatprep.subr.mxu0 0.0
  %1710 = vmatpush1.xpose.msra.mxu0 0.0
  %1711 = vmatprep.subr.mxu0 0.0
  %1712 = vmatpush1.xpose.msra.mxu0 0.0
  %1713 = vmatprep.subr.mxu0 0.0
  %1714 = vmatpush1.xpose.msra.mxu0 0.0
  %1715 = vmatprep.subr.mxu0 0.0
  %1716 = vmatpush1.xpose.msra.mxu0 0.0
  %1717 = vmatprep.subr.mxu0 0.0
  %1718 = vmatpush1.xpose.msra.mxu0 0.0
  %1719 = vmatprep.subr.mxu0 0.0
  %1720 = vmatpush1.xpose.msra.mxu0 0.0
  %1721 = vmatprep.subr.mxu0 0.0
  %1722 = vmatpush1.xpose.msra.mxu0 0.0
  %1723 = vmatprep.subr.mxu0 0.0
  %1724 = vmatpush1.xpose.msra.mxu0 0.0
  %1725 = vmatprep.subr.mxu0 0.0
  %1726 = vmatpush1.xpose.msra.mxu0 0.0
  %1727 = vmatprep.subr.mxu0 0.0
  %1728 = vmatpush1.xpose.msra.mxu0 0.0
  %1729 = vmatprep.subr.mxu0 0.0
  %1730 = vmatpush1.xpose.msra.mxu0 0.0
  %1731 = vmatprep.subr.mxu0 0.0
  %1732 = vmatpush1.xpose.msra.mxu0 0.0
  %1733 = vmatprep.subr.mxu0 0.0
  %1734 = vmatpush1.xpose.msra.mxu0 0.0
  %1735 = vmatprep.subr.mxu0 0.0
  %1736 = vmatpush1.xpose.msra.mxu0 0.0
  %1737 = vmatprep.subr.mxu0 0.0
  %1738 = vmatpush1.xpose.msra.mxu0 0.0
  %1739 = vmatprep.subr.mxu0 0.0
  %1740 = vmatpush1.xpose.msra.mxu0 0.0
  %1741 = vmatprep.subr.mxu0 0.0
  %1742 = vmatpush1.xpose.msra.mxu0 0.0
  %1743 = vmatprep.subr.mxu0 0.0
  %1744 = vmatpush1.xpose.msra.mxu0 0.0
  %1745 = vmatprep.subr.mxu0 0.0
  %1746 = vmatpush1.xpose.msra.mxu0 0.0
  %1747 = vmatprep.subr.mxu0 0.0
  %1748 = vmatpush1.xpose.msra.mxu0 0.0
  %1749 = vmatprep.subr.mxu0 0.0
  %1750 = vmatpush1.xpose.msra.mxu0 0.0
  %1751 = vmatprep.subr.mxu0 0.0
  %1752 = vmatpush1.xpose.msra.mxu0 0.0
  %1753 = vmatprep.subr.mxu0 0.0
  %1754 = vmatpush1.xpose.msra.mxu0 0.0
  %1755 = vmatprep.subr.mxu0 0.0
  %1756 = vmatpush1.xpose.msra.mxu0 0.0
  %1757 = vmatprep.subr.mxu0 0.0
  %1758 = vmatpush1.xpose.msra.mxu0 0.0
  %1759 = vmatprep.subr.mxu0 0.0
  %1760 = vmatpush1.xpose.msra.mxu0 0.0
  %1761 = vmatprep.subr.mxu0 0.0
  %1762 = vmatpush1.xpose.msra.mxu0 0.0
  %1763 = vmatprep.mubr.f32.mxu0 0.0
  %1764 = vmatmul.mubr.f32.gmra.mrb[0].mxu0 %v1691
  %v1765 = vpop.f32.mrb[0].mxu0
  %v1766 = vadd.f32 %v221, %v1765
  %v1767 = vpop.f32.mrb[0].mxu0
  %1768 = vmatprep.mubr.f32.mxu0 0.0
  %1769 = vmatmul.mubr.f32.gmra.mrb[0].mxu0 %v1693
  %v1770 = vpop.f32.mrb[0].mxu0
  %v1771 = vadd.f32 %v222, %v1770
  %v1772 = vpop.f32.mrb[0].mxu0
  %1773 = vdwg.mxu0
  %v1774 = vsel %vm315, %v1766, -inf
  %1775 = vmax.xlane.f32.xlu0 %v1774
  %v1776 = vpop.xlane.xlu0 %1775
  %v1777 = vsel %vm315, %v1771, -inf
  %1778 = vmax.xlane.f32.xlu0 %v1777
  %v1779 = vpop.xlane.xlu0 %1778
  %v1780 = vsub.f32 %v1766, %v1776
  %v1781 = vsub.f32 %v1771, %v1779
  %v1782 = vmul.f32 %v1780, 1.442695
  %v1783 = vpow.pop %v1782
  %v1784 = vmul.f32 %v1781, 1.442695
  %v1785 = vpow.pop %v1784
  %v1786 = vsel %vm315, %v1783, 0.0
  %1787 = vadd.xlane.f32.xlu0 %v1786
  %v1788 = vpop.xlane.xlu0 %1787
  %v1789 = vsel %vm315, %v1785, 0.0
  %1790 = vadd.xlane.f32.xlu0 %v1789
  %v1791 = vpop.xlane.xlu0 %1790
  %1792 = vrot.lane.b32.xlu0 %v168, 28
  %v1793 = vpop.permute.xlu0 %1792
  %1794 = vrot.lane.b32.xlu0 %v173, 28
  %v1795 = vpop.permute.xlu0 %1794
  %v1799 = vsel %vm315, %v1783, 0
  %v1802 = vsel %vm315, %v1785, 0
  %1804 = vmatprep.subr.mxu0 0.0
  %1805 = vmatpush1.msra.mxu0 %v1793
  %1806 = vmatprep.subr.mxu0 0.0
  %1807 = vmatpush1.msra.mxu0 %v1795
  %1808 = vmatprep.subr.mxu0 0.0
  %1809 = vmatpush1.msra.mxu0 0.0
  %1810 = vmatprep.subr.mxu0 0.0
  %1811 = vmatpush1.msra.mxu0 0.0
  %1812 = vmatprep.subr.mxu0 0.0
  %1813 = vmatpush1.msra.mxu0 0.0
  %1814 = vmatprep.subr.mxu0 0.0
  %1815 = vmatpush1.msra.mxu0 0.0
  %1816 = vmatprep.subr.mxu0 0.0
  %1817 = vmatpush1.msra.mxu0 0.0
  %1818 = vmatprep.subr.mxu0 0.0
  %1819 = vmatpush1.msra.mxu0 0.0
  %1820 = vmatprep.subr.mxu0 0.0
  %1821 = vmatpush1.msra.mxu0 0.0
  %1822 = vmatprep.subr.mxu0 0.0
  %1823 = vmatpush1.msra.mxu0 0.0
  %1824 = vmatprep.subr.mxu0 0.0
  %1825 = vmatpush1.msra.mxu0 0.0
  %1826 = vmatprep.subr.mxu0 0.0
  %1827 = vmatpush1.msra.mxu0 0.0
  %1828 = vmatprep.subr.mxu0 0.0
  %1829 = vmatpush1.msra.mxu0 0.0
  %1830 = vmatprep.subr.mxu0 0.0
  %1831 = vmatpush1.msra.mxu0 0.0
  %1832 = vmatprep.subr.mxu0 0.0
  %1833 = vmatpush1.msra.mxu0 0.0
  %1834 = vmatprep.subr.mxu0 0.0
  %1835 = vmatpush1.msra.mxu0 0.0
  %1836 = vmatprep.subr.mxu0 0.0
  %1837 = vmatpush1.msra.mxu0 0.0
  %1838 = vmatprep.subr.mxu0 0.0
  %1839 = vmatpush1.msra.mxu0 0.0
  %1840 = vmatprep.subr.mxu0 0.0
  %1841 = vmatpush1.msra.mxu0 0.0
  %1842 = vmatprep.subr.mxu0 0.0
  %1843 = vmatpush1.msra.mxu0 0.0
  %1844 = vmatprep.subr.mxu0 0.0
  %1845 = vmatpush1.msra.mxu0 0.0
  %1846 = vmatprep.subr.mxu0 0.0
  %1847 = vmatpush1.msra.mxu0 0.0
  %1848 = vmatprep.subr.mxu0 0.0
  %1849 = vmatpush1.msra.mxu0 0.0
  %1850 = vmatprep.subr.mxu0 0.0
  %1851 = vmatpush1.msra.mxu0 0.0
  %1852 = vmatprep.subr.mxu0 0.0
  %1853 = vmatpush1.msra.mxu0 0.0
  %1854 = vmatprep.subr.mxu0 0.0
  %1855 = vmatpush1.msra.mxu0 0.0
  %1856 = vmatprep.subr.mxu0 0.0
  %1857 = vmatpush1.msra.mxu0 0.0
  %1858 = vmatprep.subr.mxu0 0.0
  %1859 = vmatpush1.msra.mxu0 0.0
  %1860 = vmatprep.subr.mxu0 0.0
  %1861 = vmatpush1.msra.mxu0 0.0
  %1862 = vmatprep.subr.mxu0 0.0
  %1863 = vmatpush1.msra.mxu0 0.0
  %1864 = vmatprep.subr.mxu0 0.0
  %1865 = vmatpush1.msra.mxu0 0.0
  %1866 = vmatprep.subr.mxu0 0.0
  %1867 = vmatpush1.msra.mxu0 0.0
  %1868 = vmatprep.mubr.f32.mxu0 0.0
  %1869 = vmatmul.mubr.f32.gmra.mrb[0].mxu0 %v1799
  %v1870 = vpop.f32.mrb[0].mxu0
  %v1871 = vadd.f32 0.0, %v1870
  %v1872 = vpop.f32.mrb[0].mxu0
  %1873 = vmatprep.mubr.f32.mxu0 0.0
  %1874 = vmatmul.mubr.f32.gmra.mrb[0].mxu0 %v1802
  %v1875 = vpop.f32.mrb[0].mxu0
  %v1876 = vadd.f32 0.0, %v1875
  %v1877 = vpop.f32.mrb[0].mxu0
  %1878 = vdwg.mxu0
  %v1879 = vrcp.pop %v1788
  %v1880 = vmul.f32 %v1871, %v1879
  %v1881 = vrcp.pop %v1791
  %v1882 = vmul.f32 %v1876, %v1881
  %v1883 = vrot.slane %v19, 4
  %v1884 = vrot.slane %v24, 4
  %1885 = vrot.lane.b32.xlu0 %v1883, 8
  %v1886 = vpop.permute.xlu0 %1885
  %1887 = vrot.lane.b32.xlu0 %v1884, 8
  %v1888 = vpop.permute.xlu0 %1887
  %v1889 = vsel %vm633, %v1886, %v1888
  %v1891 = vsel %vm229, %v1880, 0
  %v1894 = vsel %vm229, %v1882, 0
  %v1896 = vsel %vm641, %v1889, 0
  %1898 = vmatprep.subr.mxu0 0.0
  %1899 = vmatpush1.msra.mxu0 %v1896
  %1900 = vmatprep.subr.mxu0 0.0
  %1901 = vmatpush1.msra.mxu0 0.0
  %1902 = vmatprep.subr.mxu0 0.0
  %1903 = vmatpush1.msra.mxu0 0.0
  %1904 = vmatprep.subr.mxu0 0.0
  %1905 = vmatpush1.msra.mxu0 0.0
  %1906 = vmatprep.subr.mxu0 0.0
  %1907 = vmatpush1.msra.mxu0 0.0
  %1908 = vmatprep.subr.mxu0 0.0
  %1909 = vmatpush1.msra.mxu0 0.0
  %1910 = vmatprep.subr.mxu0 0.0
  %1911 = vmatpush1.msra.mxu0 0.0
  %1912 = vmatprep.subr.mxu0 0.0
  %1913 = vmatpush1.msra.mxu0 0.0
  %1914 = vmatprep.subr.mxu0 0.0
  %1915 = vmatpush1.msra.mxu0 0.0
  %1916 = vmatprep.subr.mxu0 0.0
  %1917 = vmatpush1.msra.mxu0 0.0
  %1918 = vmatprep.subr.mxu0 0.0
  %1919 = vmatpush1.msra.mxu0 0.0
  %1920 = vmatprep.subr.mxu0 0.0
  %1921 = vmatpush1.msra.mxu0 0.0
  %1922 = vmatprep.subr.mxu0 0.0
  %1923 = vmatpush1.msra.mxu0 0.0
  %1924 = vmatprep.subr.mxu0 0.0
  %1925 = vmatpush1.msra.mxu0 0.0
  %1926 = vmatprep.subr.mxu0 0.0
  %1927 = vmatpush1.msra.mxu0 0.0
  %1928 = vmatprep.subr.mxu0 0.0
  %1929 = vmatpush1.msra.mxu0 0.0
  %1930 = vmatprep.subr.mxu0 0.0
  %1931 = vmatpush1.msra.mxu0 0.0
  %1932 = vmatprep.subr.mxu0 0.0
  %1933 = vmatpush1.msra.mxu0 0.0
  %1934 = vmatprep.subr.mxu0 0.0
  %1935 = vmatpush1.msra.mxu0 0.0
  %1936 = vmatprep.subr.mxu0 0.0
  %1937 = vmatpush1.msra.mxu0 0.0
  %1938 = vmatprep.subr.mxu0 0.0
  %1939 = vmatpush1.msra.mxu0 0.0
  %1940 = vmatprep.subr.mxu0 0.0
  %1941 = vmatpush1.msra.mxu0 0.0
  %1942 = vmatprep.subr.mxu0 0.0
  %1943 = vmatpush1.msra.mxu0 0.0
  %1944 = vmatprep.subr.mxu0 0.0
  %1945 = vmatpush1.msra.mxu0 0.0
  %1946 = vmatprep.subr.mxu0 0.0
  %1947 = vmatpush1.msra.mxu0 0.0
  %1948 = vmatprep.subr.mxu0 0.0
  %1949 = vmatpush1.msra.mxu0 0.0
  %1950 = vmatprep.subr.mxu0 0.0
  %1951 = vmatpush1.msra.mxu0 0.0
  %1952 = vmatprep.subr.mxu0 0.0
  %1953 = vmatpush1.msra.mxu0 0.0
  %1954 = vmatprep.subr.mxu0 0.0
  %1955 = vmatpush1.msra.mxu0 0.0
  %1956 = vmatprep.subr.mxu0 0.0
  %1957 = vmatpush1.msra.mxu0 0.0
  %1958 = vmatprep.subr.mxu0 0.0
  %1959 = vmatpush1.msra.mxu0 0.0
  %1960 = vmatprep.subr.mxu0 0.0
  %1961 = vmatpush1.msra.mxu0 0.0
  %1962 = vmatprep.mubr.f32.mxu0 0.0
  %1963 = vmatmul.mubr.f32.gmra.mrb[0].mxu0 %v1891
  %v1964 = vpop.f32.mrb[0].mxu0
  %v1965 = vadd.f32 0.0, %v1964
  %v1966 = vpop.f32.mrb[0].mxu0
  %1967 = vmatprep.mubr.f32.mxu0 0.0
  %1968 = vmatmul.mubr.f32.gmra.mrb[0].mxu0 %v1894
  %v1969 = vpop.f32.mrb[0].mxu0
  %v1970 = vadd.f32 0.0, %v1969
  %v1971 = vpop.f32.mrb[0].mxu0
  %1972 = vdwg.mxu0
  %v1973 = vadd.f32 %v1681, %v1965
  %v1974 = vadd.f32 %v1682, %v1970
  %1975 = vrot.lane.b32.xlu0 %v176, 104
  %v1976 = vpop.permute.xlu0 %1975
  %1977 = vrot.lane.b32.xlu0 %v177, 104
  %v1978 = vpop.permute.xlu0 %1977
  %1979 = vrot.lane.b32.xlu0 %v168, 64
  %v1980 = vpop.permute.xlu0 %1979
  %1981 = vrot.lane.b32.xlu0 %v173, 64
  %v1982 = vpop.permute.xlu0 %1981
  %v1983 = vsel %vm229, %v1976, 0
  %v1985 = vsel %vm229, %v1978, 0
  %v1987 = vsel %vm229, %v1980, 0
  %v1989 = vsel %vm229, %v1982, 0
  %1991 = vmatprep.subr.mxu0 0.0
  %1992 = vmatpush1.xpose.msra.mxu0 %v1987
  %1993 = vmatprep.subr.mxu0 0.0
  %1994 = vmatpush1.xpose.msra.mxu0 %v1989
  %1995 = vmatprep.subr.mxu0 0.0
  %1996 = vmatpush1.xpose.msra.mxu0 0.0
  %1997 = vmatprep.subr.mxu0 0.0
  %1998 = vmatpush1.xpose.msra.mxu0 0.0
  %1999 = vmatprep.subr.mxu0 0.0
  %2000 = vmatpush1.xpose.msra.mxu0 0.0
  %2001 = vmatprep.subr.mxu0 0.0
  %2002 = vmatpush1.xpose.msra.mxu0 0.0
  %2003 = vmatprep.subr.mxu0 0.0
  %2004 = vmatpush1.xpose.msra.mxu0 0.0
  %2005 = vmatprep.subr.mxu0 0.0
  %2006 = vmatpush1.xpose.msra.mxu0 0.0
  %2007 = vmatprep.subr.mxu0 0.0
  %2008 = vmatpush1.xpose.msra.mxu0 0.0
  %2009 = vmatprep.subr.mxu0 0.0
  %2010 = vmatpush1.xpose.msra.mxu0 0.0
  %2011 = vmatprep.subr.mxu0 0.0
  %2012 = vmatpush1.xpose.msra.mxu0 0.0
  %2013 = vmatprep.subr.mxu0 0.0
  %2014 = vmatpush1.xpose.msra.mxu0 0.0
  %2015 = vmatprep.subr.mxu0 0.0
  %2016 = vmatpush1.xpose.msra.mxu0 0.0
  %2017 = vmatprep.subr.mxu0 0.0
  %2018 = vmatpush1.xpose.msra.mxu0 0.0
  %2019 = vmatprep.subr.mxu0 0.0
  %2020 = vmatpush1.xpose.msra.mxu0 0.0
  %2021 = vmatprep.subr.mxu0 0.0
  %2022 = vmatpush1.xpose.msra.mxu0 0.0
  %2023 = vmatprep.subr.mxu0 0.0
  %2024 = vmatpush1.xpose.msra.mxu0 0.0
  %2025 = vmatprep.subr.mxu0 0.0
  %2026 = vmatpush1.xpose.msra.mxu0 0.0
  %2027 = vmatprep.subr.mxu0 0.0
  %2028 = vmatpush1.xpose.msra.mxu0 0.0
  %2029 = vmatprep.subr.mxu0 0.0
  %2030 = vmatpush1.xpose.msra.mxu0 0.0
  %2031 = vmatprep.subr.mxu0 0.0
  %2032 = vmatpush1.xpose.msra.mxu0 0.0
  %2033 = vmatprep.subr.mxu0 0.0
  %2034 = vmatpush1.xpose.msra.mxu0 0.0
  %2035 = vmatprep.subr.mxu0 0.0
  %2036 = vmatpush1.xpose.msra.mxu0 0.0
  %2037 = vmatprep.subr.mxu0 0.0
  %2038 = vmatpush1.xpose.msra.mxu0 0.0
  %2039 = vmatprep.subr.mxu0 0.0
  %2040 = vmatpush1.xpose.msra.mxu0 0.0
  %2041 = vmatprep.subr.mxu0 0.0
  %2042 = vmatpush1.xpose.msra.mxu0 0.0
  %2043 = vmatprep.subr.mxu0 0.0
  %2044 = vmatpush1.xpose.msra.mxu0 0.0
  %2045 = vmatprep.subr.mxu0 0.0
  %2046 = vmatpush1.xpose.msra.mxu0 0.0
  %2047 = vmatprep.subr.mxu0 0.0
  %2048 = vmatpush1.xpose.msra.mxu0 0.0
  %2049 = vmatprep.subr.mxu0 0.0
  %2050 = vmatpush1.xpose.msra.mxu0 0.0
  %2051 = vmatprep.subr.mxu0 0.0
  %2052 = vmatpush1.xpose.msra.mxu0 0.0
  %2053 = vmatprep.subr.mxu0 0.0
  %2054 = vmatpush1.xpose.msra.mxu0 0.0
  %2055 = vmatprep.mubr.f32.mxu0 0.0
  %2056 = vmatmul.mubr.f32.gmra.mrb[0].mxu0 %v1983
  %v2057 = vpop.f32.mrb[0].mxu0
  %v2058 = vadd.f32 %v221, %v2057
  %v2059 = vpop.f32.mrb[0].mxu0
  %2060 = vmatprep.mubr.f32.mxu0 0.0
  %2061 = vmatmul.mubr.f32.gmra.mrb[0].mxu0 %v1985
  %v2062 = vpop.f32.mrb[0].mxu0
  %v2063 = vadd.f32 %v222, %v2062
  %v2064 = vpop.f32.mrb[0].mxu0
  %2065 = vdwg.mxu0
  %v2066 = vsel %vm315, %v2058, -inf
  %2067 = vmax.xlane.f32.xlu0 %v2066
  %v2068 = vpop.xlane.xlu0 %2067
  %v2069 = vsel %vm315, %v2063, -inf
  %2070 = vmax.xlane.f32.xlu0 %v2069
  %v2071 = vpop.xlane.xlu0 %2070
  %v2072 = vsub.f32 %v2058, %v2068
  %v2073 = vsub.f32 %v2063, %v2071
  %v2074 = vmul.f32 %v2072, 1.442695
  %v2075 = vpow.pop %v2074
  %v2076 = vmul.f32 %v2073, 1.442695
  %v2077 = vpow.pop %v2076
  %v2078 = vsel %vm315, %v2075, 0.0
  %2079 = vadd.xlane.f32.xlu0 %v2078
  %v2080 = vpop.xlane.xlu0 %2079
  %v2081 = vsel %vm315, %v2077, 0.0
  %2082 = vadd.xlane.f32.xlu0 %v2081
  %v2083 = vpop.xlane.xlu0 %2082
  %2084 = vrot.lane.b32.xlu0 %v168, 24
  %v2085 = vpop.permute.xlu0 %2084
  %2086 = vrot.lane.b32.xlu0 %v173, 24
  %v2087 = vpop.permute.xlu0 %2086
  %v2091 = vsel %vm315, %v2075, 0
  %v2094 = vsel %vm315, %v2077, 0
  %2096 = vmatprep.subr.mxu0 0.0
  %2097 = vmatpush1.msra.mxu0 %v2085
  %2098 = vmatprep.subr.mxu0 0.0
  %2099 = vmatpush1.msra.mxu0 %v2087
  %2100 = vmatprep.subr.mxu0 0.0
  %2101 = vmatpush1.msra.mxu0 0.0
  %2102 = vmatprep.subr.mxu0 0.0
  %2103 = vmatpush1.msra.mxu0 0.0
  %2104 = vmatprep.subr.mxu0 0.0
  %2105 = vmatpush1.msra.mxu0 0.0
  %2106 = vmatprep.subr.mxu0 0.0
  %2107 = vmatpush1.msra.mxu0 0.0
  %2108 = vmatprep.subr.mxu0 0.0
  %2109 = vmatpush1.msra.mxu0 0.0
  %2110 = vmatprep.subr.mxu0 0.0
  %2111 = vmatpush1.msra.mxu0 0.0
  %2112 = vmatprep.subr.mxu0 0.0
  %2113 = vmatpush1.msra.mxu0 0.0
  %2114 = vmatprep.subr.mxu0 0.0
  %2115 = vmatpush1.msra.mxu0 0.0
  %2116 = vmatprep.subr.mxu0 0.0
  %2117 = vmatpush1.msra.mxu0 0.0
  %2118 = vmatprep.subr.mxu0 0.0
  %2119 = vmatpush1.msra.mxu0 0.0
  %2120 = vmatprep.subr.mxu0 0.0
  %2121 = vmatpush1.msra.mxu0 0.0
  %2122 = vmatprep.subr.mxu0 0.0
  %2123 = vmatpush1.msra.mxu0 0.0
  %2124 = vmatprep.subr.mxu0 0.0
  %2125 = vmatpush1.msra.mxu0 0.0
  %2126 = vmatprep.subr.mxu0 0.0
  %2127 = vmatpush1.msra.mxu0 0.0
  %2128 = vmatprep.subr.mxu0 0.0
  %2129 = vmatpush1.msra.mxu0 0.0
  %2130 = vmatprep.subr.mxu0 0.0
  %2131 = vmatpush1.msra.mxu0 0.0
  %2132 = vmatprep.subr.mxu0 0.0
  %2133 = vmatpush1.msra.mxu0 0.0
  %2134 = vmatprep.subr.mxu0 0.0
  %2135 = vmatpush1.msra.mxu0 0.0
  %2136 = vmatprep.subr.mxu0 0.0
  %2137 = vmatpush1.msra.mxu0 0.0
  %2138 = vmatprep.subr.mxu0 0.0
  %2139 = vmatpush1.msra.mxu0 0.0
  %2140 = vmatprep.subr.mxu0 0.0
  %2141 = vmatpush1.msra.mxu0 0.0
  %2142 = vmatprep.subr.mxu0 0.0
  %2143 = vmatpush1.msra.mxu0 0.0
  %2144 = vmatprep.subr.mxu0 0.0
  %2145 = vmatpush1.msra.mxu0 0.0
  %2146 = vmatprep.subr.mxu0 0.0
  %2147 = vmatpush1.msra.mxu0 0.0
  %2148 = vmatprep.subr.mxu0 0.0
  %2149 = vmatpush1.msra.mxu0 0.0
  %2150 = vmatprep.subr.mxu0 0.0
  %2151 = vmatpush1.msra.mxu0 0.0
  %2152 = vmatprep.subr.mxu0 0.0
  %2153 = vmatpush1.msra.mxu0 0.0
  %2154 = vmatprep.subr.mxu0 0.0
  %2155 = vmatpush1.msra.mxu0 0.0
  %2156 = vmatprep.subr.mxu0 0.0
  %2157 = vmatpush1.msra.mxu0 0.0
  %2158 = vmatprep.subr.mxu0 0.0
  %2159 = vmatpush1.msra.mxu0 0.0
  %2160 = vmatprep.mubr.f32.mxu0 0.0
  %2161 = vmatmul.mubr.f32.gmra.mrb[0].mxu0 %v2091
  %v2162 = vpop.f32.mrb[0].mxu0
  %v2163 = vadd.f32 0.0, %v2162
  %v2164 = vpop.f32.mrb[0].mxu0
  %2165 = vmatprep.mubr.f32.mxu0 0.0
  %2166 = vmatmul.mubr.f32.gmra.mrb[0].mxu0 %v2094
  %v2167 = vpop.f32.mrb[0].mxu0
  %v2168 = vadd.f32 0.0, %v2167
  %v2169 = vpop.f32.mrb[0].mxu0
  %2170 = vdwg.mxu0
  %v2171 = vrcp.pop %v2080
  %v2172 = vmul.f32 %v2163, %v2171
  %v2173 = vrcp.pop %v2083
  %v2174 = vmul.f32 %v2168, %v2173
  %2177 = vrot.lane.b32.xlu0 %v20, 8
  %v2178 = vpop.permute.xlu0 %2177
  %2179 = vrot.lane.b32.xlu0 %v25, 8
  %v2180 = vpop.permute.xlu0 %2179
  %v2181 = vsel %vm633, %v2178, %v2180
  %v2183 = vsel %vm229, %v2172, 0
  %v2186 = vsel %vm229, %v2174, 0
  %v2188 = vsel %vm641, %v2181, 0
  %2190 = vmatprep.subr.mxu0 0.0
  %2191 = vmatpush1.msra.mxu0 %v2188
  %2192 = vmatprep.subr.mxu0 0.0
  %2193 = vmatpush1.msra.mxu0 0.0
  %2194 = vmatprep.subr.mxu0 0.0
  %2195 = vmatpush1.msra.mxu0 0.0
  %2196 = vmatprep.subr.mxu0 0.0
  %2197 = vmatpush1.msra.mxu0 0.0
  %2198 = vmatprep.subr.mxu0 0.0
  %2199 = vmatpush1.msra.mxu0 0.0
  %2200 = vmatprep.subr.mxu0 0.0
  %2201 = vmatpush1.msra.mxu0 0.0
  %2202 = vmatprep.subr.mxu0 0.0
  %2203 = vmatpush1.msra.mxu0 0.0
  %2204 = vmatprep.subr.mxu0 0.0
  %2205 = vmatpush1.msra.mxu0 0.0
  %2206 = vmatprep.subr.mxu0 0.0
  %2207 = vmatpush1.msra.mxu0 0.0
  %2208 = vmatprep.subr.mxu0 0.0
  %2209 = vmatpush1.msra.mxu0 0.0
  %2210 = vmatprep.subr.mxu0 0.0
  %2211 = vmatpush1.msra.mxu0 0.0
  %2212 = vmatprep.subr.mxu0 0.0
  %2213 = vmatpush1.msra.mxu0 0.0
  %2214 = vmatprep.subr.mxu0 0.0
  %2215 = vmatpush1.msra.mxu0 0.0
  %2216 = vmatprep.subr.mxu0 0.0
  %2217 = vmatpush1.msra.mxu0 0.0
  %2218 = vmatprep.subr.mxu0 0.0
  %2219 = vmatpush1.msra.mxu0 0.0
  %2220 = vmatprep.subr.mxu0 0.0
  %2221 = vmatpush1.msra.mxu0 0.0
  %2222 = vmatprep.subr.mxu0 0.0
  %2223 = vmatpush1.msra.mxu0 0.0
  %2224 = vmatprep.subr.mxu0 0.0
  %2225 = vmatpush1.msra.mxu0 0.0
  %2226 = vmatprep.subr.mxu0 0.0
  %2227 = vmatpush1.msra.mxu0 0.0
  %2228 = vmatprep.subr.mxu0 0.0
  %2229 = vmatpush1.msra.mxu0 0.0
  %2230 = vmatprep.subr.mxu0 0.0
  %2231 = vmatpush1.msra.mxu0 0.0
  %2232 = vmatprep.subr.mxu0 0.0
  %2233 = vmatpush1.msra.mxu0 0.0
  %2234 = vmatprep.subr.mxu0 0.0
  %2235 = vmatpush1.msra.mxu0 0.0
  %2236 = vmatprep.subr.mxu0 0.0
  %2237 = vmatpush1.msra.mxu0 0.0
  %2238 = vmatprep.subr.mxu0 0.0
  %2239 = vmatpush1.msra.mxu0 0.0
  %2240 = vmatprep.subr.mxu0 0.0
  %2241 = vmatpush1.msra.mxu0 0.0
  %2242 = vmatprep.subr.mxu0 0.0
  %2243 = vmatpush1.msra.mxu0 0.0
  %2244 = vmatprep.subr.mxu0 0.0
  %2245 = vmatpush1.msra.mxu0 0.0
  %2246 = vmatprep.subr.mxu0 0.0
  %2247 = vmatpush1.msra.mxu0 0.0
  %2248 = vmatprep.subr.mxu0 0.0
  %2249 = vmatpush1.msra.mxu0 0.0
  %2250 = vmatprep.subr.mxu0 0.0
  %2251 = vmatpush1.msra.mxu0 0.0
  %2252 = vmatprep.subr.mxu0 0.0
  %2253 = vmatpush1.msra.mxu0 0.0
  %2254 = vmatprep.mubr.f32.mxu0 0.0
  %2255 = vmatmul.mubr.f32.gmra.mrb[0].mxu0 %v2183
  %v2256 = vpop.f32.mrb[0].mxu0
  %v2257 = vadd.f32 0.0, %v2256
  %v2258 = vpop.f32.mrb[0].mxu0
  %2259 = vmatprep.mubr.f32.mxu0 0.0
  %2260 = vmatmul.mubr.f32.gmra.mrb[0].mxu0 %v2186
  %v2261 = vpop.f32.mrb[0].mxu0
  %v2262 = vadd.f32 0.0, %v2261
  %v2263 = vpop.f32.mrb[0].mxu0
  %2264 = vdwg.mxu0
  %v2265 = vadd.f32 %v1973, %v2257
  %v2266 = vadd.f32 %v1974, %v2262
  %2267 = vrot.lane.b32.xlu0 %v176, 100
  %v2268 = vpop.permute.xlu0 %2267
  %2269 = vrot.lane.b32.xlu0 %v177, 100
  %v2270 = vpop.permute.xlu0 %2269
  %2271 = vrot.lane.b32.xlu0 %v168, 60
  %v2272 = vpop.permute.xlu0 %2271
  %2273 = vrot.lane.b32.xlu0 %v173, 60
  %v2274 = vpop.permute.xlu0 %2273
  %v2275 = vsel %vm229, %v2268, 0
  %v2277 = vsel %vm229, %v2270, 0
  %v2279 = vsel %vm229, %v2272, 0
  %v2281 = vsel %vm229, %v2274, 0
  %2283 = vmatprep.subr.mxu0 0.0
  %2284 = vmatpush1.xpose.msra.mxu0 %v2279
  %2285 = vmatprep.subr.mxu0 0.0
  %2286 = vmatpush1.xpose.msra.mxu0 %v2281
  %2287 = vmatprep.subr.mxu0 0.0
  %2288 = vmatpush1.xpose.msra.mxu0 0.0
  %2289 = vmatprep.subr.mxu0 0.0
  %2290 = vmatpush1.xpose.msra.mxu0 0.0
  %2291 = vmatprep.subr.mxu0 0.0
  %2292 = vmatpush1.xpose.msra.mxu0 0.0
  %2293 = vmatprep.subr.mxu0 0.0
  %2294 = vmatpush1.xpose.msra.mxu0 0.0
  %2295 = vmatprep.subr.mxu0 0.0
  %2296 = vmatpush1.xpose.msra.mxu0 0.0
  %2297 = vmatprep.subr.mxu0 0.0
  %2298 = vmatpush1.xpose.msra.mxu0 0.0
  %2299 = vmatprep.subr.mxu0 0.0
  %2300 = vmatpush1.xpose.msra.mxu0 0.0
  %2301 = vmatprep.subr.mxu0 0.0
  %2302 = vmatpush1.xpose.msra.mxu0 0.0
  %2303 = vmatprep.subr.mxu0 0.0
  %2304 = vmatpush1.xpose.msra.mxu0 0.0
  %2305 = vmatprep.subr.mxu0 0.0
  %2306 = vmatpush1.xpose.msra.mxu0 0.0
  %2307 = vmatprep.subr.mxu0 0.0
  %2308 = vmatpush1.xpose.msra.mxu0 0.0
  %2309 = vmatprep.subr.mxu0 0.0
  %2310 = vmatpush1.xpose.msra.mxu0 0.0
  %2311 = vmatprep.subr.mxu0 0.0
  %2312 = vmatpush1.xpose.msra.mxu0 0.0
  %2313 = vmatprep.subr.mxu0 0.0
  %2314 = vmatpush1.xpose.msra.mxu0 0.0
  %2315 = vmatprep.subr.mxu0 0.0
  %2316 = vmatpush1.xpose.msra.mxu0 0.0
  %2317 = vmatprep.subr.mxu0 0.0
  %2318 = vmatpush1.xpose.msra.mxu0 0.0
  %2319 = vmatprep.subr.mxu0 0.0
  %2320 = vmatpush1.xpose.msra.mxu0 0.0
  %2321 = vmatprep.subr.mxu0 0.0
  %2322 = vmatpush1.xpose.msra.mxu0 0.0
  %2323 = vmatprep.subr.mxu0 0.0
  %2324 = vmatpush1.xpose.msra.mxu0 0.0
  %2325 = vmatprep.subr.mxu0 0.0
  %2326 = vmatpush1.xpose.msra.mxu0 0.0
  %2327 = vmatprep.subr.mxu0 0.0
  %2328 = vmatpush1.xpose.msra.mxu0 0.0
  %2329 = vmatprep.subr.mxu0 0.0
  %2330 = vmatpush1.xpose.msra.mxu0 0.0
  %2331 = vmatprep.subr.mxu0 0.0
  %2332 = vmatpush1.xpose.msra.mxu0 0.0
  %2333 = vmatprep.subr.mxu0 0.0
  %2334 = vmatpush1.xpose.msra.mxu0 0.0
  %2335 = vmatprep.subr.mxu0 0.0
  %2336 = vmatpush1.xpose.msra.mxu0 0.0
  %2337 = vmatprep.subr.mxu0 0.0
  %2338 = vmatpush1.xpose.msra.mxu0 0.0
  %2339 = vmatprep.subr.mxu0 0.0
  %2340 = vmatpush1.xpose.msra.mxu0 0.0
  %2341 = vmatprep.subr.mxu0 0.0
  %2342 = vmatpush1.xpose.msra.mxu0 0.0
  %2343 = vmatprep.subr.mxu0 0.0
  %2344 = vmatpush1.xpose.msra.mxu0 0.0
  %2345 = vmatprep.subr.mxu0 0.0
  %2346 = vmatpush1.xpose.msra.mxu0 0.0
  %2347 = vmatprep.mubr.f32.mxu0 0.0
  %2348 = vmatmul.mubr.f32.gmra.mrb[0].mxu0 %v2275
  %v2349 = vpop.f32.mrb[0].mxu0
  %v2350 = vadd.f32 %v221, %v2349
  %v2351 = vpop.f32.mrb[0].mxu0
  %2352 = vmatprep.mubr.f32.mxu0 0.0
  %2353 = vmatmul.mubr.f32.gmra.mrb[0].mxu0 %v2277
  %v2354 = vpop.f32.mrb[0].mxu0
  %v2355 = vadd.f32 %v222, %v2354
  %v2356 = vpop.f32.mrb[0].mxu0
  %2357 = vdwg.mxu0
  %v2358 = vsel %vm315, %v2350, -inf
  %2359 = vmax.xlane.f32.xlu0 %v2358
  %v2360 = vpop.xlane.xlu0 %2359
  %v2361 = vsel %vm315, %v2355, -inf
  %2362 = vmax.xlane.f32.xlu0 %v2361
  %v2363 = vpop.xlane.xlu0 %2362
  %v2364 = vsub.f32 %v2350, %v2360
  %v2365 = vsub.f32 %v2355, %v2363
  %v2366 = vmul.f32 %v2364, 1.442695
  %v2367 = vpow.pop %v2366
  %v2368 = vmul.f32 %v2365, 1.442695
  %v2369 = vpow.pop %v2368
  %v2370 = vsel %vm315, %v2367, 0.0
  %2371 = vadd.xlane.f32.xlu0 %v2370
  %v2372 = vpop.xlane.xlu0 %2371
  %v2373 = vsel %vm315, %v2369, 0.0
  %2374 = vadd.xlane.f32.xlu0 %v2373
  %v2375 = vpop.xlane.xlu0 %2374
  %2376 = vrot.lane.b32.xlu0 %v168, 20
  %v2377 = vpop.permute.xlu0 %2376
  %2378 = vrot.lane.b32.xlu0 %v173, 20
  %v2379 = vpop.permute.xlu0 %2378
  %v2383 = vsel %vm315, %v2367, 0
  %v2386 = vsel %vm315, %v2369, 0
  %2388 = vmatprep.subr.mxu0 0.0
  %2389 = vmatpush1.msra.mxu0 %v2377
  %2390 = vmatprep.subr.mxu0 0.0
  %2391 = vmatpush1.msra.mxu0 %v2379
  %2392 = vmatprep.subr.mxu0 0.0
  %2393 = vmatpush1.msra.mxu0 0.0
  %2394 = vmatprep.subr.mxu0 0.0
  %2395 = vmatpush1.msra.mxu0 0.0
  %2396 = vmatprep.subr.mxu0 0.0
  %2397 = vmatpush1.msra.mxu0 0.0
  %2398 = vmatprep.subr.mxu0 0.0
  %2399 = vmatpush1.msra.mxu0 0.0
  %2400 = vmatprep.subr.mxu0 0.0
  %2401 = vmatpush1.msra.mxu0 0.0
  %2402 = vmatprep.subr.mxu0 0.0
  %2403 = vmatpush1.msra.mxu0 0.0
  %2404 = vmatprep.subr.mxu0 0.0
  %2405 = vmatpush1.msra.mxu0 0.0
  %2406 = vmatprep.subr.mxu0 0.0
  %2407 = vmatpush1.msra.mxu0 0.0
  %2408 = vmatprep.subr.mxu0 0.0
  %2409 = vmatpush1.msra.mxu0 0.0
  %2410 = vmatprep.subr.mxu0 0.0
  %2411 = vmatpush1.msra.mxu0 0.0
  %2412 = vmatprep.subr.mxu0 0.0
  %2413 = vmatpush1.msra.mxu0 0.0
  %2414 = vmatprep.subr.mxu0 0.0
  %2415 = vmatpush1.msra.mxu0 0.0
  %2416 = vmatprep.subr.mxu0 0.0
  %2417 = vmatpush1.msra.mxu0 0.0
  %2418 = vmatprep.subr.mxu0 0.0
  %2419 = vmatpush1.msra.mxu0 0.0
  %2420 = vmatprep.subr.mxu0 0.0
  %2421 = vmatpush1.msra.mxu0 0.0
  %2422 = vmatprep.subr.mxu0 0.0
  %2423 = vmatpush1.msra.mxu0 0.0
  %2424 = vmatprep.subr.mxu0 0.0
  %2425 = vmatpush1.msra.mxu0 0.0
  %2426 = vmatprep.subr.mxu0 0.0
  %2427 = vmatpush1.msra.mxu0 0.0
  %2428 = vmatprep.subr.mxu0 0.0
  %2429 = vmatpush1.msra.mxu0 0.0
  %2430 = vmatprep.subr.mxu0 0.0
  %2431 = vmatpush1.msra.mxu0 0.0
  %2432 = vmatprep.subr.mxu0 0.0
  %2433 = vmatpush1.msra.mxu0 0.0
  %2434 = vmatprep.subr.mxu0 0.0
  %2435 = vmatpush1.msra.mxu0 0.0
  %2436 = vmatprep.subr.mxu0 0.0
  %2437 = vmatpush1.msra.mxu0 0.0
  %2438 = vmatprep.subr.mxu0 0.0
  %2439 = vmatpush1.msra.mxu0 0.0
  %2440 = vmatprep.subr.mxu0 0.0
  %2441 = vmatpush1.msra.mxu0 0.0
  %2442 = vmatprep.subr.mxu0 0.0
  %2443 = vmatpush1.msra.mxu0 0.0
  %2444 = vmatprep.subr.mxu0 0.0
  %2445 = vmatpush1.msra.mxu0 0.0
  %2446 = vmatprep.subr.mxu0 0.0
  %2447 = vmatpush1.msra.mxu0 0.0
  %2448 = vmatprep.subr.mxu0 0.0
  %2449 = vmatpush1.msra.mxu0 0.0
  %2450 = vmatprep.subr.mxu0 0.0
  %2451 = vmatpush1.msra.mxu0 0.0
  %2452 = vmatprep.mubr.f32.mxu0 0.0
  %2453 = vmatmul.mubr.f32.gmra.mrb[0].mxu0 %v2383
  %v2454 = vpop.f32.mrb[0].mxu0
  %v2455 = vadd.f32 0.0, %v2454
  %v2456 = vpop.f32.mrb[0].mxu0
  %2457 = vmatprep.mubr.f32.mxu0 0.0
  %2458 = vmatmul.mubr.f32.gmra.mrb[0].mxu0 %v2386
  %v2459 = vpop.f32.mrb[0].mxu0
  %v2460 = vadd.f32 0.0, %v2459
  %v2461 = vpop.f32.mrb[0].mxu0
  %2462 = vdwg.mxu0
  %v2463 = vrcp.pop %v2372
  %v2464 = vmul.f32 %v2455, %v2463
  %v2465 = vrcp.pop %v2375
  %v2466 = vmul.f32 %v2460, %v2465
  %v2467 = vrot.slane %v20, 4
  %v2468 = vrot.slane %v25, 4
  %2469 = vrot.lane.b32.xlu0 %v2467, 8
  %v2470 = vpop.permute.xlu0 %2469
  %2471 = vrot.lane.b32.xlu0 %v2468, 8
  %v2472 = vpop.permute.xlu0 %2471
  %v2473 = vsel %vm633, %v2470, %v2472
  %v2475 = vsel %vm229, %v2464, 0
  %v2478 = vsel %vm229, %v2466, 0
  %v2480 = vsel %vm641, %v2473, 0
  %2482 = vmatprep.subr.mxu0 0.0
  %2483 = vmatpush1.msra.mxu0 %v2480
  %2484 = vmatprep.subr.mxu0 0.0
  %2485 = vmatpush1.msra.mxu0 0.0
  %2486 = vmatprep.subr.mxu0 0.0
  %2487 = vmatpush1.msra.mxu0 0.0
  %2488 = vmatprep.subr.mxu0 0.0
  %2489 = vmatpush1.msra.mxu0 0.0
  %2490 = vmatprep.subr.mxu0 0.0
  %2491 = vmatpush1.msra.mxu0 0.0
  %2492 = vmatprep.subr.mxu0 0.0
  %2493 = vmatpush1.msra.mxu0 0.0
  %2494 = vmatprep.subr.mxu0 0.0
  %2495 = vmatpush1.msra.mxu0 0.0
  %2496 = vmatprep.subr.mxu0 0.0
  %2497 = vmatpush1.msra.mxu0 0.0
  %2498 = vmatprep.subr.mxu0 0.0
  %2499 = vmatpush1.msra.mxu0 0.0
  %2500 = vmatprep.subr.mxu0 0.0
  %2501 = vmatpush1.msra.mxu0 0.0
  %2502 = vmatprep.subr.mxu0 0.0
  %2503 = vmatpush1.msra.mxu0 0.0
  %2504 = vmatprep.subr.mxu0 0.0
  %2505 = vmatpush1.msra.mxu0 0.0
  %2506 = vmatprep.subr.mxu0 0.0
  %2507 = vmatpush1.msra.mxu0 0.0
  %2508 = vmatprep.subr.mxu0 0.0
  %2509 = vmatpush1.msra.mxu0 0.0
  %2510 = vmatprep.subr.mxu0 0.0
  %2511 = vmatpush1.msra.mxu0 0.0
  %2512 = vmatprep.subr.mxu0 0.0
  %2513 = vmatpush1.msra.mxu0 0.0
  %2514 = vmatprep.subr.mxu0 0.0
  %2515 = vmatpush1.msra.mxu0 0.0
  %2516 = vmatprep.subr.mxu0 0.0
  %2517 = vmatpush1.msra.mxu0 0.0
  %2518 = vmatprep.subr.mxu0 0.0
  %2519 = vmatpush1.msra.mxu0 0.0
  %2520 = vmatprep.subr.mxu0 0.0
  %2521 = vmatpush1.msra.mxu0 0.0
  %2522 = vmatprep.subr.mxu0 0.0
  %2523 = vmatpush1.msra.mxu0 0.0
  %2524 = vmatprep.subr.mxu0 0.0
  %2525 = vmatpush1.msra.mxu0 0.0
  %2526 = vmatprep.subr.mxu0 0.0
  %2527 = vmatpush1.msra.mxu0 0.0
  %2528 = vmatprep.subr.mxu0 0.0
  %2529 = vmatpush1.msra.mxu0 0.0
  %2530 = vmatprep.subr.mxu0 0.0
  %2531 = vmatpush1.msra.mxu0 0.0
  %2532 = vmatprep.subr.mxu0 0.0
  %2533 = vmatpush1.msra.mxu0 0.0
  %2534 = vmatprep.subr.mxu0 0.0
  %2535 = vmatpush1.msra.mxu0 0.0
  %2536 = vmatprep.subr.mxu0 0.0
  %2537 = vmatpush1.msra.mxu0 0.0
  %2538 = vmatprep.subr.mxu0 0.0
  %2539 = vmatpush1.msra.mxu0 0.0
  %2540 = vmatprep.subr.mxu0 0.0
  %2541 = vmatpush1.msra.mxu0 0.0
  %2542 = vmatprep.subr.mxu0 0.0
  %2543 = vmatpush1.msra.mxu0 0.0
  %2544 = vmatprep.subr.mxu0 0.0
  %2545 = vmatpush1.msra.mxu0 0.0
  %2546 = vmatprep.mubr.f32.mxu0 0.0
  %2547 = vmatmul.mubr.f32.gmra.mrb[0].mxu0 %v2475
  %v2548 = vpop.f32.mrb[0].mxu0
  %v2549 = vadd.f32 0.0, %v2548
  %v2550 = vpop.f32.mrb[0].mxu0
  %2551 = vmatprep.mubr.f32.mxu0 0.0
  %2552 = vmatmul.mubr.f32.gmra.mrb[0].mxu0 %v2478
  %v2553 = vpop.f32.mrb[0].mxu0
  %v2554 = vadd.f32 0.0, %v2553
  %v2555 = vpop.f32.mrb[0].mxu0
  %2556 = vdwg.mxu0
  %v2557 = vadd.f32 %v2265, %v2549
  %v2558 = vadd.f32 %v2266, %v2554
  %2559 = vrot.lane.b32.xlu0 %v176, 96
  %v2560 = vpop.permute.xlu0 %2559
  %2561 = vrot.lane.b32.xlu0 %v177, 96
  %v2562 = vpop.permute.xlu0 %2561
  %2563 = vrot.lane.b32.xlu0 %v168, 56
  %v2564 = vpop.permute.xlu0 %2563
  %2565 = vrot.lane.b32.xlu0 %v173, 56
  %v2566 = vpop.permute.xlu0 %2565
  %v2567 = vsel %vm229, %v2560, 0
  %v2569 = vsel %vm229, %v2562, 0
  %v2571 = vsel %vm229, %v2564, 0
  %v2573 = vsel %vm229, %v2566, 0
  %2575 = vmatprep.subr.mxu0 0.0
  %2576 = vmatpush1.xpose.msra.mxu0 %v2571
  %2577 = vmatprep.subr.mxu0 0.0
  %2578 = vmatpush1.xpose.msra.mxu0 %v2573
  %2579 = vmatprep.subr.mxu0 0.0
  %2580 = vmatpush1.xpose.msra.mxu0 0.0
  %2581 = vmatprep.subr.mxu0 0.0
  %2582 = vmatpush1.xpose.msra.mxu0 0.0
  %2583 = vmatprep.subr.mxu0 0.0
  %2584 = vmatpush1.xpose.msra.mxu0 0.0
  %2585 = vmatprep.subr.mxu0 0.0
  %2586 = vmatpush1.xpose.msra.mxu0 0.0
  %2587 = vmatprep.subr.mxu0 0.0
  %2588 = vmatpush1.xpose.msra.mxu0 0.0
  %2589 = vmatprep.subr.mxu0 0.0
  %2590 = vmatpush1.xpose.msra.mxu0 0.0
  %2591 = vmatprep.subr.mxu0 0.0
  %2592 = vmatpush1.xpose.msra.mxu0 0.0
  %2593 = vmatprep.subr.mxu0 0.0
  %2594 = vmatpush1.xpose.msra.mxu0 0.0
  %2595 = vmatprep.subr.mxu0 0.0
  %2596 = vmatpush1.xpose.msra.mxu0 0.0
  %2597 = vmatprep.subr.mxu0 0.0
  %2598 = vmatpush1.xpose.msra.mxu0 0.0
  %2599 = vmatprep.subr.mxu0 0.0
  %2600 = vmatpush1.xpose.msra.mxu0 0.0
  %2601 = vmatprep.subr.mxu0 0.0
  %2602 = vmatpush1.xpose.msra.mxu0 0.0
  %2603 = vmatprep.subr.mxu0 0.0
  %2604 = vmatpush1.xpose.msra.mxu0 0.0
  %2605 = vmatprep.subr.mxu0 0.0
  %2606 = vmatpush1.xpose.msra.mxu0 0.0
  %2607 = vmatprep.subr.mxu0 0.0
  %2608 = vmatpush1.xpose.msra.mxu0 0.0
  %2609 = vmatprep.subr.mxu0 0.0
  %2610 = vmatpush1.xpose.msra.mxu0 0.0
  %2611 = vmatprep.subr.mxu0 0.0
  %2612 = vmatpush1.xpose.msra.mxu0 0.0
  %2613 = vmatprep.subr.mxu0 0.0
  %2614 = vmatpush1.xpose.msra.mxu0 0.0
  %2615 = vmatprep.subr.mxu0 0.0
  %2616 = vmatpush1.xpose.msra.mxu0 0.0
  %2617 = vmatprep.subr.mxu0 0.0
  %2618 = vmatpush1.xpose.msra.mxu0 0.0
  %2619 = vmatprep.subr.mxu0 0.0
  %2620 = vmatpush1.xpose.msra.mxu0 0.0
  %2621 = vmatprep.subr.mxu0 0.0
  %2622 = vmatpush1.xpose.msra.mxu0 0.0
  %2623 = vmatprep.subr.mxu0 0.0
  %2624 = vmatpush1.xpose.msra.mxu0 0.0
  %2625 = vmatprep.subr.mxu0 0.0
  %2626 = vmatpush1.xpose.msra.mxu0 0.0
  %2627 = vmatprep.subr.mxu0 0.0
  %2628 = vmatpush1.xpose.msra.mxu0 0.0
  %2629 = vmatprep.subr.mxu0 0.0
  %2630 = vmatpush1.xpose.msra.mxu0 0.0
  %2631 = vmatprep.subr.mxu0 0.0
  %2632 = vmatpush1.xpose.msra.mxu0 0.0
  %2633 = vmatprep.subr.mxu0 0.0
  %2634 = vmatpush1.xpose.msra.mxu0 0.0
  %2635 = vmatprep.subr.mxu0 0.0
  %2636 = vmatpush1.xpose.msra.mxu0 0.0
  %2637 = vmatprep.subr.mxu0 0.0
  %2638 = vmatpush1.xpose.msra.mxu0 0.0
  %2639 = vmatprep.mubr.f32.mxu0 0.0
  %2640 = vmatmul.mubr.f32.gmra.mrb[0].mxu0 %v2567
  %v2641 = vpop.f32.mrb[0].mxu0
  %v2642 = vadd.f32 %v221, %v2641
  %v2643 = vpop.f32.mrb[0].mxu0
  %2644 = vmatprep.mubr.f32.mxu0 0.0
  %2645 = vmatmul.mubr.f32.gmra.mrb[0].mxu0 %v2569
  %v2646 = vpop.f32.mrb[0].mxu0
  %v2647 = vadd.f32 %v222, %v2646
  %v2648 = vpop.f32.mrb[0].mxu0
  %2649 = vdwg.mxu0
  %v2650 = vsel %vm315, %v2642, -inf
  %2651 = vmax.xlane.f32.xlu0 %v2650
  %v2652 = vpop.xlane.xlu0 %2651
  %v2653 = vsel %vm315, %v2647, -inf
  %2654 = vmax.xlane.f32.xlu0 %v2653
  %v2655 = vpop.xlane.xlu0 %2654
  %v2656 = vsub.f32 %v2642, %v2652
  %v2657 = vsub.f32 %v2647, %v2655
  %v2658 = vmul.f32 %v2656, 1.442695
  %v2659 = vpow.pop %v2658
  %v2660 = vmul.f32 %v2657, 1.442695
  %v2661 = vpow.pop %v2660
  %v2662 = vsel %vm315, %v2659, 0.0
  %2663 = vadd.xlane.f32.xlu0 %v2662
  %v2664 = vpop.xlane.xlu0 %2663
  %v2665 = vsel %vm315, %v2661, 0.0
  %2666 = vadd.xlane.f32.xlu0 %v2665
  %v2667 = vpop.xlane.xlu0 %2666
  %2668 = vrot.lane.b32.xlu0 %v168, 16
  %v2669 = vpop.permute.xlu0 %2668
  %2670 = vrot.lane.b32.xlu0 %v173, 16
  %v2671 = vpop.permute.xlu0 %2670
  %v2675 = vsel %vm315, %v2659, 0
  %v2678 = vsel %vm315, %v2661, 0
  %2680 = vmatprep.subr.mxu0 0.0
  %2681 = vmatpush1.msra.mxu0 %v2669
  %2682 = vmatprep.subr.mxu0 0.0
  %2683 = vmatpush1.msra.mxu0 %v2671
  %2684 = vmatprep.subr.mxu0 0.0
  %2685 = vmatpush1.msra.mxu0 0.0
  %2686 = vmatprep.subr.mxu0 0.0
  %2687 = vmatpush1.msra.mxu0 0.0
  %2688 = vmatprep.subr.mxu0 0.0
  %2689 = vmatpush1.msra.mxu0 0.0
  %2690 = vmatprep.subr.mxu0 0.0
  %2691 = vmatpush1.msra.mxu0 0.0
  %2692 = vmatprep.subr.mxu0 0.0
  %2693 = vmatpush1.msra.mxu0 0.0
  %2694 = vmatprep.subr.mxu0 0.0
  %2695 = vmatpush1.msra.mxu0 0.0
  %2696 = vmatprep.subr.mxu0 0.0
  %2697 = vmatpush1.msra.mxu0 0.0
  %2698 = vmatprep.subr.mxu0 0.0
  %2699 = vmatpush1.msra.mxu0 0.0
  %2700 = vmatprep.subr.mxu0 0.0
  %2701 = vmatpush1.msra.mxu0 0.0
  %2702 = vmatprep.subr.mxu0 0.0
  %2703 = vmatpush1.msra.mxu0 0.0
  %2704 = vmatprep.subr.mxu0 0.0
  %2705 = vmatpush1.msra.mxu0 0.0
  %2706 = vmatprep.subr.mxu0 0.0
  %2707 = vmatpush1.msra.mxu0 0.0
  %2708 = vmatprep.subr.mxu0 0.0
  %2709 = vmatpush1.msra.mxu0 0.0
  %2710 = vmatprep.subr.mxu0 0.0
  %2711 = vmatpush1.msra.mxu0 0.0
  %2712 = vmatprep.subr.mxu0 0.0
  %2713 = vmatpush1.msra.mxu0 0.0
  %2714 = vmatprep.subr.mxu0 0.0
  %2715 = vmatpush1.msra.mxu0 0.0
  %2716 = vmatprep.subr.mxu0 0.0
  %2717 = vmatpush1.msra.mxu0 0.0
  %2718 = vmatprep.subr.mxu0 0.0
  %2719 = vmatpush1.msra.mxu0 0.0
  %2720 = vmatprep.subr.mxu0 0.0
  %2721 = vmatpush1.msra.mxu0 0.0
  %2722 = vmatprep.subr.mxu0 0.0
  %2723 = vmatpush1.msra.mxu0 0.0
  %2724 = vmatprep.subr.mxu0 0.0
  %2725 = vmatpush1.msra.mxu0 0.0
  %2726 = vmatprep.subr.mxu0 0.0
  %2727 = vmatpush1.msra.mxu0 0.0
  %2728 = vmatprep.subr.mxu0 0.0
  %2729 = vmatpush1.msra.mxu0 0.0
  %2730 = vmatprep.subr.mxu0 0.0
  %2731 = vmatpush1.msra.mxu0 0.0
  %2732 = vmatprep.subr.mxu0 0.0
  %2733 = vmatpush1.msra.mxu0 0.0
  %2734 = vmatprep.subr.mxu0 0.0
  %2735 = vmatpush1.msra.mxu0 0.0
  %2736 = vmatprep.subr.mxu0 0.0
  %2737 = vmatpush1.msra.mxu0 0.0
  %2738 = vmatprep.subr.mxu0 0.0
  %2739 = vmatpush1.msra.mxu0 0.0
  %2740 = vmatprep.subr.mxu0 0.0
  %2741 = vmatpush1.msra.mxu0 0.0
  %2742 = vmatprep.subr.mxu0 0.0
  %2743 = vmatpush1.msra.mxu0 0.0
  %2744 = vmatprep.mubr.f32.mxu0 0.0
  %2745 = vmatmul.mubr.f32.gmra.mrb[0].mxu0 %v2675
  %v2746 = vpop.f32.mrb[0].mxu0
  %v2747 = vadd.f32 0.0, %v2746
  %v2748 = vpop.f32.mrb[0].mxu0
  %2749 = vmatprep.mubr.f32.mxu0 0.0
  %2750 = vmatmul.mubr.f32.gmra.mrb[0].mxu0 %v2678
  %v2751 = vpop.f32.mrb[0].mxu0
  %v2752 = vadd.f32 0.0, %v2751
  %v2753 = vpop.f32.mrb[0].mxu0
  %2754 = vdwg.mxu0
  %v2755 = vrcp.pop %v2664
  %v2756 = vmul.f32 %v2747, %v2755
  %v2757 = vrcp.pop %v2667
  %v2758 = vmul.f32 %v2752, %v2757
  %2761 = vrot.lane.b32.xlu0 %v21, 8
  %v2762 = vpop.permute.xlu0 %2761
  %2763 = vrot.lane.b32.xlu0 %v26, 8
  %v2764 = vpop.permute.xlu0 %2763
  %v2765 = vsel %vm633, %v2762, %v2764
  %v2767 = vsel %vm229, %v2756, 0
  %v2770 = vsel %vm229, %v2758, 0
  %v2772 = vsel %vm641, %v2765, 0
  %2774 = vmatprep.subr.mxu0 0.0
  %2775 = vmatpush1.msra.mxu0 %v2772
  %2776 = vmatprep.subr.mxu0 0.0
  %2777 = vmatpush1.msra.mxu0 0.0
  %2778 = vmatprep.subr.mxu0 0.0
  %2779 = vmatpush1.msra.mxu0 0.0
  %2780 = vmatprep.subr.mxu0 0.0
  %2781 = vmatpush1.msra.mxu0 0.0
  %2782 = vmatprep.subr.mxu0 0.0
  %2783 = vmatpush1.msra.mxu0 0.0
  %2784 = vmatprep.subr.mxu0 0.0
  %2785 = vmatpush1.msra.mxu0 0.0
  %2786 = vmatprep.subr.mxu0 0.0
  %2787 = vmatpush1.msra.mxu0 0.0
  %2788 = vmatprep.subr.mxu0 0.0
  %2789 = vmatpush1.msra.mxu0 0.0
  %2790 = vmatprep.subr.mxu0 0.0
  %2791 = vmatpush1.msra.mxu0 0.0
  %2792 = vmatprep.subr.mxu0 0.0
  %2793 = vmatpush1.msra.mxu0 0.0
  %2794 = vmatprep.subr.mxu0 0.0
  %2795 = vmatpush1.msra.mxu0 0.0
  %2796 = vmatprep.subr.mxu0 0.0
  %2797 = vmatpush1.msra.mxu0 0.0
  %2798 = vmatprep.subr.mxu0 0.0
  %2799 = vmatpush1.msra.mxu0 0.0
  %2800 = vmatprep.subr.mxu0 0.0
  %2801 = vmatpush1.msra.mxu0 0.0
  %2802 = vmatprep.subr.mxu0 0.0
  %2803 = vmatpush1.msra.mxu0 0.0
  %2804 = vmatprep.subr.mxu0 0.0
  %2805 = vmatpush1.msra.mxu0 0.0
  %2806 = vmatprep.subr.mxu0 0.0
  %2807 = vmatpush1.msra.mxu0 0.0
  %2808 = vmatprep.subr.mxu0 0.0
  %2809 = vmatpush1.msra.mxu0 0.0
  %2810 = vmatprep.subr.mxu0 0.0
  %2811 = vmatpush1.msra.mxu0 0.0
  %2812 = vmatprep.subr.mxu0 0.0
  %2813 = vmatpush1.msra.mxu0 0.0
  %2814 = vmatprep.subr.mxu0 0.0
  %2815 = vmatpush1.msra.mxu0 0.0
  %2816 = vmatprep.subr.mxu0 0.0
  %2817 = vmatpush1.msra.mxu0 0.0
  %2818 = vmatprep.subr.mxu0 0.0
  %2819 = vmatpush1.msra.mxu0 0.0
  %2820 = vmatprep.subr.mxu0 0.0
  %2821 = vmatpush1.msra.mxu0 0.0
  %2822 = vmatprep.subr.mxu0 0.0
  %2823 = vmatpush1.msra.mxu0 0.0
  %2824 = vmatprep.subr.mxu0 0.0
  %2825 = vmatpush1.msra.mxu0 0.0
  %2826 = vmatprep.subr.mxu0 0.0
  %2827 = vmatpush1.msra.mxu0 0.0
  %2828 = vmatprep.subr.mxu0 0.0
  %2829 = vmatpush1.msra.mxu0 0.0
  %2830 = vmatprep.subr.mxu0 0.0
  %2831 = vmatpush1.msra.mxu0 0.0
  %2832 = vmatprep.subr.mxu0 0.0
  %2833 = vmatpush1.msra.mxu0 0.0
  %2834 = vmatprep.subr.mxu0 0.0
  %2835 = vmatpush1.msra.mxu0 0.0
  %2836 = vmatprep.subr.mxu0 0.0
  %2837 = vmatpush1.msra.mxu0 0.0
  %2838 = vmatprep.mubr.f32.mxu0 0.0
  %2839 = vmatmul.mubr.f32.gmra.mrb[0].mxu0 %v2767
  %v2840 = vpop.f32.mrb[0].mxu0
  %v2841 = vadd.f32 0.0, %v2840
  %v2842 = vpop.f32.mrb[0].mxu0
  %2843 = vmatprep.mubr.f32.mxu0 0.0
  %2844 = vmatmul.mubr.f32.gmra.mrb[0].mxu0 %v2770
  %v2845 = vpop.f32.mrb[0].mxu0
  %v2846 = vadd.f32 0.0, %v2845
  %v2847 = vpop.f32.mrb[0].mxu0
  %2848 = vdwg.mxu0
  %v2849 = vadd.f32 %v2557, %v2841
  %v2850 = vadd.f32 %v2558, %v2846
  %2851 = vrot.lane.b32.xlu0 %v176, 92
  %v2852 = vpop.permute.xlu0 %2851
  %2853 = vrot.lane.b32.xlu0 %v177, 92
  %v2854 = vpop.permute.xlu0 %2853
  %2855 = vrot.lane.b32.xlu0 %v168, 52
  %v2856 = vpop.permute.xlu0 %2855
  %2857 = vrot.lane.b32.xlu0 %v173, 52
  %v2858 = vpop.permute.xlu0 %2857
  %v2859 = vsel %vm229, %v2852, 0
  %v2861 = vsel %vm229, %v2854, 0
  %v2863 = vsel %vm229, %v2856, 0
  %v2865 = vsel %vm229, %v2858, 0
  %2867 = vmatprep.subr.mxu0 0.0
  %2868 = vmatpush1.xpose.msra.mxu0 %v2863
  %2869 = vmatprep.subr.mxu0 0.0
  %2870 = vmatpush1.xpose.msra.mxu0 %v2865
  %2871 = vmatprep.subr.mxu0 0.0
  %2872 = vmatpush1.xpose.msra.mxu0 0.0
  %2873 = vmatprep.subr.mxu0 0.0
  %2874 = vmatpush1.xpose.msra.mxu0 0.0
  %2875 = vmatprep.subr.mxu0 0.0
  %2876 = vmatpush1.xpose.msra.mxu0 0.0
  %2877 = vmatprep.subr.mxu0 0.0
  %2878 = vmatpush1.xpose.msra.mxu0 0.0
  %2879 = vmatprep.subr.mxu0 0.0
  %2880 = vmatpush1.xpose.msra.mxu0 0.0
  %2881 = vmatprep.subr.mxu0 0.0
  %2882 = vmatpush1.xpose.msra.mxu0 0.0
  %2883 = vmatprep.subr.mxu0 0.0
  %2884 = vmatpush1.xpose.msra.mxu0 0.0
  %2885 = vmatprep.subr.mxu0 0.0
  %2886 = vmatpush1.xpose.msra.mxu0 0.0
  %2887 = vmatprep.subr.mxu0 0.0
  %2888 = vmatpush1.xpose.msra.mxu0 0.0
  %2889 = vmatprep.subr.mxu0 0.0
  %2890 = vmatpush1.xpose.msra.mxu0 0.0
  %2891 = vmatprep.subr.mxu0 0.0
  %2892 = vmatpush1.xpose.msra.mxu0 0.0
  %2893 = vmatprep.subr.mxu0 0.0
  %2894 = vmatpush1.xpose.msra.mxu0 0.0
  %2895 = vmatprep.subr.mxu0 0.0
  %2896 = vmatpush1.xpose.msra.mxu0 0.0
  %2897 = vmatprep.subr.mxu0 0.0
  %2898 = vmatpush1.xpose.msra.mxu0 0.0
  %2899 = vmatprep.subr.mxu0 0.0
  %2900 = vmatpush1.xpose.msra.mxu0 0.0
  %2901 = vmatprep.subr.mxu0 0.0
  %2902 = vmatpush1.xpose.msra.mxu0 0.0
  %2903 = vmatprep.subr.mxu0 0.0
  %2904 = vmatpush1.xpose.msra.mxu0 0.0
  %2905 = vmatprep.subr.mxu0 0.0
  %2906 = vmatpush1.xpose.msra.mxu0 0.0
  %2907 = vmatprep.subr.mxu0 0.0
  %2908 = vmatpush1.xpose.msra.mxu0 0.0
  %2909 = vmatprep.subr.mxu0 0.0
  %2910 = vmatpush1.xpose.msra.mxu0 0.0
  %2911 = vmatprep.subr.mxu0 0.0
  %2912 = vmatpush1.xpose.msra.mxu0 0.0
  %2913 = vmatprep.subr.mxu0 0.0
  %2914 = vmatpush1.xpose.msra.mxu0 0.0
  %2915 = vmatprep.subr.mxu0 0.0
  %2916 = vmatpush1.xpose.msra.mxu0 0.0
  %2917 = vmatprep.subr.mxu0 0.0
  %2918 = vmatpush1.xpose.msra.mxu0 0.0
  %2919 = vmatprep.subr.mxu0 0.0
  %2920 = vmatpush1.xpose.msra.mxu0 0.0
  %2921 = vmatprep.subr.mxu0 0.0
  %2922 = vmatpush1.xpose.msra.mxu0 0.0
  %2923 = vmatprep.subr.mxu0 0.0
  %2924 = vmatpush1.xpose.msra.mxu0 0.0
  %2925 = vmatprep.subr.mxu0 0.0
  %2926 = vmatpush1.xpose.msra.mxu0 0.0
  %2927 = vmatprep.subr.mxu0 0.0
  %2928 = vmatpush1.xpose.msra.mxu0 0.0
  %2929 = vmatprep.subr.mxu0 0.0
  %2930 = vmatpush1.xpose.msra.mxu0 0.0
  %2931 = vmatprep.mubr.f32.mxu0 0.0
  %2932 = vmatmul.mubr.f32.gmra.mrb[0].mxu0 %v2859
  %v2933 = vpop.f32.mrb[0].mxu0
  %v2934 = vadd.f32 %v221, %v2933
  %v2935 = vpop.f32.mrb[0].mxu0
  %2936 = vmatprep.mubr.f32.mxu0 0.0
  %2937 = vmatmul.mubr.f32.gmra.mrb[0].mxu0 %v2861
  %v2938 = vpop.f32.mrb[0].mxu0
  %v2939 = vadd.f32 %v222, %v2938
  %v2940 = vpop.f32.mrb[0].mxu0
  %2941 = vdwg.mxu0
  %v2942 = vsel %vm315, %v2934, -inf
  %2943 = vmax.xlane.f32.xlu0 %v2942
  %v2944 = vpop.xlane.xlu0 %2943
  %v2945 = vsel %vm315, %v2939, -inf
  %2946 = vmax.xlane.f32.xlu0 %v2945
  %v2947 = vpop.xlane.xlu0 %2946
  %v2948 = vsub.f32 %v2934, %v2944
  %v2949 = vsub.f32 %v2939, %v2947
  %v2950 = vmul.f32 %v2948, 1.442695
  %v2951 = vpow.pop %v2950
  %v2952 = vmul.f32 %v2949, 1.442695
  %v2953 = vpow.pop %v2952
  %v2954 = vsel %vm315, %v2951, 0.0
  %2955 = vadd.xlane.f32.xlu0 %v2954
  %v2956 = vpop.xlane.xlu0 %2955
  %v2957 = vsel %vm315, %v2953, 0.0
  %2958 = vadd.xlane.f32.xlu0 %v2957
  %v2959 = vpop.xlane.xlu0 %2958
  %2960 = vrot.lane.b32.xlu0 %v168, 12
  %v2961 = vpop.permute.xlu0 %2960
  %2962 = vrot.lane.b32.xlu0 %v173, 12
  %v2963 = vpop.permute.xlu0 %2962
  %v2967 = vsel %vm315, %v2951, 0
  %v2970 = vsel %vm315, %v2953, 0
  %2972 = vmatprep.subr.mxu0 0.0
  %2973 = vmatpush1.msra.mxu0 %v2961
  %2974 = vmatprep.subr.mxu0 0.0
  %2975 = vmatpush1.msra.mxu0 %v2963
  %2976 = vmatprep.subr.mxu0 0.0
  %2977 = vmatpush1.msra.mxu0 0.0
  %2978 = vmatprep.subr.mxu0 0.0
  %2979 = vmatpush1.msra.mxu0 0.0
  %2980 = vmatprep.subr.mxu0 0.0
  %2981 = vmatpush1.msra.mxu0 0.0
  %2982 = vmatprep.subr.mxu0 0.0
  %2983 = vmatpush1.msra.mxu0 0.0
  %2984 = vmatprep.subr.mxu0 0.0
  %2985 = vmatpush1.msra.mxu0 0.0
  %2986 = vmatprep.subr.mxu0 0.0
  %2987 = vmatpush1.msra.mxu0 0.0
  %2988 = vmatprep.subr.mxu0 0.0
  %2989 = vmatpush1.msra.mxu0 0.0
  %2990 = vmatprep.subr.mxu0 0.0
  %2991 = vmatpush1.msra.mxu0 0.0
  %2992 = vmatprep.subr.mxu0 0.0
  %2993 = vmatpush1.msra.mxu0 0.0
  %2994 = vmatprep.subr.mxu0 0.0
  %2995 = vmatpush1.msra.mxu0 0.0
  %2996 = vmatprep.subr.mxu0 0.0
  %2997 = vmatpush1.msra.mxu0 0.0
  %2998 = vmatprep.subr.mxu0 0.0
  %2999 = vmatpush1.msra.mxu0 0.0
  %3000 = vmatprep.subr.mxu0 0.0
  %3001 = vmatpush1.msra.mxu0 0.0
  %3002 = vmatprep.subr.mxu0 0.0
  %3003 = vmatpush1.msra.mxu0 0.0
  %3004 = vmatprep.subr.mxu0 0.0
  %3005 = vmatpush1.msra.mxu0 0.0
  %3006 = vmatprep.subr.mxu0 0.0
  %3007 = vmatpush1.msra.mxu0 0.0
  %3008 = vmatprep.subr.mxu0 0.0
  %3009 = vmatpush1.msra.mxu0 0.0
  %3010 = vmatprep.subr.mxu0 0.0
  %3011 = vmatpush1.msra.mxu0 0.0
  %3012 = vmatprep.subr.mxu0 0.0
  %3013 = vmatpush1.msra.mxu0 0.0
  %3014 = vmatprep.subr.mxu0 0.0
  %3015 = vmatpush1.msra.mxu0 0.0
  %3016 = vmatprep.subr.mxu0 0.0
  %3017 = vmatpush1.msra.mxu0 0.0
  %3018 = vmatprep.subr.mxu0 0.0
  %3019 = vmatpush1.msra.mxu0 0.0
  %3020 = vmatprep.subr.mxu0 0.0
  %3021 = vmatpush1.msra.mxu0 0.0
  %3022 = vmatprep.subr.mxu0 0.0
  %3023 = vmatpush1.msra.mxu0 0.0
  %3024 = vmatprep.subr.mxu0 0.0
  %3025 = vmatpush1.msra.mxu0 0.0
  %3026 = vmatprep.subr.mxu0 0.0
  %3027 = vmatpush1.msra.mxu0 0.0
  %3028 = vmatprep.subr.mxu0 0.0
  %3029 = vmatpush1.msra.mxu0 0.0
  %3030 = vmatprep.subr.mxu0 0.0
  %3031 = vmatpush1.msra.mxu0 0.0
  %3032 = vmatprep.subr.mxu0 0.0
  %3033 = vmatpush1.msra.mxu0 0.0
  %3034 = vmatprep.subr.mxu0 0.0
  %3035 = vmatpush1.msra.mxu0 0.0
  %3036 = vmatprep.mubr.f32.mxu0 0.0
  %3037 = vmatmul.mubr.f32.gmra.mrb[0].mxu0 %v2967
  %v3038 = vpop.f32.mrb[0].mxu0
  %v3039 = vadd.f32 0.0, %v3038
  %v3040 = vpop.f32.mrb[0].mxu0
  %3041 = vmatprep.mubr.f32.mxu0 0.0
  %3042 = vmatmul.mubr.f32.gmra.mrb[0].mxu0 %v2970
  %v3043 = vpop.f32.mrb[0].mxu0
  %v3044 = vadd.f32 0.0, %v3043
  %v3045 = vpop.f32.mrb[0].mxu0
  %3046 = vdwg.mxu0
  %v3047 = vrcp.pop %v2956
  %v3048 = vmul.f32 %v3039, %v3047
  %v3049 = vrcp.pop %v2959
  %v3050 = vmul.f32 %v3044, %v3049
  %v3051 = vrot.slane %v21, 4
  %v3052 = vrot.slane %v26, 4
  %3053 = vrot.lane.b32.xlu0 %v3051, 8
  %v3054 = vpop.permute.xlu0 %3053
  %3055 = vrot.lane.b32.xlu0 %v3052, 8
  %v3056 = vpop.permute.xlu0 %3055
  %v3057 = vsel %vm633, %v3054, %v3056
  %v3059 = vsel %vm229, %v3048, 0
  %v3062 = vsel %vm229, %v3050, 0
  %v3064 = vsel %vm641, %v3057, 0
  %3066 = vmatprep.subr.mxu0 0.0
  %3067 = vmatpush1.msra.mxu0 %v3064
  %3068 = vmatprep.subr.mxu0 0.0
  %3069 = vmatpush1.msra.mxu0 0.0
  %3070 = vmatprep.subr.mxu0 0.0
  %3071 = vmatpush1.msra.mxu0 0.0
  %3072 = vmatprep.subr.mxu0 0.0
  %3073 = vmatpush1.msra.mxu0 0.0
  %3074 = vmatprep.subr.mxu0 0.0
  %3075 = vmatpush1.msra.mxu0 0.0
  %3076 = vmatprep.subr.mxu0 0.0
  %3077 = vmatpush1.msra.mxu0 0.0
  %3078 = vmatprep.subr.mxu0 0.0
  %3079 = vmatpush1.msra.mxu0 0.0
  %3080 = vmatprep.subr.mxu0 0.0
  %3081 = vmatpush1.msra.mxu0 0.0
  %3082 = vmatprep.subr.mxu0 0.0
  %3083 = vmatpush1.msra.mxu0 0.0
  %3084 = vmatprep.subr.mxu0 0.0
  %3085 = vmatpush1.msra.mxu0 0.0
  %3086 = vmatprep.subr.mxu0 0.0
  %3087 = vmatpush1.msra.mxu0 0.0
  %3088 = vmatprep.subr.mxu0 0.0
  %3089 = vmatpush1.msra.mxu0 0.0
  %3090 = vmatprep.subr.mxu0 0.0
  %3091 = vmatpush1.msra.mxu0 0.0
  %3092 = vmatprep.subr.mxu0 0.0
  %3093 = vmatpush1.msra.mxu0 0.0
  %3094 = vmatprep.subr.mxu0 0.0
  %3095 = vmatpush1.msra.mxu0 0.0
  %3096 = vmatprep.subr.mxu0 0.0
  %3097 = vmatpush1.msra.mxu0 0.0
  %3098 = vmatprep.subr.mxu0 0.0
  %3099 = vmatpush1.msra.mxu0 0.0
  %3100 = vmatprep.subr.mxu0 0.0
  %3101 = vmatpush1.msra.mxu0 0.0
  %3102 = vmatprep.subr.mxu0 0.0
  %3103 = vmatpush1.msra.mxu0 0.0
  %3104 = vmatprep.subr.mxu0 0.0
  %3105 = vmatpush1.msra.mxu0 0.0
  %3106 = vmatprep.subr.mxu0 0.0
  %3107 = vmatpush1.msra.mxu0 0.0
  %3108 = vmatprep.subr.mxu0 0.0
  %3109 = vmatpush1.msra.mxu0 0.0
  %3110 = vmatprep.subr.mxu0 0.0
  %3111 = vmatpush1.msra.mxu0 0.0
  %3112 = vmatprep.subr.mxu0 0.0
  %3113 = vmatpush1.msra.mxu0 0.0
  %3114 = vmatprep.subr.mxu0 0.0
  %3115 = vmatpush1.msra.mxu0 0.0
  %3116 = vmatprep.subr.mxu0 0.0
  %3117 = vmatpush1.msra.mxu0 0.0
  %3118 = vmatprep.subr.mxu0 0.0
  %3119 = vmatpush1.msra.mxu0 0.0
  %3120 = vmatprep.subr.mxu0 0.0
  %3121 = vmatpush1.msra.mxu0 0.0
  %3122 = vmatprep.subr.mxu0 0.0
  %3123 = vmatpush1.msra.mxu0 0.0
  %3124 = vmatprep.subr.mxu0 0.0
  %3125 = vmatpush1.msra.mxu0 0.0
  %3126 = vmatprep.subr.mxu0 0.0
  %3127 = vmatpush1.msra.mxu0 0.0
  %3128 = vmatprep.subr.mxu0 0.0
  %3129 = vmatpush1.msra.mxu0 0.0
  %3130 = vmatprep.mubr.f32.mxu0 0.0
  %3131 = vmatmul.mubr.f32.gmra.mrb[0].mxu0 %v3059
  %v3132 = vpop.f32.mrb[0].mxu0
  %v3133 = vadd.f32 0.0, %v3132
  %v3134 = vpop.f32.mrb[0].mxu0
  %3135 = vmatprep.mubr.f32.mxu0 0.0
  %3136 = vmatmul.mubr.f32.gmra.mrb[0].mxu0 %v3062
  %v3137 = vpop.f32.mrb[0].mxu0
  %v3138 = vadd.f32 0.0, %v3137
  %v3139 = vpop.f32.mrb[0].mxu0
  %3140 = vdwg.mxu0
  %v3141 = vadd.f32 %v2849, %v3133
  %v3142 = vadd.f32 %v2850, %v3138
  %v3143 = vadd.f32 %v3141, %v53
  %v3144 = vadd.f32 %v3142, %v53
  %v3145 = vadd.f32 %v3143, %v61
  %v3146 = vadd.f32 %v3144, %v62
  %v3147 = vsel %vm63, %v3145, 0.0
  %3148 = vadd.xlane.f32.xlu0 %v3147
  %v3149 = vpop.xlane.xlu0 %3148
  %v3150 = vsel %vm63, %v3146, 0.0
  %3151 = vadd.xlane.f32.xlu0 %v3150
  %v3152 = vpop.xlane.xlu0 %3151
  %v3153 = vmul.f32 %v3149, %v70
  %v3154 = vmul.f32 %v3152, %v70
  %v3155 = vsub.f32 %v3145, %v3153
  %v3156 = vsub.f32 %v3146, %v3154
  %v3157 = vmul.f32 %v3155, %v3155
  %v3158 = vmul.f32 %v3156, %v3156
  %v3159 = vsel %vm63, %v3157, 0.0
  %3160 = vadd.xlane.f32.xlu0 %v3159
  %v3161 = vpop.xlane.xlu0 %3160
  %v3162 = vsel %vm63, %v3158, 0.0
  %3163 = vadd.xlane.f32.xlu0 %v3162
  %v3164 = vpop.xlane.xlu0 %3163
  %v3165 = vmul.f32 %v3161, %v70
  %v3166 = vmul.f32 %v3164, %v70
  %v3167 = vadd.f32 %v3165, 1e-05
  %v3168 = vadd.f32 %v3166, 1e-05
  %v3169 = vrsqrt.pop %v3167
  %v3170 = vrsqrt.pop %v3168
  %v3171 = vmul.f32 %v3155, %v3169
  %v3172 = vmul.f32 %v3156, %v3170
  %v3173 = vmul.f32 %v3171, %v59
  %v3174 = vmul.f32 %v3172, %v59
  %v3175 = vadd.f32 %v3173, %v60
  %v3176 = vadd.f32 %v3174, %v60
  %v3178 = vlaneseq
  %v3179 = vshrl.u32 %v3178, 7
  %v3180 = vsub.s32 0, %v3179
  %v3181 = vrot.slane %v55, %v3180
  %v3182 = vlaneseq
  %v3183 = vshrl.u32 %v3182, 7
  %v3184 = vsub.s32 1, %v3183
  %v3185 = vrot.slane %v55, %v3184
  %3193 = vrot.lane.b32.xlu0 %v22, 96
  %v3194 = vpop.permute.xlu0 %3193
  %3195 = vrot.lane.b32.xlu0 %v27, 96
  %v3196 = vpop.permute.xlu0 %3195
  %3197 = vrot.lane.b32.xlu0 %v23, 96
  %v3198 = vpop.permute.xlu0 %3197
  %3199 = vrot.lane.b32.xlu0 %v28, 96
  %v3200 = vpop.permute.xlu0 %3199
  %3201 = vrot.lane.b32.xlu0 %v24, 96
  %v3202 = vpop.permute.xlu0 %3201
  %3203 = vrot.lane.b32.xlu0 %v29, 96
  %v3204 = vpop.permute.xlu0 %3203
  %3205 = vrot.lane.b32.xlu0 %v25, 96
  %v3206 = vpop.permute.xlu0 %3205
  %3207 = vrot.lane.b32.xlu0 %v30, 96
  %v3208 = vpop.permute.xlu0 %3207
  %3209 = vrot.lane.b32.xlu0 %v26, 96
  %v3210 = vpop.permute.xlu0 %3209
  %3211 = vrot.lane.b32.xlu0 %v31, 96
  %v3212 = vpop.permute.xlu0 %3211
  %vm3213 = vcmask 785408
  %v3214 = vsel %vm3213, %v3194, %v3196
  %v3215 = vsel %vm3213, %v3198, %v3200
  %v3216 = vsel %vm3213, %v3202, %v3204
  %v3217 = vsel %vm3213, %v3206, %v3208
  %v3218 = vsel %vm3213, %v3210, %v3212
  %v3230 = vsel %vm63, %v3175, 0
  %v3233 = vsel %vm63, %v3176, 0
  %3235 = vmatprep.subr.mxu0 %v3196
  %3236 = vmatpush1.msra.mxu0 %v3214
  %3237 = vmatprep.subr.mxu0 %v3200
  %3238 = vmatpush1.msra.mxu0 %v3215
  %3239 = vmatprep.subr.mxu0 %v3204
  %3240 = vmatpush1.msra.mxu0 %v3216
  %3241 = vmatprep.subr.mxu0 %v3208
  %3242 = vmatpush1.msra.mxu0 %v3217
  %3243 = vmatprep.subr.mxu0 %v3212
  %3244 = vmatpush1.msra.mxu0 %v3218
  %3245 = vmatprep.subr.mxu0 0.0
  %3246 = vmatpush1.msra.mxu0 0.0
  %3247 = vmatprep.subr.mxu0 0.0
  %3248 = vmatpush1.msra.mxu0 0.0
  %3249 = vmatprep.subr.mxu0 0.0
  %3250 = vmatpush1.msra.mxu0 0.0
  %3251 = vmatprep.subr.mxu0 0.0
  %3252 = vmatpush1.msra.mxu0 0.0
  %3253 = vmatprep.subr.mxu0 0.0
  %3254 = vmatpush1.msra.mxu0 0.0
  %3255 = vmatprep.subr.mxu0 0.0
  %3256 = vmatpush1.msra.mxu0 0.0
  %3257 = vmatprep.subr.mxu0 0.0
  %3258 = vmatpush1.msra.mxu0 0.0
  %3259 = vmatprep.subr.mxu0 0.0
  %3260 = vmatpush1.msra.mxu0 0.0
  %3261 = vmatprep.subr.mxu0 0.0
  %3262 = vmatpush1.msra.mxu0 0.0
  %3263 = vmatprep.subr.mxu0 0.0
  %3264 = vmatpush1.msra.mxu0 0.0
  %3265 = vmatprep.subr.mxu0 0.0
  %3266 = vmatpush1.msra.mxu0 0.0
  %3267 = vmatprep.subr.mxu0 0.0
  %3268 = vmatpush1.msra.mxu0 0.0
  %3269 = vmatprep.subr.mxu0 0.0
  %3270 = vmatpush1.msra.mxu0 0.0
  %3271 = vmatprep.subr.mxu0 0.0
  %3272 = vmatpush1.msra.mxu0 0.0
  %3273 = vmatprep.subr.mxu0 0.0
  %3274 = vmatpush1.msra.mxu0 0.0
  %3275 = vmatprep.subr.mxu0 0.0
  %3276 = vmatpush1.msra.mxu0 0.0
  %3277 = vmatprep.subr.mxu0 0.0
  %3278 = vmatpush1.msra.mxu0 0.0
  %3279 = vmatprep.subr.mxu0 0.0
  %3280 = vmatpush1.msra.mxu0 0.0
  %3281 = vmatprep.subr.mxu0 0.0
  %3282 = vmatpush1.msra.mxu0 0.0
  %3283 = vmatprep.subr.mxu0 0.0
  %3284 = vmatpush1.msra.mxu0 0.0
  %3285 = vmatprep.subr.mxu0 0.0
  %3286 = vmatpush1.msra.mxu0 0.0
  %3287 = vmatprep.subr.mxu0 0.0
  %3288 = vmatpush1.msra.mxu0 0.0
  %3289 = vmatprep.subr.mxu0 0.0
  %3290 = vmatpush1.msra.mxu0 0.0
  %3291 = vmatprep.subr.mxu0 0.0
  %3292 = vmatpush1.msra.mxu0 0.0
  %3293 = vmatprep.subr.mxu0 0.0
  %3294 = vmatpush1.msra.mxu0 0.0
  %3295 = vmatprep.subr.mxu0 0.0
  %3296 = vmatpush1.msra.mxu0 0.0
  %3297 = vmatprep.subr.mxu0 0.0
  %3298 = vmatpush1.msra.mxu0 0.0
  %3299 = vmatprep.mubr.f32.mxu0 0.0
  %3300 = vmatmul.mubr.f32.gmra.mrb[0].mxu0 %v3230
  %v3301 = vpop.f32.mrb[0].mxu0
  %v3302 = vadd.f32 %v3181, %v3301
  %v3303 = vpop.f32.mrb[0].mxu0
  %v3304 = vadd.f32 %v3185, %v3303
  %3305 = vmatprep.mubr.f32.mxu0 0.0
  %3306 = vmatmul.mubr.f32.gmra.mrb[0].mxu0 %v3233
  %v3307 = vpop.f32.mrb[0].mxu0
  %v3308 = vadd.f32 %v3181, %v3307
  %v3309 = vpop.f32.mrb[0].mxu0
  %v3310 = vadd.f32 %v3185, %v3309
  %3311 = vdwg.mxu0
  %v3312 = vmax.f32 %v3302, 0.0
  %v3313 = vmax.f32 %v3304, 0.0
  %v3314 = vmax.f32 %v3308, 0.0
  %v3315 = vmax.f32 %v3310, 0.0
  %vm3316 = vcmask 261120
  %v3318 = vsel %vm3316, %v3313, 0
  %v3321 = vsel %vm3316, %v3315, 0
  %3323 = vmatprep.subr.mxu0 0.0
  %3324 = vmatpush1.msra.mxu0 %v32
  %3325 = vmatprep.subr.mxu0 0.0
  %3326 = vmatpush1.msra.mxu0 %v33
  %3327 = vmatprep.subr.mxu0 0.0
  %3328 = vmatpush1.msra.mxu0 %v34
  %3329 = vmatprep.subr.mxu0 0.0
  %3330 = vmatpush1.msra.mxu0 %v35
  %3331 = vmatprep.subr.mxu0 0.0
  %3332 = vmatpush1.msra.mxu0 %v36
  %3333 = vmatprep.subr.mxu0 0.0
  %3334 = vmatpush1.msra.mxu0 %v37
  %3335 = vmatprep.subr.mxu0 0.0
  %3336 = vmatpush1.msra.mxu0 %v38
  %3337 = vmatprep.subr.mxu0 0.0
  %3338 = vmatpush1.msra.mxu0 %v39
  %3339 = vmatprep.subr.mxu0 0.0
  %3340 = vmatpush1.msra.mxu0 %v40
  %3341 = vmatprep.subr.mxu0 0.0
  %3342 = vmatpush1.msra.mxu0 %v41
  %3343 = vmatprep.subr.mxu0 0.0
  %3344 = vmatpush1.msra.mxu0 %v42
  %3345 = vmatprep.subr.mxu0 0.0
  %3346 = vmatpush1.msra.mxu0 %v43
  %3347 = vmatprep.subr.mxu0 0.0
  %3348 = vmatpush1.msra.mxu0 %v44
  %3349 = vmatprep.subr.mxu0 0.0
  %3350 = vmatpush1.msra.mxu0 %v45
  %3351 = vmatprep.subr.mxu0 0.0
  %3352 = vmatpush1.msra.mxu0 %v46
  %3353 = vmatprep.subr.mxu0 0.0
  %3354 = vmatpush1.msra.mxu0 %v47
  %3355 = vmatprep.subr.mxu0 0.0
  %3356 = vmatpush1.msra.mxu0 %v48
  %3357 = vmatprep.subr.mxu0 0.0
  %3358 = vmatpush1.msra.mxu0 %v49
  %3359 = vmatprep.subr.mxu0 0.0
  %3360 = vmatpush1.msra.mxu0 %v50
  %3361 = vmatprep.subr.mxu0 0.0
  %3362 = vmatpush1.msra.mxu0 %v51
  %3363 = vmatprep.subr.mxu0 0.0
  %3364 = vmatpush1.msra.mxu0 0.0
  %3365 = vmatprep.subr.mxu0 0.0
  %3366 = vmatpush1.msra.mxu0 0.0
  %3367 = vmatprep.subr.mxu0 0.0
  %3368 = vmatpush1.msra.mxu0 0.0
  %3369 = vmatprep.subr.mxu0 0.0
  %3370 = vmatpush1.msra.mxu0 0.0
  %3371 = vmatprep.subr.mxu0 0.0
  %3372 = vmatpush1.msra.mxu0 0.0
  %3373 = vmatprep.subr.mxu0 0.0
  %3374 = vmatpush1.msra.mxu0 0.0
  %3375 = vmatprep.subr.mxu0 0.0
  %3376 = vmatpush1.msra.mxu0 0.0
  %3377 = vmatprep.subr.mxu0 0.0
  %3378 = vmatpush1.msra.mxu0 0.0
  %3379 = vmatprep.subr.mxu0 0.0
  %3380 = vmatpush1.msra.mxu0 0.0
  %3381 = vmatprep.subr.mxu0 0.0
  %3382 = vmatpush1.msra.mxu0 0.0
  %3383 = vmatprep.subr.mxu0 0.0
  %3384 = vmatpush1.msra.mxu0 0.0
  %3385 = vmatprep.subr.mxu0 0.0
  %3386 = vmatpush1.msra.mxu0 0.0
  %3387 = vmatprep.mubr.f32.mxu0 %v3318
  %3388 = vmatmul.mubr.f32.gmra.mrb[0].mxu0 %v3312
  %v3389 = vpop.f32.mrb[0].mxu0
  %v3390 = vadd.f32 %v56, %v3389
  %v3391 = vpop.f32.mrb[0].mxu0
  %3392 = vmatprep.mubr.f32.mxu0 %v3321
  %3393 = vmatmul.mubr.f32.gmra.mrb[0].mxu0 %v3314
  %v3394 = vpop.f32.mrb[0].mxu0
  %v3395 = vadd.f32 %v56, %v3394
  %v3396 = vpop.f32.mrb[0].mxu0
  %3397 = vdwg.mxu0
  %v3398 = vadd.f32 %v3390, %v3145
  %v3399 = vadd.f32 %v3395, %v3146
  %3400 = vst.msk [vmem:[%s4] sm:$0xff] %vm63, %v3398
  %3401 = vst.msk [vmem:[%s4 + $0x8] sm:$0xff] %vm63, %v3399
  // Predicated region
  $region18: #{transformer_encoder_layer.1} parent=0 // pred_check
    _
  $region19: #{transformer_encoder_layer.1} parent=0 // pred_check_branch
    %3403 = sbr.rel (0) target = $region21
  $region20: #{transformer_encoder_layer.1} parent=0 // pred_region
    _
  $region21: #{transformer_encoder_layer.1} parent=0 // pred_fallthru
    _
  // Predicated region
  $region22: #{transformer_encoder_layer.1} parent=0 // pred_check
    _
  $region23: #{transformer_encoder_layer.1} parent=0 // pred_check_branch
    %3405 = sbr.rel (0) target = $region25
  $region24: #{transformer_encoder_layer.1} parent=0 // pred_region
    _
  $region25: #{transformer_encoder_layer.1} parent=0 // pred_fallthru
    _

</llo_original>
